<compile_context>
chip_gen: v7x
topology: tpu7x:2x2x1
jax: 0.10.0
libtpu: 0.0.40
codegen_flags: <defaults>
</compile_context>

<pallas_src>
import jax
import jax.numpy as jnp
from jax.experimental import pallas as pl
from jax.experimental.pallas import tpu as pltpu


def rnn_predictor_kernel(x_ref, h0_ref, w_pre_ref, b_pre_ref,
                         w_ih_ref, w_hh_ref, b_rnn_ref,
                         w_fc_ref, b_fc_ref,
                         out_ref, hn_ref, g0_buf):
    # x_ref:    (T*Bc, Dp)   time-major rows for this batch chunk
    # h0_ref:   (L, Bc, Hp)
    # w_pre:    (Dp, Hp)     b_pre: (1, Hp)
    # w_ih:     (L, Hp, Hp)  w_hh: (L, Hp, Hp)   (pre-transposed: in x out)
    # b_rnn:    (L, Hp)      (= b_ih + b_hh, zero-padded)
    # w_fc:     (Hp, Op)     b_fc: (1, Op)
    # out_ref:  (T*Bc, Op)   hn_ref: (L, Bc, Hp)
    # g0_buf:   (T*Bc, Hp)   VMEM scratch: layer-0 gates for the whole sequence
    TB, Hp = g0_buf.shape
    L, Bc, _ = h0_ref.shape
    T = TB // Bc
    Op = out_ref.shape[-1]
    cdt = w_hh_ref.dtype            # matmul operand dtype (f32 or bf16)

    # ---- Hoisted stage: pre_fc + ReLU + layer-0 input-to-hidden -----------
    pre = jnp.dot(x_ref[...], w_pre_ref[...],
                  preferred_element_type=jnp.float32)
    act = jnp.maximum(pre + b_pre_ref[...], 0.0)
    g0_buf[...] = jnp.dot(act.astype(cdt), w_ih_ref[0],
                          preferred_element_type=jnp.float32)

    # ---- Hoisted per-layer biases (one vreg each, no per-step broadcast) ---
    b_rnn = [jnp.broadcast_to(b_rnn_ref[l:l + 1, :], (Bc, Hp))
             for l in range(L)]
    b_fc = jnp.broadcast_to(b_fc_ref[...], (Bc, Op))

    # ---- Hidden state as SSA values (no ref aliasing in the loop) ----------
    h = [h0_ref[l] for l in range(L)]

    # ---- Layer wavefront: step s runs layer l at timestep t = s - l --------
    # All active (layer, t) cells of a wavefront step are independent, so their
    # matmuls / tanhs overlap in the VLIW schedule (up to L-way ILP).
    for s in range(T + L - 1):
        h_prev = list(h)                      # snapshot from step s-1
        for l in range(L):
            t = s - l
            if t < 0 or t >= T:
                continue
            row = t * Bc                      # static, sublane-aligned
            if l == 0:
                gate = g0_buf[pl.ds(row, Bc), :]
            else:
                gate = jnp.dot(h_prev[l - 1].astype(cdt), w_ih_ref[l],
                               preferred_element_type=jnp.float32)
            h_new = jnp.tanh(
                gate + b_rnn[l]
                + jnp.dot(h_prev[l].astype(cdt), w_hh_ref[l],
                          preferred_element_type=jnp.float32))
            h[l] = h_new
            if l == L - 1:
                # Fused ReLU + fc for this timestep (idle-MXU-slot filler).
                out_ref[pl.ds(row, Bc), :] = (
                    jnp.dot(jnp.maximum(h_new, 0.0).astype(cdt), w_fc_ref[...],
                            preferred_element_type=jnp.float32) + b_fc)

    for l in range(L):
        hn_ref[l] = h[l]


def _round_up(n, m):
    return ((n + m - 1) // m) * m


def _pad_axis(a, axis, new_size):
    pad = [(0, 0)] * a.ndim
    pad[axis] = (0, new_size - a.shape[axis])
    return jnp.pad(a, pad)


def _size_bytes(shape, dtype):
    n = 1
    for d in shape:
        n *= int(d)
    return n * jnp.dtype(dtype).itemsize


def rnn_predictor_forward(x, hidden, params, *, matmul_dtype=jnp.float32):
    """x: (B, T, input_dim); hidden: tuple with hidden[0] of shape (L, B, H)."""
    h0 = hidden[0]
    B, T, Din = x.shape
    L, _, H = h0.shape
    O = params["w_fc"].shape[0]
    f32 = jnp.float32
    cdt = jnp.dtype(matmul_dtype)

    Bc = 8                                  # batch rows per grid step (sublanes)
    nchunks = pl.cdiv(B, Bc)
    Bt = nchunks * Bc
    Dp = _round_up(Din, 128)                # lane-dense input dim
    Hp = _round_up(H, 128)                  # lane-dense hidden dim
    Op = _round_up(O, 128)                  # lane-dense output dim

    # time-major, batch padded + chunked, flattened per chunk (no in-kernel reshapes)
    x_tm = jnp.transpose(x.astype(f32), (1, 0, 2))                  # (T, B, Din)
    x_tm = _pad_axis(_pad_axis(x_tm, 1, Bt), 2, Dp)                 # (T, Bt, Dp)
    x_tm = x_tm.reshape(T, nchunks, Bc, Dp).transpose(1, 0, 2, 3)
    x_tm = x_tm.reshape(nchunks, T * Bc, Dp).astype(cdt)

    h0_p = _pad_axis(_pad_axis(h0.astype(f32), 1, Bt), 2, Hp)       # (L, Bt, Hp)
    h0_p = h0_p.reshape(L, nchunks, Bc, Hp).transpose(1, 0, 2, 3)   # (nc,L,Bc,Hp)

    # pre-transposed, zero-padded weights (padded lanes stay exactly zero)
    w_pre = _pad_axis(_pad_axis(params["w_pre"].T.astype(f32), 0, Dp), 1, Hp).astype(cdt)
    b_pre = _pad_axis(params["b_pre"].reshape(1, -1).astype(f32), 1, Hp)
    w_ih = _pad_axis(_pad_axis(
        jnp.transpose(params["w_ih"], (0, 2, 1)).astype(f32), 1, Hp), 2, Hp).astype(cdt)
    w_hh = _pad_axis(_pad_axis(
        jnp.transpose(params["w_hh"], (0, 2, 1)).astype(f32), 1, Hp), 2, Hp).astype(cdt)
    b_rnn = _pad_axis((params["b_ih"] + params["b_hh"]).astype(f32), 1, Hp)
    w_fc = _pad_axis(_pad_axis(params["w_fc"].T.astype(f32), 0, Hp), 1, Op).astype(cdt)
    b_fc = _pad_axis(params["b_fc"].reshape(1, -1).astype(f32), 1, Op)

    # VMEM budget from the actual footprint (weights + double-buffered chunk
    # blocks + scratch), clamped to a per-generation-safe range.
    weight_bytes = sum(_size_bytes(a.shape, a.dtype)
                       for a in (w_pre, b_pre, w_ih, w_hh, b_rnn, w_fc, b_fc))
    block_bytes = (_size_bytes((T * Bc, Dp), cdt)
                   + 2 * _size_bytes((L, Bc, Hp), f32)
                   + _size_bytes((T * Bc, Op), f32))
    scratch_bytes = _size_bytes((T * Bc, Hp), f32)
    vmem_limit = int(min(100 * 2**20,
                         max(32 * 2**20,
                             2 * (weight_bytes + 2 * block_bytes + scratch_bytes))))

    in_specs = [
        pl.BlockSpec((None, T * Bc, Dp), lambda c: (c, 0, 0)),          # x chunk
        pl.BlockSpec((None, L, Bc, Hp), lambda c: (c, 0, 0, 0)),        # h0 chunk
        pl.BlockSpec((Dp, Hp), lambda c: (0, 0)),                       # w_pre
        pl.BlockSpec((1, Hp), lambda c: (0, 0)),                        # b_pre
        pl.BlockSpec((L, Hp, Hp), lambda c: (0, 0, 0)),                 # w_ih
        pl.BlockSpec((L, Hp, Hp), lambda c: (0, 0, 0)),                 # w_hh
        pl.BlockSpec((L, Hp), lambda c: (0, 0)),                        # b_rnn
        pl.BlockSpec((Hp, Op), lambda c: (0, 0)),                       # w_fc
        pl.BlockSpec((1, Op), lambda c: (0, 0)),                        # b_fc
    ]
    out_specs = (
        pl.BlockSpec((None, T * Bc, Op), lambda c: (c, 0, 0)),          # out chunk
        pl.BlockSpec((None, L, Bc, Hp), lambda c: (c, 0, 0, 0)),        # hn chunk
    )

    out_flat, h_n_p = pl.pallas_call(
        rnn_predictor_kernel,
        out_shape=(
            jax.ShapeDtypeStruct((nchunks, T * Bc, Op), f32),
            jax.ShapeDtypeStruct((nchunks, L, Bc, Hp), f32),
        ),
        grid=(nchunks,),
        in_specs=in_specs,
        out_specs=out_specs,
        scratch_shapes=[pltpu.VMEM((T * Bc, Hp), f32)],
        compiler_params=pltpu.CompilerParams(
            dimension_semantics=("parallel",),
            vmem_limit_bytes=vmem_limit),
    )(x_tm, h0_p, w_pre, b_pre, w_ih, w_hh, b_rnn, w_fc, b_fc)

    # strip padding, back to batch-first
    out = out_flat.reshape(nchunks, T, Bc, Op).transpose(1, 0, 2, 3)
    out = out.reshape(T, Bt, Op)[:, :B, :O]
    out = jnp.transpose(out, (1, 0, 2))                                 # (B, T, O)
    h_n = h_n_p.transpose(1, 0, 2, 3).reshape(L, Bt, Hp)[:, :B, :H]     # (L, B, H)
    return out, h_n


def init_params(key, input_dim, hidden_dim, output_dim, n_layers):
    """Deterministic init mimicking PyTorch's U(-1/sqrt(fan_in), 1/sqrt(fan_in))."""
    keys = jax.random.split(key, 8)

    def u(k, shape, fan_in):
        bound = 1.0 / jnp.sqrt(fan_in)
        return jax.random.uniform(k, shape, jnp.float32, -bound, bound)

    return {
        "w_pre": u(keys[0], (hidden_dim, input_dim), input_dim),
        "b_pre": u(keys[1], (hidden_dim,), input_dim),
        "w_ih":  u(keys[2], (n_layers, hidden_dim, hidden_dim), hidden_dim),
        "w_hh":  u(keys[3], (n_layers, hidden_dim, hidden_dim), hidden_dim),
        "b_ih":  u(keys[4], (n_layers, hidden_dim), hidden_dim),
        "b_hh":  u(keys[5], (n_layers, hidden_dim), hidden_dim),
        "w_fc":  u(keys[6], (output_dim, hidden_dim), hidden_dim),
        "b_fc":  u(keys[7], (output_dim,), hidden_dim),
    }


def ref_forward(x, h0, p):
    """Pure-JAX reference reproducing the PyTorch forward semantics."""
    L, B, H = h0.shape
    T = x.shape[1]
    seq = jnp.maximum(jnp.einsum("btd,hd->bth", x, p["w_pre"]) + p["b_pre"], 0.0)
    h_finals = []
    for l in range(L):
        h = h0[l]
        outs = []
        for t in range(T):
            h = jnp.tanh(seq[:, t] @ p["w_ih"][l].T + p["b_ih"][l]
                         + h @ p["w_hh"][l].T + p["b_hh"][l])
            outs.append(h)
        seq = jnp.stack(outs, axis=1)
        h_finals.append(h)
    out = jnp.einsum("bth,oh->bto", jnp.maximum(seq, 0.0), p["w_fc"]) + p["b_fc"]
    return out, jnp.stack(h_finals, axis=0)


if __name__ == "__main__":
    # Small shapes consistent with the module's forward.
    input_dim, hidden_dim, output_dim, n_layers = 16, 32, 8, 2
    batch, seq_len = 2, 8

    key = jax.random.PRNGKey(0)
    k_x, k_p = jax.random.split(key)
    params = init_params(k_p, input_dim, hidden_dim, output_dim, n_layers)

    x = jax.random.normal(k_x, (batch, seq_len, input_dim), jnp.float32)
    # init_hidden() returns a tuple; forward only uses hidden[0].
    hidden = (jnp.zeros((n_layers, batch, hidden_dim), jnp.float32),
              jnp.zeros((n_layers, batch, hidden_dim), jnp.float32))

    out_ref, h_ref = ref_forward(x, hidden[0], params)

    # f32 path (matches PyTorch-f32 semantics).
    out, h_n = rnn_predictor_forward(x, hidden, params)
    out, h_n = jax.block_until_ready((out, h_n))
    assert out.shape == (batch, seq_len, output_dim)
    assert h_n.shape == (n_layers, batch, hidden_dim)
    assert jnp.allclose(out, out_ref, atol=1e-4, rtol=1e-4)
    assert jnp.allclose(h_n, h_ref, atol=1e-4, rtol=1e-4)

    # bf16 matmul-operand path (v6e/v7x MXU throughput); f32 accumulate/tanh.
    out_bf, h_bf = rnn_predictor_forward(x, hidden, params,
                                         matmul_dtype=jnp.bfloat16)
    out_bf, h_bf = jax.block_until_ready((out_bf, h_bf))
    assert jnp.allclose(out_bf, out_ref, atol=1e-1, rtol=1e-1)
    assert jnp.allclose(h_bf, h_ref, atol=1e-1, rtol=1e-1)

    print("KERNEL_OK")
</pallas_src>

<mosaic_0001>
module attributes {stable_mosaic.version = 11 : i64} {
  func.func @rnn_predictor_kernel(%arg0: i32, %arg1: memref<1x64x128xf32, #tpu.memory_space<vmem>>, %arg2: memref<1x2x8x128xf32, #tpu.memory_space<vmem>>, %arg3: memref<128x128xf32, #tpu.memory_space<vmem>>, %arg4: memref<1x128xf32, #tpu.memory_space<vmem>>, %arg5: memref<2x128x128xf32, #tpu.memory_space<vmem>>, %arg6: memref<2x128x128xf32, #tpu.memory_space<vmem>>, %arg7: memref<2x128xf32, #tpu.memory_space<vmem>>, %arg8: memref<128x128xf32, #tpu.memory_space<vmem>>, %arg9: memref<1x128xf32, #tpu.memory_space<vmem>>, %arg10: memref<1x64x128xf32, #tpu.memory_space<vmem>>, %arg11: memref<1x2x8x128xf32, #tpu.memory_space<vmem>>, %arg12: memref<64x128xf32, #tpu.memory_space<vmem>>) attributes {dimension_semantics = [#tpu.dimension_semantics<parallel>], iteration_bounds = array<i64: 1>, scalar_prefetch = 0 : i64, scratch_operands = 1 : i64, tpu.core_type = #tpu.core_type<tc>, window_params = [{transform_indices = @transform_0, window_bounds = array<i64: 1, 64, 128>}, {transform_indices = @transform_1, window_bounds = array<i64: 1, 2, 8, 128>}, {pipeline_mode = #tpu.pipeline_mode<synchronous>, transform_indices = @transform_2, window_bounds = array<i64: 128, 128>}, {pipeline_mode = #tpu.pipeline_mode<synchronous>, transform_indices = @transform_3, window_bounds = array<i64: 1, 128>}, {pipeline_mode = #tpu.pipeline_mode<synchronous>, transform_indices = @transform_4, window_bounds = array<i64: 2, 128, 128>}, {pipeline_mode = #tpu.pipeline_mode<synchronous>, transform_indices = @transform_5, window_bounds = array<i64: 2, 128, 128>}, {pipeline_mode = #tpu.pipeline_mode<synchronous>, transform_indices = @transform_6, window_bounds = array<i64: 2, 128>}, {pipeline_mode = #tpu.pipeline_mode<synchronous>, transform_indices = @transform_7, window_bounds = array<i64: 128, 128>}, {pipeline_mode = #tpu.pipeline_mode<synchronous>, transform_indices = @transform_8, window_bounds = array<i64: 1, 128>}, {transform_indices = @transform_9, window_bounds = array<i64: 1, 64, 128>}, {transform_indices = @transform_10, window_bounds = array<i64: 1, 2, 8, 128>}]} {
    %c0 = arith.constant 0 : index
    %c0_0 = arith.constant 0 : index
    %c0_1 = arith.constant 0 : index
    %0 = vector.load %arg1[%c0, %c0_0, %c0_1] : memref<1x64x128xf32, #tpu.memory_space<vmem>>, vector<1x64x128xf32>
    %1 = vector.shape_cast %0 : vector<1x64x128xf32> to vector<64x128xf32>
    %c0_2 = arith.constant 0 : index
    %c0_3 = arith.constant 0 : index
    %2 = vector.load %arg3[%c0_2, %c0_3] : memref<128x128xf32, #tpu.memory_space<vmem>>, vector<128x128xf32>
    %cst = arith.constant dense<0.000000e+00> : vector<64x128xf32>
    %3 = tpu.matmul %1, %2, %cst {dimension_numbers = #tpu.dot_dimension_numbers<[1], [0], [0], [1], [0, 0, 1, 1], [], []>} : vector<64x128xf32>, vector<128x128xf32>, vector<64x128xf32> -> vector<64x128xf32>
    %c0_4 = arith.constant 0 : index
    %c0_5 = arith.constant 0 : index
    %4 = vector.load %arg4[%c0_4, %c0_5] : memref<1x128xf32, #tpu.memory_space<vmem>>, vector<1x128xf32>
    %5 = vector.broadcast %4 : vector<1x128xf32> to vector<64x128xf32>
    %6 = arith.addf %3, %5 : vector<64x128xf32>
    %cst_6 = arith.constant 0.000000e+00 : f32
    %7 = vector.broadcast %cst_6 : f32 to vector<64x128xf32>
    %8 = arith.maximumf %6, %7 : vector<64x128xf32>
    %c0_7 = arith.constant 0 : index
    %c0_8 = arith.constant 0 : index
    %c0_9 = arith.constant 0 : index
    %9 = vector.load %arg5[%c0_7, %c0_8, %c0_9] : memref<2x128x128xf32, #tpu.memory_space<vmem>>, vector<1x128x128xf32>
    %10 = vector.shape_cast %9 : vector<1x128x128xf32> to vector<128x128xf32>
    %cst_10 = arith.constant dense<0.000000e+00> : vector<64x128xf32>
    %11 = tpu.matmul %8, %10, %cst_10 {dimension_numbers = #tpu.dot_dimension_numbers<[1], [0], [0], [1], [0, 0, 1, 1], [], []>} : vector<64x128xf32>, vector<128x128xf32>, vector<64x128xf32> -> vector<64x128xf32>
    %c0_11 = arith.constant 0 : index
    %c0_12 = arith.constant 0 : index
    %12 = vector.load %arg12[%c0_11, %c0_12] : memref<64x128xf32, #tpu.memory_space<vmem>>, vector<64x128xf32>
    tpu.vector_store %arg12[%c0_11, %c0_12], %11 {strides = array<i32>} : memref<64x128xf32, #tpu.memory_space<vmem>>, vector<64x128xf32>,
    %c0_13 = arith.constant 0 : index
    %c0_14 = arith.constant 0 : index
    %13 = vector.load %arg7[%c0_13, %c0_14] : memref<2x128xf32, #tpu.memory_space<vmem>>, vector<1x128xf32>
    %14 = vector.shape_cast %13 : vector<1x128xf32> to vector<1x128xf32>
    %15 = vector.broadcast %14 : vector<1x128xf32> to vector<8x128xf32>
    %c1 = arith.constant 1 : index
    %c0_15 = arith.constant 0 : index
    %16 = vector.load %arg7[%c1, %c0_15] : memref<2x128xf32, #tpu.memory_space<vmem>>, vector<1x128xf32>
    %17 = vector.shape_cast %16 : vector<1x128xf32> to vector<1x128xf32>
    %18 = vector.broadcast %17 : vector<1x128xf32> to vector<8x128xf32>
    %c0_16 = arith.constant 0 : index
    %c0_17 = arith.constant 0 : index
    %19 = vector.load %arg9[%c0_16, %c0_17] : memref<1x128xf32, #tpu.memory_space<vmem>>, vector<1x128xf32>
    %20 = vector.shape_cast %19 : vector<1x128xf32> to vector<1x128xf32>
    %21 = vector.broadcast %20 : vector<1x128xf32> to vector<8x128xf32>
    %c0_18 = arith.constant 0 : index
    %c0_19 = arith.constant 0 : index
    %c0_20 = arith.constant 0 : index
    %c0_21 = arith.constant 0 : index
    %22 = vector.load %arg2[%c0_18, %c0_19, %c0_20, %c0_21] : memref<1x2x8x128xf32, #tpu.memory_space<vmem>>, vector<1x1x8x128xf32>
    %23 = vector.shape_cast %22 : vector<1x1x8x128xf32> to vector<8x128xf32>
    %c0_22 = arith.constant 0 : index
    %c1_23 = arith.constant 1 : index
    %c0_24 = arith.constant 0 : index
    %c0_25 = arith.constant 0 : index
    %24 = vector.load %arg2[%c0_22, %c1_23, %c0_24, %c0_25] : memref<1x2x8x128xf32, #tpu.memory_space<vmem>>, vector<1x1x8x128xf32>
    %25 = vector.shape_cast %24 : vector<1x1x8x128xf32> to vector<8x128xf32>
    %c0_26 = arith.constant 0 : index
    %c0_27 = arith.constant 0 : index
    %26 = vector.load %arg12[%c0_26, %c0_27] : memref<64x128xf32, #tpu.memory_space<vmem>>, vector<8x128xf32>
    %27 = arith.addf %26, %15 : vector<8x128xf32>
    %c0_28 = arith.constant 0 : index
    %c0_29 = arith.constant 0 : index
    %c0_30 = arith.constant 0 : index
    %28 = vector.load %arg6[%c0_28, %c0_29, %c0_30] : memref<2x128x128xf32, #tpu.memory_space<vmem>>, vector<1x128x128xf32>
    %29 = vector.shape_cast %28 : vector<1x128x128xf32> to vector<128x128xf32>
    %cst_31 = arith.constant dense<0.000000e+00> : vector<8x128xf32>
    %30 = tpu.matmul %23, %29, %cst_31 {dimension_numbers = #tpu.dot_dimension_numbers<[1], [0], [0], [1], [0, 0, 1, 1], [], []>} : vector<8x128xf32>, vector<128x128xf32>, vector<8x128xf32> -> vector<8x128xf32>
    %31 = arith.addf %27, %30 : vector<8x128xf32>
    %32 = math.tanh %31 : vector<8x128xf32>
    %c8 = arith.constant 8 : index
    %c0_32 = arith.constant 0 : index
    %33 = vector.load %arg12[%c8, %c0_32] : memref<64x128xf32, #tpu.memory_space<vmem>>, vector<8x128xf32>
    %34 = arith.addf %33, %15 : vector<8x128xf32>
    %c0_33 = arith.constant 0 : index
    %c0_34 = arith.constant 0 : index
    %c0_35 = arith.constant 0 : index
    %35 = vector.load %arg6[%c0_33, %c0_34, %c0_35] : memref<2x128x128xf32, #tpu.memory_space<vmem>>, vector<1x128x128xf32>
    %36 = vector.shape_cast %35 : vector<1x128x128xf32> to vector<128x128xf32>
    %cst_36 = arith.constant dense<0.000000e+00> : vector<8x128xf32>
    %37 = tpu.matmul %32, %36, %cst_36 {dimension_numbers = #tpu.dot_dimension_numbers<[1], [0], [0], [1], [0, 0, 1, 1], [], []>} : vector<8x128xf32>, vector<128x128xf32>, vector<8x128xf32> -> vector<8x128xf32>
    %38 = arith.addf %34, %37 : vector<8x128xf32>
    %39 = math.tanh %38 : vector<8x128xf32>
    %c1_37 = arith.constant 1 : index
    %c0_38 = arith.constant 0 : index
    %c0_39 = arith.constant 0 : index
    %40 = vector.load %arg5[%c1_37, %c0_38, %c0_39] : memref<2x128x128xf32, #tpu.memory_space<vmem>>, vector<1x128x128xf32>
    %41 = vector.shape_cast %40 : vector<1x128x128xf32> to vector<128x128xf32>
    %cst_40 = arith.constant dense<0.000000e+00> : vector<8x128xf32>
    %42 = tpu.matmul %32, %41, %cst_40 {dimension_numbers = #tpu.dot_dimension_numbers<[1], [0], [0], [1], [0, 0, 1, 1], [], []>} : vector<8x128xf32>, vector<128x128xf32>, vector<8x128xf32> -> vector<8x128xf32>
    %43 = arith.addf %42, %18 : vector<8x128xf32>
    %c1_41 = arith.constant 1 : index
    %c0_42 = arith.constant 0 : index
    %c0_43 = arith.constant 0 : index
    %44 = vector.load %arg6[%c1_41, %c0_42, %c0_43] : memref<2x128x128xf32, #tpu.memory_space<vmem>>, vector<1x128x128xf32>
    %45 = vector.shape_cast %44 : vector<1x128x128xf32> to vector<128x128xf32>
    %cst_44 = arith.constant dense<0.000000e+00> : vector<8x128xf32>
    %46 = tpu.matmul %25, %45, %cst_44 {dimension_numbers = #tpu.dot_dimension_numbers<[1], [0], [0], [1], [0, 0, 1, 1], [], []>} : vector<8x128xf32>, vector<128x128xf32>, vector<8x128xf32> -> vector<8x128xf32>
    %47 = arith.addf %43, %46 : vector<8x128xf32>
    %48 = math.tanh %47 : vector<8x128xf32>
    %cst_45 = arith.constant 0.000000e+00 : f32
    %49 = vector.broadcast %cst_45 : f32 to vector<8x128xf32>
    %50 = arith.maximumf %48, %49 : vector<8x128xf32>
    %c0_46 = arith.constant 0 : index
    %c0_47 = arith.constant 0 : index
    %51 = vector.load %arg8[%c0_46, %c0_47] : memref<128x128xf32, #tpu.memory_space<vmem>>, vector<128x128xf32>
    %cst_48 = arith.constant dense<0.000000e+00> : vector<8x128xf32>
    %52 = tpu.matmul %50, %51, %cst_48 {dimension_numbers = #tpu.dot_dimension_numbers<[1], [0], [0], [1], [0, 0, 1, 1], [], []>} : vector<8x128xf32>, vector<128x128xf32>, vector<8x128xf32> -> vector<8x128xf32>
    %53 = arith.addf %52, %21 : vector<8x128xf32>
    %c0_49 = arith.constant 0 : index
    %c0_50 = arith.constant 0 : index
    %c0_51 = arith.constant 0 : index
    %54 = vector.load %arg10[%c0_49, %c0_50, %c0_51] : memref<1x64x128xf32, #tpu.memory_space<vmem>>, vector<1x8x128xf32>
    %55 = vector.shape_cast %54 : vector<1x8x128xf32> to vector<8x128xf32>
    %56 = vector.shape_cast %53 : vector<8x128xf32> to vector<1x8x128xf32>
    tpu.vector_store %arg10[%c0_49, %c0_50, %c0_51], %56 {strides = array<i32>} : memref<1x64x128xf32, #tpu.memory_space<vmem>>, vector<1x8x128xf32>,
    %c16 = arith.constant 16 : index
    %c0_52 = arith.constant 0 : index
    %57 = vector.load %arg12[%c16, %c0_52] : memref<64x128xf32, #tpu.memory_space<vmem>>, vector<8x128xf32>
    %58 = arith.addf %57, %15 : vector<8x128xf32>
    %c0_53 = arith.constant 0 : index
    %c0_54 = arith.constant 0 : index
    %c0_55 = arith.constant 0 : index
    %59 = vector.load %arg6[%c0_53, %c0_54, %c0_55] : memref<2x128x128xf32, #tpu.memory_space<vmem>>, vector<1x128x128xf32>
    %60 = vector.shape_cast %59 : vector<1x128x128xf32> to vector<128x128xf32>
    %cst_56 = arith.constant dense<0.000000e+00> : vector<8x128xf32>
    %61 = tpu.matmul %39, %60, %cst_56 {dimension_numbers = #tpu.dot_dimension_numbers<[1], [0], [0], [1], [0, 0, 1, 1], [], []>} : vector<8x128xf32>, vector<128x128xf32>, vector<8x128xf32> -> vector<8x128xf32>
    %62 = arith.addf %58, %61 : vector<8x128xf32>
    %63 = math.tanh %62 : vector<8x128xf32>
    %c1_57 = arith.constant 1 : index
    %c0_58 = arith.constant 0 : index
    %c0_59 = arith.constant 0 : index
    %64 = vector.load %arg5[%c1_57, %c0_58, %c0_59] : memref<2x128x128xf32, #tpu.memory_space<vmem>>, vector<1x128x128xf32>
    %65 = vector.shape_cast %64 : vector<1x128x128xf32> to vector<128x128xf32>
    %cst_60 = arith.constant dense<0.000000e+00> : vector<8x128xf32>
    %66 = tpu.matmul %39, %65, %cst_60 {dimension_numbers = #tpu.dot_dimension_numbers<[1], [0], [0], [1], [0, 0, 1, 1], [], []>} : vector<8x128xf32>, vector<128x128xf32>, vector<8x128xf32> -> vector<8x128xf32>
    %67 = arith.addf %66, %18 : vector<8x128xf32>
    %c1_61 = arith.constant 1 : index
    %c0_62 = arith.constant 0 : index
    %c0_63 = arith.constant 0 : index
    %68 = vector.load %arg6[%c1_61, %c0_62, %c0_63] : memref<2x128x128xf32, #tpu.memory_space<vmem>>, vector<1x128x128xf32>
    %69 = vector.shape_cast %68 : vector<1x128x128xf32> to vector<128x128xf32>
    %cst_64 = arith.constant dense<0.000000e+00> : vector<8x128xf32>
    %70 = tpu.matmul %48, %69, %cst_64 {dimension_numbers = #tpu.dot_dimension_numbers<[1], [0], [0], [1], [0, 0, 1, 1], [], []>} : vector<8x128xf32>, vector<128x128xf32>, vector<8x128xf32> -> vector<8x128xf32>
    %71 = arith.addf %67, %70 : vector<8x128xf32>
    %72 = math.tanh %71 : vector<8x128xf32>
    %cst_65 = arith.constant 0.000000e+00 : f32
    %73 = vector.broadcast %cst_65 : f32 to vector<8x128xf32>
    %74 = arith.maximumf %72, %73 : vector<8x128xf32>
    %c0_66 = arith.constant 0 : index
    %c0_67 = arith.constant 0 : index
    %75 = vector.load %arg8[%c0_66, %c0_67] : memref<128x128xf32, #tpu.memory_space<vmem>>, vector<128x128xf32>
    %cst_68 = arith.constant dense<0.000000e+00> : vector<8x128xf32>
    %76 = tpu.matmul %74, %75, %cst_68 {dimension_numbers = #tpu.dot_dimension_numbers<[1], [0], [0], [1], [0, 0, 1, 1], [], []>} : vector<8x128xf32>, vector<128x128xf32>, vector<8x128xf32> -> vector<8x128xf32>
    %77 = arith.addf %76, %21 : vector<8x128xf32>
    %c0_69 = arith.constant 0 : index
    %c8_70 = arith.constant 8 : index
    %c0_71 = arith.constant 0 : index
    %78 = vector.load %arg10[%c0_69, %c8_70, %c0_71] : memref<1x64x128xf32, #tpu.memory_space<vmem>>, vector<1x8x128xf32>
    %79 = vector.shape_cast %78 : vector<1x8x128xf32> to vector<8x128xf32>
    %80 = vector.shape_cast %77 : vector<8x128xf32> to vector<1x8x128xf32>
    tpu.vector_store %arg10[%c0_69, %c8_70, %c0_71], %80 {strides = array<i32>} : memref<1x64x128xf32, #tpu.memory_space<vmem>>, vector<1x8x128xf32>,
    %c24 = arith.constant 24 : index
    %c0_72 = arith.constant 0 : index
    %81 = vector.load %arg12[%c24, %c0_72] : memref<64x128xf32, #tpu.memory_space<vmem>>, vector<8x128xf32>
    %82 = arith.addf %81, %15 : vector<8x128xf32>
    %c0_73 = arith.constant 0 : index
    %c0_74 = arith.constant 0 : index
    %c0_75 = arith.constant 0 : index
    %83 = vector.load %arg6[%c0_73, %c0_74, %c0_75] : memref<2x128x128xf32, #tpu.memory_space<vmem>>, vector<1x128x128xf32>
    %84 = vector.shape_cast %83 : vector<1x128x128xf32> to vector<128x128xf32>
    %cst_76 = arith.constant dense<0.000000e+00> : vector<8x128xf32>
    %85 = tpu.matmul %63, %84, %cst_76 {dimension_numbers = #tpu.dot_dimension_numbers<[1], [0], [0], [1], [0, 0, 1, 1], [], []>} : vector<8x128xf32>, vector<128x128xf32>, vector<8x128xf32> -> vector<8x128xf32>
    %86 = arith.addf %82, %85 : vector<8x128xf32>
    %87 = math.tanh %86 : vector<8x128xf32>
    %c1_77 = arith.constant 1 : index
    %c0_78 = arith.constant 0 : index
    %c0_79 = arith.constant 0 : index
    %88 = vector.load %arg5[%c1_77, %c0_78, %c0_79] : memref<2x128x128xf32, #tpu.memory_space<vmem>>, vector<1x128x128xf32>
    %89 = vector.shape_cast %88 : vector<1x128x128xf32> to vector<128x128xf32>
    %cst_80 = arith.constant dense<0.000000e+00> : vector<8x128xf32>
    %90 = tpu.matmul %63, %89, %cst_80 {dimension_numbers = #tpu.dot_dimension_numbers<[1], [0], [0], [1], [0, 0, 1, 1], [], []>} : vector<8x128xf32>, vector<128x128xf32>, vector<8x128xf32> -> vector<8x128xf32>
    %91 = arith.addf %90, %18 : vector<8x128xf32>
    %c1_81 = arith.constant 1 : index
    %c0_82 = arith.constant 0 : index
    %c0_83 = arith.constant 0 : index
    %92 = vector.load %arg6[%c1_81, %c0_82, %c0_83] : memref<2x128x128xf32, #tpu.memory_space<vmem>>, vector<1x128x128xf32>
    %93 = vector.shape_cast %92 : vector<1x128x128xf32> to vector<128x128xf32>
    %cst_84 = arith.constant dense<0.000000e+00> : vector<8x128xf32>
    %94 = tpu.matmul %72, %93, %cst_84 {dimension_numbers = #tpu.dot_dimension_numbers<[1], [0], [0], [1], [0, 0, 1, 1], [], []>} : vector<8x128xf32>, vector<128x128xf32>, vector<8x128xf32> -> vector<8x128xf32>
    %95 = arith.addf %91, %94 : vector<8x128xf32>
    %96 = math.tanh %95 : vector<8x128xf32>
    %cst_85 = arith.constant 0.000000e+00 : f32
    %97 = vector.broadcast %cst_85 : f32 to vector<8x128xf32>
    %98 = arith.maximumf %96, %97 : vector<8x128xf32>
    %c0_86 = arith.constant 0 : index
    %c0_87 = arith.constant 0 : index
    %99 = vector.load %arg8[%c0_86, %c0_87] : memref<128x128xf32, #tpu.memory_space<vmem>>, vector<128x128xf32>
    %cst_88 = arith.constant dense<0.000000e+00> : vector<8x128xf32>
    %100 = tpu.matmul %98, %99, %cst_88 {dimension_numbers = #tpu.dot_dimension_numbers<[1], [0], [0], [1], [0, 0, 1, 1], [], []>} : vector<8x128xf32>, vector<128x128xf32>, vector<8x128xf32> -> vector<8x128xf32>
    %101 = arith.addf %100, %21 : vector<8x128xf32>
    %c0_89 = arith.constant 0 : index
    %c16_90 = arith.constant 16 : index
    %c0_91 = arith.constant 0 : index
    %102 = vector.load %arg10[%c0_89, %c16_90, %c0_91] : memref<1x64x128xf32, #tpu.memory_space<vmem>>, vector<1x8x128xf32>
    %103 = vector.shape_cast %102 : vector<1x8x128xf32> to vector<8x128xf32>
    %104 = vector.shape_cast %101 : vector<8x128xf32> to vector<1x8x128xf32>
    tpu.vector_store %arg10[%c0_89, %c16_90, %c0_91], %104 {strides = array<i32>} : memref<1x64x128xf32, #tpu.memory_space<vmem>>, vector<1x8x128xf32>,
    %c32 = arith.constant 32 : index
    %c0_92 = arith.constant 0 : index
    %105 = vector.load %arg12[%c32, %c0_92] : memref<64x128xf32, #tpu.memory_space<vmem>>, vector<8x128xf32>
    %106 = arith.addf %105, %15 : vector<8x128xf32>
    %c0_93 = arith.constant 0 : index
    %c0_94 = arith.constant 0 : index
    %c0_95 = arith.constant 0 : index
    %107 = vector.load %arg6[%c0_93, %c0_94, %c0_95] : memref<2x128x128xf32, #tpu.memory_space<vmem>>, vector<1x128x128xf32>
    %108 = vector.shape_cast %107 : vector<1x128x128xf32> to vector<128x128xf32>
    %cst_96 = arith.constant dense<0.000000e+00> : vector<8x128xf32>
    %109 = tpu.matmul %87, %108, %cst_96 {dimension_numbers = #tpu.dot_dimension_numbers<[1], [0], [0], [1], [0, 0, 1, 1], [], []>} : vector<8x128xf32>, vector<128x128xf32>, vector<8x128xf32> -> vector<8x128xf32>
    %110 = arith.addf %106, %109 : vector<8x128xf32>
    %111 = math.tanh %110 : vector<8x128xf32>
    %c1_97 = arith.constant 1 : index
    %c0_98 = arith.constant 0 : index
    %c0_99 = arith.constant 0 : index
    %112 = vector.load %arg5[%c1_97, %c0_98, %c0_99] : memref<2x128x128xf32, #tpu.memory_space<vmem>>, vector<1x128x128xf32>
    %113 = vector.shape_cast %112 : vector<1x128x128xf32> to vector<128x128xf32>
    %cst_100 = arith.constant dense<0.000000e+00> : vector<8x128xf32>
    %114 = tpu.matmul %87, %113, %cst_100 {dimension_numbers = #tpu.dot_dimension_numbers<[1], [0], [0], [1], [0, 0, 1, 1], [], []>} : vector<8x128xf32>, vector<128x128xf32>, vector<8x128xf32> -> vector<8x128xf32>
    %115 = arith.addf %114, %18 : vector<8x128xf32>
    %c1_101 = arith.constant 1 : index
    %c0_102 = arith.constant 0 : index
    %c0_103 = arith.constant 0 : index
    %116 = vector.load %arg6[%c1_101, %c0_102, %c0_103] : memref<2x128x128xf32, #tpu.memory_space<vmem>>, vector<1x128x128xf32>
    %117 = vector.shape_cast %116 : vector<1x128x128xf32> to vector<128x128xf32>
    %cst_104 = arith.constant dense<0.000000e+00> : vector<8x128xf32>
    %118 = tpu.matmul %96, %117, %cst_104 {dimension_numbers = #tpu.dot_dimension_numbers<[1], [0], [0], [1], [0, 0, 1, 1], [], []>} : vector<8x128xf32>, vector<128x128xf32>, vector<8x128xf32> -> vector<8x128xf32>
    %119 = arith.addf %115, %118 : vector<8x128xf32>
    %120 = math.tanh %119 : vector<8x128xf32>
    %cst_105 = arith.constant 0.000000e+00 : f32
    %121 = vector.broadcast %cst_105 : f32 to vector<8x128xf32>
    %122 = arith.maximumf %120, %121 : vector<8x128xf32>
    %c0_106 = arith.constant 0 : index
    %c0_107 = arith.constant 0 : index
    %123 = vector.load %arg8[%c0_106, %c0_107] : memref<128x128xf32, #tpu.memory_space<vmem>>, vector<128x128xf32>
    %cst_108 = arith.constant dense<0.000000e+00> : vector<8x128xf32>
    %124 = tpu.matmul %122, %123, %cst_108 {dimension_numbers = #tpu.dot_dimension_numbers<[1], [0], [0], [1], [0, 0, 1, 1], [], []>} : vector<8x128xf32>, vector<128x128xf32>, vector<8x128xf32> -> vector<8x128xf32>
    %125 = arith.addf %124, %21 : vector<8x128xf32>
    %c0_109 = arith.constant 0 : index
    %c24_110 = arith.constant 24 : index
    %c0_111 = arith.constant 0 : index
    %126 = vector.load %arg10[%c0_109, %c24_110, %c0_111] : memref<1x64x128xf32, #tpu.memory_space<vmem>>, vector<1x8x128xf32>
    %127 = vector.shape_cast %126 : vector<1x8x128xf32> to vector<8x128xf32>
    %128 = vector.shape_cast %125 : vector<8x128xf32> to vector<1x8x128xf32>
    tpu.vector_store %arg10[%c0_109, %c24_110, %c0_111], %128 {strides = array<i32>} : memref<1x64x128xf32, #tpu.memory_space<vmem>>, vector<1x8x128xf32>,
    %c40 = arith.constant 40 : index
    %c0_112 = arith.constant 0 : index
    %129 = vector.load %arg12[%c40, %c0_112] : memref<64x128xf32, #tpu.memory_space<vmem>>, vector<8x128xf32>
    %130 = arith.addf %129, %15 : vector<8x128xf32>
    %c0_113 = arith.constant 0 : index
    %c0_114 = arith.constant 0 : index
    %c0_115 = arith.constant 0 : index
    %131 = vector.load %arg6[%c0_113, %c0_114, %c0_115] : memref<2x128x128xf32, #tpu.memory_space<vmem>>, vector<1x128x128xf32>
    %132 = vector.shape_cast %131 : vector<1x128x128xf32> to vector<128x128xf32>
    %cst_116 = arith.constant dense<0.000000e+00> : vector<8x128xf32>
    %133 = tpu.matmul %111, %132, %cst_116 {dimension_numbers = #tpu.dot_dimension_numbers<[1], [0], [0], [1], [0, 0, 1, 1], [], []>} : vector<8x128xf32>, vector<128x128xf32>, vector<8x128xf32> -> vector<8x128xf32>
    %134 = arith.addf %130, %133 : vector<8x128xf32>
    %135 = math.tanh %134 : vector<8x128xf32>
    %c1_117 = arith.constant 1 : index
    %c0_118 = arith.constant 0 : index
    %c0_119 = arith.constant 0 : index
    %136 = vector.load %arg5[%c1_117, %c0_118, %c0_119] : memref<2x128x128xf32, #tpu.memory_space<vmem>>, vector<1x128x128xf32>
    %137 = vector.shape_cast %136 : vector<1x128x128xf32> to vector<128x128xf32>
    %cst_120 = arith.constant dense<0.000000e+00> : vector<8x128xf32>
    %138 = tpu.matmul %111, %137, %cst_120 {dimension_numbers = #tpu.dot_dimension_numbers<[1], [0], [0], [1], [0, 0, 1, 1], [], []>} : vector<8x128xf32>, vector<128x128xf32>, vector<8x128xf32> -> vector<8x128xf32>
    %139 = arith.addf %138, %18 : vector<8x128xf32>
    %c1_121 = arith.constant 1 : index
    %c0_122 = arith.constant 0 : index
    %c0_123 = arith.constant 0 : index
    %140 = vector.load %arg6[%c1_121, %c0_122, %c0_123] : memref<2x128x128xf32, #tpu.memory_space<vmem>>, vector<1x128x128xf32>
    %141 = vector.shape_cast %140 : vector<1x128x128xf32> to vector<128x128xf32>
    %cst_124 = arith.constant dense<0.000000e+00> : vector<8x128xf32>
    %142 = tpu.matmul %120, %141, %cst_124 {dimension_numbers = #tpu.dot_dimension_numbers<[1], [0], [0], [1], [0, 0, 1, 1], [], []>} : vector<8x128xf32>, vector<128x128xf32>, vector<8x128xf32> -> vector<8x128xf32>
    %143 = arith.addf %139, %142 : vector<8x128xf32>
    %144 = math.tanh %143 : vector<8x128xf32>
    %cst_125 = arith.constant 0.000000e+00 : f32
    %145 = vector.broadcast %cst_125 : f32 to vector<8x128xf32>
    %146 = arith.maximumf %144, %145 : vector<8x128xf32>
    %c0_126 = arith.constant 0 : index
    %c0_127 = arith.constant 0 : index
    %147 = vector.load %arg8[%c0_126, %c0_127] : memref<128x128xf32, #tpu.memory_space<vmem>>, vector<128x128xf32>
    %cst_128 = arith.constant dense<0.000000e+00> : vector<8x128xf32>
    %148 = tpu.matmul %146, %147, %cst_128 {dimension_numbers = #tpu.dot_dimension_numbers<[1], [0], [0], [1], [0, 0, 1, 1], [], []>} : vector<8x128xf32>, vector<128x128xf32>, vector<8x128xf32> -> vector<8x128xf32>
    %149 = arith.addf %148, %21 : vector<8x128xf32>
    %c0_129 = arith.constant 0 : index
    %c32_130 = arith.constant 32 : index
    %c0_131 = arith.constant 0 : index
    %150 = vector.load %arg10[%c0_129, %c32_130, %c0_131] : memref<1x64x128xf32, #tpu.memory_space<vmem>>, vector<1x8x128xf32>
    %151 = vector.shape_cast %150 : vector<1x8x128xf32> to vector<8x128xf32>
    %152 = vector.shape_cast %149 : vector<8x128xf32> to vector<1x8x128xf32>
    tpu.vector_store %arg10[%c0_129, %c32_130, %c0_131], %152 {strides = array<i32>} : memref<1x64x128xf32, #tpu.memory_space<vmem>>, vector<1x8x128xf32>,
    %c48 = arith.constant 48 : index
    %c0_132 = arith.constant 0 : index
    %153 = vector.load %arg12[%c48, %c0_132] : memref<64x128xf32, #tpu.memory_space<vmem>>, vector<8x128xf32>
    %154 = arith.addf %153, %15 : vector<8x128xf32>
    %c0_133 = arith.constant 0 : index
    %c0_134 = arith.constant 0 : index
    %c0_135 = arith.constant 0 : index
    %155 = vector.load %arg6[%c0_133, %c0_134, %c0_135] : memref<2x128x128xf32, #tpu.memory_space<vmem>>, vector<1x128x128xf32>
    %156 = vector.shape_cast %155 : vector<1x128x128xf32> to vector<128x128xf32>
    %cst_136 = arith.constant dense<0.000000e+00> : vector<8x128xf32>
    %157 = tpu.matmul %135, %156, %cst_136 {dimension_numbers = #tpu.dot_dimension_numbers<[1], [0], [0], [1], [0, 0, 1, 1], [], []>} : vector<8x128xf32>, vector<128x128xf32>, vector<8x128xf32> -> vector<8x128xf32>
    %158 = arith.addf %154, %157 : vector<8x128xf32>
    %159 = math.tanh %158 : vector<8x128xf32>
    %c1_137 = arith.constant 1 : index
    %c0_138 = arith.constant 0 : index
    %c0_139 = arith.constant 0 : index
    %160 = vector.load %arg5[%c1_137, %c0_138, %c0_139] : memref<2x128x128xf32, #tpu.memory_space<vmem>>, vector<1x128x128xf32>
    %161 = vector.shape_cast %160 : vector<1x128x128xf32> to vector<128x128xf32>
    %cst_140 = arith.constant dense<0.000000e+00> : vector<8x128xf32>
    %162 = tpu.matmul %135, %161, %cst_140 {dimension_numbers = #tpu.dot_dimension_numbers<[1], [0], [0], [1], [0, 0, 1, 1], [], []>} : vector<8x128xf32>, vector<128x128xf32>, vector<8x128xf32> -> vector<8x128xf32>
    %163 = arith.addf %162, %18 : vector<8x128xf32>
    %c1_141 = arith.constant 1 : index
    %c0_142 = arith.constant 0 : index
    %c0_143 = arith.constant 0 : index
    %164 = vector.load %arg6[%c1_141, %c0_142, %c0_143] : memref<2x128x128xf32, #tpu.memory_space<vmem>>, vector<1x128x128xf32>
    %165 = vector.shape_cast %164 : vector<1x128x128xf32> to vector<128x128xf32>
    %cst_144 = arith.constant dense<0.000000e+00> : vector<8x128xf32>
    %166 = tpu.matmul %144, %165, %cst_144 {dimension_numbers = #tpu.dot_dimension_numbers<[1], [0], [0], [1], [0, 0, 1, 1], [], []>} : vector<8x128xf32>, vector<128x128xf32>, vector<8x128xf32> -> vector<8x128xf32>
    %167 = arith.addf %163, %166 : vector<8x128xf32>
    %168 = math.tanh %167 : vector<8x128xf32>
    %cst_145 = arith.constant 0.000000e+00 : f32
    %169 = vector.broadcast %cst_145 : f32 to vector<8x128xf32>
    %170 = arith.maximumf %168, %169 : vector<8x128xf32>
    %c0_146 = arith.constant 0 : index
    %c0_147 = arith.constant 0 : index
    %171 = vector.load %arg8[%c0_146, %c0_147] : memref<128x128xf32, #tpu.memory_space<vmem>>, vector<128x128xf32>
    %cst_148 = arith.constant dense<0.000000e+00> : vector<8x128xf32>
    %172 = tpu.matmul %170, %171, %cst_148 {dimension_numbers = #tpu.dot_dimension_numbers<[1], [0], [0], [1], [0, 0, 1, 1], [], []>} : vector<8x128xf32>, vector<128x128xf32>, vector<8x128xf32> -> vector<8x128xf32>
    %173 = arith.addf %172, %21 : vector<8x128xf32>
    %c0_149 = arith.constant 0 : index
    %c40_150 = arith.constant 40 : index
    %c0_151 = arith.constant 0 : index
    %174 = vector.load %arg10[%c0_149, %c40_150, %c0_151] : memref<1x64x128xf32, #tpu.memory_space<vmem>>, vector<1x8x128xf32>
    %175 = vector.shape_cast %174 : vector<1x8x128xf32> to vector<8x128xf32>
    %176 = vector.shape_cast %173 : vector<8x128xf32> to vector<1x8x128xf32>
    tpu.vector_store %arg10[%c0_149, %c40_150, %c0_151], %176 {strides = array<i32>} : memref<1x64x128xf32, #tpu.memory_space<vmem>>, vector<1x8x128xf32>,
    %c56 = arith.constant 56 : index
    %c0_152 = arith.constant 0 : index
    %177 = vector.load %arg12[%c56, %c0_152] : memref<64x128xf32, #tpu.memory_space<vmem>>, vector<8x128xf32>
    %178 = arith.addf %177, %15 : vector<8x128xf32>
    %c0_153 = arith.constant 0 : index
    %c0_154 = arith.constant 0 : index
    %c0_155 = arith.constant 0 : index
    %179 = vector.load %arg6[%c0_153, %c0_154, %c0_155] : memref<2x128x128xf32, #tpu.memory_space<vmem>>, vector<1x128x128xf32>
    %180 = vector.shape_cast %179 : vector<1x128x128xf32> to vector<128x128xf32>
    %cst_156 = arith.constant dense<0.000000e+00> : vector<8x128xf32>
    %181 = tpu.matmul %159, %180, %cst_156 {dimension_numbers = #tpu.dot_dimension_numbers<[1], [0], [0], [1], [0, 0, 1, 1], [], []>} : vector<8x128xf32>, vector<128x128xf32>, vector<8x128xf32> -> vector<8x128xf32>
    %182 = arith.addf %178, %181 : vector<8x128xf32>
    %183 = math.tanh %182 : vector<8x128xf32>
    %c1_157 = arith.constant 1 : index
    %c0_158 = arith.constant 0 : index
    %c0_159 = arith.constant 0 : index
    %184 = vector.load %arg5[%c1_157, %c0_158, %c0_159] : memref<2x128x128xf32, #tpu.memory_space<vmem>>, vector<1x128x128xf32>
    %185 = vector.shape_cast %184 : vector<1x128x128xf32> to vector<128x128xf32>
    %cst_160 = arith.constant dense<0.000000e+00> : vector<8x128xf32>
    %186 = tpu.matmul %159, %185, %cst_160 {dimension_numbers = #tpu.dot_dimension_numbers<[1], [0], [0], [1], [0, 0, 1, 1], [], []>} : vector<8x128xf32>, vector<128x128xf32>, vector<8x128xf32> -> vector<8x128xf32>
    %187 = arith.addf %186, %18 : vector<8x128xf32>
    %c1_161 = arith.constant 1 : index
    %c0_162 = arith.constant 0 : index
    %c0_163 = arith.constant 0 : index
    %188 = vector.load %arg6[%c1_161, %c0_162, %c0_163] : memref<2x128x128xf32, #tpu.memory_space<vmem>>, vector<1x128x128xf32>
    %189 = vector.shape_cast %188 : vector<1x128x128xf32> to vector<128x128xf32>
    %cst_164 = arith.constant dense<0.000000e+00> : vector<8x128xf32>
    %190 = tpu.matmul %168, %189, %cst_164 {dimension_numbers = #tpu.dot_dimension_numbers<[1], [0], [0], [1], [0, 0, 1, 1], [], []>} : vector<8x128xf32>, vector<128x128xf32>, vector<8x128xf32> -> vector<8x128xf32>
    %191 = arith.addf %187, %190 : vector<8x128xf32>
    %192 = math.tanh %191 : vector<8x128xf32>
    %cst_165 = arith.constant 0.000000e+00 : f32
    %193 = vector.broadcast %cst_165 : f32 to vector<8x128xf32>
    %194 = arith.maximumf %192, %193 : vector<8x128xf32>
    %c0_166 = arith.constant 0 : index
    %c0_167 = arith.constant 0 : index
    %195 = vector.load %arg8[%c0_166, %c0_167] : memref<128x128xf32, #tpu.memory_space<vmem>>, vector<128x128xf32>
    %cst_168 = arith.constant dense<0.000000e+00> : vector<8x128xf32>
    %196 = tpu.matmul %194, %195, %cst_168 {dimension_numbers = #tpu.dot_dimension_numbers<[1], [0], [0], [1], [0, 0, 1, 1], [], []>} : vector<8x128xf32>, vector<128x128xf32>, vector<8x128xf32> -> vector<8x128xf32>
    %197 = arith.addf %196, %21 : vector<8x128xf32>
    %c0_169 = arith.constant 0 : index
    %c48_170 = arith.constant 48 : index
    %c0_171 = arith.constant 0 : index
    %198 = vector.load %arg10[%c0_169, %c48_170, %c0_171] : memref<1x64x128xf32, #tpu.memory_space<vmem>>, vector<1x8x128xf32>
    %199 = vector.shape_cast %198 : vector<1x8x128xf32> to vector<8x128xf32>
    %200 = vector.shape_cast %197 : vector<8x128xf32> to vector<1x8x128xf32>
    tpu.vector_store %arg10[%c0_169, %c48_170, %c0_171], %200 {strides = array<i32>} : memref<1x64x128xf32, #tpu.memory_space<vmem>>, vector<1x8x128xf32>,
    %c1_172 = arith.constant 1 : index
    %c0_173 = arith.constant 0 : index
    %c0_174 = arith.constant 0 : index
    %201 = vector.load %arg5[%c1_172, %c0_173, %c0_174] : memref<2x128x128xf32, #tpu.memory_space<vmem>>, vector<1x128x128xf32>
    %202 = vector.shape_cast %201 : vector<1x128x128xf32> to vector<128x128xf32>
    %cst_175 = arith.constant dense<0.000000e+00> : vector<8x128xf32>
    %203 = tpu.matmul %183, %202, %cst_175 {dimension_numbers = #tpu.dot_dimension_numbers<[1], [0], [0], [1], [0, 0, 1, 1], [], []>} : vector<8x128xf32>, vector<128x128xf32>, vector<8x128xf32> -> vector<8x128xf32>
    %204 = arith.addf %203, %18 : vector<8x128xf32>
    %c1_176 = arith.constant 1 : index
    %c0_177 = arith.constant 0 : index
    %c0_178 = arith.constant 0 : index
    %205 = vector.load %arg6[%c1_176, %c0_177, %c0_178] : memref<2x128x128xf32, #tpu.memory_space<vmem>>, vector<1x128x128xf32>
    %206 = vector.shape_cast %205 : vector<1x128x128xf32> to vector<128x128xf32>
    %cst_179 = arith.constant dense<0.000000e+00> : vector<8x128xf32>
    %207 = tpu.matmul %192, %206, %cst_179 {dimension_numbers = #tpu.dot_dimension_numbers<[1], [0], [0], [1], [0, 0, 1, 1], [], []>} : vector<8x128xf32>, vector<128x128xf32>, vector<8x128xf32> -> vector<8x128xf32>
    %208 = arith.addf %204, %207 : vector<8x128xf32>
    %209 = math.tanh %208 : vector<8x128xf32>
    %cst_180 = arith.constant 0.000000e+00 : f32
    %210 = vector.broadcast %cst_180 : f32 to vector<8x128xf32>
    %211 = arith.maximumf %209, %210 : vector<8x128xf32>
    %c0_181 = arith.constant 0 : index
    %c0_182 = arith.constant 0 : index
    %212 = vector.load %arg8[%c0_181, %c0_182] : memref<128x128xf32, #tpu.memory_space<vmem>>, vector<128x128xf32>
    %cst_183 = arith.constant dense<0.000000e+00> : vector<8x128xf32>
    %213 = tpu.matmul %211, %212, %cst_183 {dimension_numbers = #tpu.dot_dimension_numbers<[1], [0], [0], [1], [0, 0, 1, 1], [], []>} : vector<8x128xf32>, vector<128x128xf32>, vector<8x128xf32> -> vector<8x128xf32>
    %214 = arith.addf %213, %21 : vector<8x128xf32>
    %c0_184 = arith.constant 0 : index
    %c56_185 = arith.constant 56 : index
    %c0_186 = arith.constant 0 : index
    %215 = vector.load %arg10[%c0_184, %c56_185, %c0_186] : memref<1x64x128xf32, #tpu.memory_space<vmem>>, vector<1x8x128xf32>
    %216 = vector.shape_cast %215 : vector<1x8x128xf32> to vector<8x128xf32>
    %217 = vector.shape_cast %214 : vector<8x128xf32> to vector<1x8x128xf32>
    tpu.vector_store %arg10[%c0_184, %c56_185, %c0_186], %217 {strides = array<i32>} : memref<1x64x128xf32, #tpu.memory_space<vmem>>, vector<1x8x128xf32>,
    %c0_187 = arith.constant 0 : index
    %c0_188 = arith.constant 0 : index
    %c0_189 = arith.constant 0 : index
    %c0_190 = arith.constant 0 : index
    %218 = vector.load %arg11[%c0_187, %c0_188, %c0_189, %c0_190] : memref<1x2x8x128xf32, #tpu.memory_space<vmem>>, vector<1x1x8x128xf32>
    %219 = vector.shape_cast %218 : vector<1x1x8x128xf32> to vector<8x128xf32>
    %220 = vector.shape_cast %183 : vector<8x128xf32> to vector<1x1x8x128xf32>
    tpu.vector_store %arg11[%c0_187, %c0_188, %c0_189, %c0_190], %220 {strides = array<i32>} : memref<1x2x8x128xf32, #tpu.memory_space<vmem>>, vector<1x1x8x128xf32>,
    %c0_191 = arith.constant 0 : index
    %c1_192 = arith.constant 1 : index
    %c0_193 = arith.constant 0 : index
    %c0_194 = arith.constant 0 : index
    %221 = vector.load %arg11[%c0_191, %c1_192, %c0_193, %c0_194] : memref<1x2x8x128xf32, #tpu.memory_space<vmem>>, vector<1x1x8x128xf32>
    %222 = vector.shape_cast %221 : vector<1x1x8x128xf32> to vector<8x128xf32>
    %223 = vector.shape_cast %209 : vector<8x128xf32> to vector<1x1x8x128xf32>
    tpu.vector_store %arg11[%c0_191, %c1_192, %c0_193, %c0_194], %223 {strides = array<i32>} : memref<1x2x8x128xf32, #tpu.memory_space<vmem>>, vector<1x1x8x128xf32>,
    return
  }
  func.func @transform_0(%arg0: i32) -> (i32, i32, i32) {
    %c0_i32 = arith.constant 0 : i32
    %c0_i32_0 = arith.constant 0 : i32
    %c0_i32_1 = arith.constant 0 : i32
    return %arg0, %c0_i32, %c0_i32_0 : i32, i32, i32
  }
  func.func @transform_1(%arg0: i32) -> (i32, i32, i32, i32) {
    %c0_i32 = arith.constant 0 : i32
    %c0_i32_0 = arith.constant 0 : i32
    %c0_i32_1 = arith.constant 0 : i32
    %c0_i32_2 = arith.constant 0 : i32
    return %arg0, %c0_i32, %c0_i32_0, %c0_i32_1 : i32, i32, i32, i32
  }
  func.func @transform_2(%arg0: i32) -> (i32, i32) {
    %c0_i32 = arith.constant 0 : i32
    %c0_i32_0 = arith.constant 0 : i32
    %c0_i32_1 = arith.constant 0 : i32
    return %c0_i32, %c0_i32_0 : i32, i32
  }
  func.func @transform_3(%arg0: i32) -> (i32, i32) {
    %c0_i32 = arith.constant 0 : i32
    %c0_i32_0 = arith.constant 0 : i32
    %c0_i32_1 = arith.constant 0 : i32
    return %c0_i32, %c0_i32_0 : i32, i32
  }
  func.func @transform_4(%arg0: i32) -> (i32, i32, i32) {
    %c0_i32 = arith.constant 0 : i32
    %c0_i32_0 = arith.constant 0 : i32
    %c0_i32_1 = arith.constant 0 : i32
    %c0_i32_2 = arith.constant 0 : i32
    return %c0_i32, %c0_i32_0, %c0_i32_1 : i32, i32, i32
  }
  func.func @transform_5(%arg0: i32) -> (i32, i32, i32) {
    %c0_i32 = arith.constant 0 : i32
    %c0_i32_0 = arith.constant 0 : i32
    %c0_i32_1 = arith.constant 0 : i32
    %c0_i32_2 = arith.constant 0 : i32
    return %c0_i32, %c0_i32_0, %c0_i32_1 : i32, i32, i32
  }
  func.func @transform_6(%arg0: i32) -> (i32, i32) {
    %c0_i32 = arith.constant 0 : i32
    %c0_i32_0 = arith.constant 0 : i32
    %c0_i32_1 = arith.constant 0 : i32
    return %c0_i32, %c0_i32_0 : i32, i32
  }
  func.func @transform_7(%arg0: i32) -> (i32, i32) {
    %c0_i32 = arith.constant 0 : i32
    %c0_i32_0 = arith.constant 0 : i32
    %c0_i32_1 = arith.constant 0 : i32
    return %c0_i32, %c0_i32_0 : i32, i32
  }
  func.func @transform_8(%arg0: i32) -> (i32, i32) {
    %c0_i32 = arith.constant 0 : i32
    %c0_i32_0 = arith.constant 0 : i32
    %c0_i32_1 = arith.constant 0 : i32
    return %c0_i32, %c0_i32_0 : i32, i32
  }
  func.func @transform_9(%arg0: i32) -> (i32, i32, i32) {
    %c0_i32 = arith.constant 0 : i32
    %c0_i32_0 = arith.constant 0 : i32
    %c0_i32_1 = arith.constant 0 : i32
    return %arg0, %c0_i32, %c0_i32_0 : i32, i32, i32
  }
  func.func @transform_10(%arg0: i32) -> (i32, i32, i32, i32) {
    %c0_i32 = arith.constant 0 : i32
    %c0_i32_0 = arith.constant 0 : i32
    %c0_i32_1 = arith.constant 0 : i32
    %c0_i32_2 = arith.constant 0 : i32
    return %arg0, %c0_i32, %c0_i32_0, %c0_i32_1 : i32, i32, i32, i32
  }
}

</mosaic_0001>

<llo_original>
// kernel: tpu_custom_call.1
$region0: #{tpu_custom_call.1}
  #allocation0 [shape = 'u32[]', space=smem, size = 0x4, offset = 0x4, fixed_abs, tag = 'smem constant byte address 0x4 - core index']
  #allocation1 [shape = 'u32[144,128]{1,0:T(1,128)}', space=vmem, size = 0x12000, scoped, tag = 'internal scratch']
  #allocation2 [shape = 'f32[64,128]{1,0:T(8,128)}', space=vmem, size = 0x8000, scoped, tag = 'scratch operand']
  %s0 = inlined_call_operand.hbm [shape: f32[1,64,128], index: 0, kind: input, shape index: {}]
  %s1 = inlined_call_operand.hbm [shape: f32[1,2,8,128], index: 1, kind: input, shape index: {}]
  %s2 = inlined_call_operand.hbm [shape: f32[128,128], index: 2, kind: input, shape index: {}]
  %s3 = inlined_call_operand.vmem [shape: f32[1,128], index: 3, kind: input, shape index: {}]
  %s4 = inlined_call_operand.hbm [shape: f32[2,128,128], index: 4, kind: input, shape index: {}]
  %s5 = inlined_call_operand.hbm [shape: f32[2,128,128], index: 5, kind: input, shape index: {}]
  %s6 = inlined_call_operand.vmem [shape: f32[2,128], index: 6, kind: input, shape index: {}]
  %s7 = inlined_call_operand.hbm [shape: f32[128,128], index: 7, kind: input, shape index: {}]
  %s8 = inlined_call_operand.vmem [shape: f32[1,128], index: 8, kind: input, shape index: {}]
  %s9 = inlined_call_operand.hbm [shape: f32[1,64,128], index: 9, kind: output, shape index: {0}]
  %s10 = inlined_call_operand.hbm [shape: f32[1,2,8,128], index: 10, kind: output, shape index: {1}]
  %11 = xla_tuple %s9, %s10
  %s12 = sld [smem:[#allocation0]]
  $region78: #{tpu_custom_call.1} parent=0
    _
  %s14 = ssub.s32 1, %s12
  %s15 = scalar_select 0, %s14, %s12
  $region1: #{tpu_custom_call.1} parent=0
    #allocation3 [shape = 'u8[32768]{0}', space=vmem, size = 0x8000, scoped, tag = 'input window, operand 0, single buffered']
    #allocation4 [shape = 's32[1]{0}', space=sflag, size = 0x4, scoped, tag = 'scoped memory for tpu_custom_call.1']
    #allocation5 [shape = 's32[1]{0}', space=sflag, size = 0x4, scoped, tag = 'scoped memory for tpu_custom_call.1']
    #allocation6 [shape = 'u8[8192]{0}', space=vmem, size = 0x2000, scoped, tag = 'input window, operand 1, single buffered']
    #allocation7 [shape = 's32[1]{0}', space=sflag, size = 0x4, scoped, tag = 'scoped memory for tpu_custom_call.1']
    #allocation8 [shape = 'u8[65536]{0}', space=vmem, size = 0x10000, scoped, tag = 'input window, operand 2, single buffered']
    #allocation9 [shape = 'u8[131072]{0}', space=vmem, size = 0x20000, scoped, tag = 'input window, operand 4, single buffered']
    #allocation10 [shape = 's32[1]{0}', space=sflag, size = 0x4, scoped, tag = 'scoped memory for tpu_custom_call.1']
    #allocation11 [shape = 'u8[131072]{0}', space=vmem, size = 0x20000, scoped, tag = 'input window, operand 5, single buffered']
    #allocation12 [shape = 'u8[65536]{0}', space=vmem, size = 0x10000, scoped, tag = 'input window, operand 7, single buffered']
    #allocation13 [shape = 's32[1]{0}', space=sflag, size = 0x4, scoped, tag = 'scoped memory for tpu_custom_call.1']
    #allocation14 [shape = 'u8[32768]{0}', space=vmem, size = 0x8000, scoped, tag = 'output window, operand 0, single buffered']
    #allocation15 [shape = 'u8[8192]{0}', space=vmem, size = 0x2000, scoped, tag = 'output window, operand 1, single buffered']
    #allocation16 [shape = 's32[1]{0}', space=sflag, size = 0x4, scoped, tag = 'scoped memory for tpu_custom_call.1']
    %16 = vsyncpa [#allocation4], 0
    %17 = vsyncpa [#allocation7], 0
    %18 = vsyncpa [#allocation10], 0
    %19 = vsyncpa [#allocation13], 0
    %20 = vsyncpa [#allocation5], 0
    %21 = vsyncpa [#allocation16], 0
    // Predicated region
    $region2: #{tpu_custom_call.1} parent=1 // pred_check
      _
    $region3: #{tpu_custom_call.1} parent=1 // pred_check_branch
      %23 = sbr.rel (0) target = $region5
    $region4: #{tpu_custom_call.1} parent=1 // pred_region
      %s25 = ssub.s32 1024, 1024
      %26 = vsyncadd [#allocation4], %s25
      %s27 = sshll.u32 [#allocation3], 4
      %s28 = int_to_ptr.vmem [resolvable:$true] %s27
      %33 = dma.hbm_to_vmem [thread:$0]  %s0, 1024, %s28, [#allocation4], 128, 128, 8
    $region5: #{tpu_custom_call.1} parent=1 // pred_fallthru
      _
    // Predicated region
    $region6: #{tpu_custom_call.1} parent=1 // pred_check
      _
    $region7: #{tpu_custom_call.1} parent=1 // pred_check_branch
      %35 = sbr.rel (0) target = $region9
    $region8: #{tpu_custom_call.1} parent=1 // pred_region
      %s37 = ssub.s32 256, 256
      %38 = vsyncadd [#allocation7], %s37
      %s39 = sshll.u32 [#allocation6], 4
      %s40 = int_to_ptr.vmem [resolvable:$true] %s39
      %45 = dma.hbm_to_vmem [thread:$0]  %s1, 256, %s40, [#allocation7], 128, 128, 8
    $region9: #{tpu_custom_call.1} parent=1 // pred_fallthru
      _
    // Predicated region
    $region10: #{tpu_custom_call.1} parent=1 // pred_check
      _
    $region11: #{tpu_custom_call.1} parent=1 // pred_check_branch
      %47 = sbr.rel (0) target = $region13
    $region12: #{tpu_custom_call.1} parent=1 // pred_region
      %s49 = ssub.s32 2048, 2048
      %50 = vsyncadd [#allocation7], %s49
      %s51 = sshll.u32 [#allocation8], 4
      %s52 = int_to_ptr.vmem [resolvable:$true] %s51
      %57 = dma.hbm_to_vmem [thread:$0]  %s2, 2048, %s52, [#allocation7], 128, 128, 8
    $region13: #{tpu_custom_call.1} parent=1 // pred_fallthru
      _
    // Predicated region
    $region14: #{tpu_custom_call.1} parent=1 // pred_check
      _
    $region15: #{tpu_custom_call.1} parent=1 // pred_check_branch
      %59 = sbr.rel (0) target = $region17
    $region16: #{tpu_custom_call.1} parent=1 // pred_region
      _
    $region17: #{tpu_custom_call.1} parent=1 // pred_fallthru
      _
    // Predicated region
    $region18: #{tpu_custom_call.1} parent=1 // pred_check
      _
    $region19: #{tpu_custom_call.1} parent=1 // pred_check_branch
      %61 = sbr.rel (0) target = $region21
    $region20: #{tpu_custom_call.1} parent=1 // pred_region
      %s63 = ssub.s32 4096, 4096
      %64 = vsyncadd [#allocation10], %s63
      %s65 = sshll.u32 [#allocation9], 4
      %s66 = int_to_ptr.vmem [resolvable:$true] %s65
      %71 = dma.hbm_to_vmem [thread:$0]  %s4, 4096, %s66, [#allocation10], 128, 128, 8
    $region21: #{tpu_custom_call.1} parent=1 // pred_fallthru
      _
    // Predicated region
    $region22: #{tpu_custom_call.1} parent=1 // pred_check
      _
    $region23: #{tpu_custom_call.1} parent=1 // pred_check_branch
      %73 = sbr.rel (0) target = $region25
    $region24: #{tpu_custom_call.1} parent=1 // pred_region
      %s75 = ssub.s32 4096, 4096
      %76 = vsyncadd [#allocation10], %s75
      %s77 = sshll.u32 [#allocation11], 4
      %s78 = int_to_ptr.vmem [resolvable:$true] %s77
      %83 = dma.hbm_to_vmem [thread:$0]  %s5, 4096, %s78, [#allocation10], 128, 128, 8
    $region25: #{tpu_custom_call.1} parent=1 // pred_fallthru
      _
    // Predicated region
    $region26: #{tpu_custom_call.1} parent=1 // pred_check
      _
    $region27: #{tpu_custom_call.1} parent=1 // pred_check_branch
      %85 = sbr.rel (0) target = $region29
    $region28: #{tpu_custom_call.1} parent=1 // pred_region
      _
    $region29: #{tpu_custom_call.1} parent=1 // pred_fallthru
      _
    // Predicated region
    $region30: #{tpu_custom_call.1} parent=1 // pred_check
      _
    $region31: #{tpu_custom_call.1} parent=1 // pred_check_branch
      %87 = sbr.rel (0) target = $region33
    $region32: #{tpu_custom_call.1} parent=1 // pred_region
      %s89 = ssub.s32 2048, 2048
      %90 = vsyncadd [#allocation13], %s89
      %s91 = sshll.u32 [#allocation12], 4
      %s92 = int_to_ptr.vmem [resolvable:$true] %s91
      %97 = dma.hbm_to_vmem [thread:$0]  %s7, 2048, %s92, [#allocation13], 128, 128, 8
    $region33: #{tpu_custom_call.1} parent=1 // pred_fallthru
      _
    // Predicated region
    $region34: #{tpu_custom_call.1} parent=1 // pred_check
      _
    $region35: #{tpu_custom_call.1} parent=1 // pred_check_branch
      %99 = sbr.rel (0) target = $region37
    $region36: #{tpu_custom_call.1} parent=1 // pred_region
      _
    $region37: #{tpu_custom_call.1} parent=1 // pred_fallthru
      _
    // Predicated region
    $region38: #{tpu_custom_call.1} parent=1 // pred_check
      _
    $region39: #{tpu_custom_call.1} parent=1 // pred_check_branch
      %101 = sbr.rel (0) target = $region41
    $region40: #{tpu_custom_call.1} parent=1 // pred_region
      %102 = dma.done [#allocation4], 1024
    $region41: #{tpu_custom_call.1} parent=1 // pred_fallthru
      _
    // Predicated region
    $region42: #{tpu_custom_call.1} parent=1 // pred_check
      _
    $region43: #{tpu_custom_call.1} parent=1 // pred_check_branch
      %104 = sbr.rel (0) target = $region45
    $region44: #{tpu_custom_call.1} parent=1 // pred_region
      %105 = dma.done [#allocation7], 256
    $region45: #{tpu_custom_call.1} parent=1 // pred_fallthru
      _
    // Predicated region
    $region46: #{tpu_custom_call.1} parent=1 // pred_check
      _
    $region47: #{tpu_custom_call.1} parent=1 // pred_check_branch
      %107 = sbr.rel (0) target = $region49
    $region48: #{tpu_custom_call.1} parent=1 // pred_region
      %108 = dma.done [#allocation7], 2048
    $region49: #{tpu_custom_call.1} parent=1 // pred_fallthru
      _
    // Predicated region
    $region50: #{tpu_custom_call.1} parent=1 // pred_check
      _
    $region51: #{tpu_custom_call.1} parent=1 // pred_check_branch
      %110 = sbr.rel (0) target = $region53
    $region52: #{tpu_custom_call.1} parent=1 // pred_region
      %111 = dma.done [#allocation10], 4096
    $region53: #{tpu_custom_call.1} parent=1 // pred_fallthru
      _
    // Predicated region
    $region54: #{tpu_custom_call.1} parent=1 // pred_check
      _
    $region55: #{tpu_custom_call.1} parent=1 // pred_check_branch
      %113 = sbr.rel (0) target = $region57
    $region56: #{tpu_custom_call.1} parent=1 // pred_region
      %114 = dma.done [#allocation10], 4096
    $region57: #{tpu_custom_call.1} parent=1 // pred_fallthru
      _
    // Predicated region
    $region58: #{tpu_custom_call.1} parent=1 // pred_check
      _
    $region59: #{tpu_custom_call.1} parent=1 // pred_check_branch
      %116 = sbr.rel (0) target = $region61
    $region60: #{tpu_custom_call.1} parent=1 // pred_region
      %117 = dma.done [#allocation13], 2048
    $region61: #{tpu_custom_call.1} parent=1 // pred_fallthru
      _
    %v118 = vld [vmem:[#allocation3] sm:$0xff]
    %v119 = vld [vmem:[#allocation3 + $0x8] sm:$0xff]
    %v120 = vld [vmem:[#allocation3 + $0x10] sm:$0xff]
    %v121 = vld [vmem:[#allocation3 + $0x18] sm:$0xff]
    %v122 = vld [vmem:[#allocation3 + $0x20] sm:$0xff]
    %v123 = vld [vmem:[#allocation3 + $0x28] sm:$0xff]
    %v124 = vld [vmem:[#allocation3 + $0x30] sm:$0xff]
    %v125 = vld [vmem:[#allocation3 + $0x38] sm:$0xff]
    %v126 = vld [vmem:[#allocation8] sm:$0xff]
    %v127 = vld [vmem:[#allocation8 + $0x8] sm:$0xff]
    %v128 = vld [vmem:[#allocation8 + $0x10] sm:$0xff]
    %v129 = vld [vmem:[#allocation8 + $0x18] sm:$0xff]
    %v130 = vld [vmem:[#allocation8 + $0x20] sm:$0xff]
    %v131 = vld [vmem:[#allocation8 + $0x28] sm:$0xff]
    %v132 = vld [vmem:[#allocation8 + $0x30] sm:$0xff]
    %v133 = vld [vmem:[#allocation8 + $0x38] sm:$0xff]
    %v134 = vld [vmem:[#allocation8 + $0x40] sm:$0xff]
    %v135 = vld [vmem:[#allocation8 + $0x48] sm:$0xff]
    %v136 = vld [vmem:[#allocation8 + $0x50] sm:$0xff]
    %v137 = vld [vmem:[#allocation8 + $0x58] sm:$0xff]
    %v138 = vld [vmem:[#allocation8 + $0x60] sm:$0xff]
    %v139 = vld [vmem:[#allocation8 + $0x68] sm:$0xff]
    %v140 = vld [vmem:[#allocation8 + $0x70] sm:$0xff]
    %v141 = vld [vmem:[#allocation8 + $0x78] sm:$0xff]
    %v142 = vld [vmem:[%s3] sm:$0x1]
    %v144 = vlaneseq
    %v145 = vshrl.u32 %v144, 7
    %v146 = vsub.s32 0, %v145
    %v147 = vrot.slane %v142, %v146
    %149 = vmatprep.subr.mxu0 0.0
    %150 = vmatpush1.msra.mxu0 %v126
    %151 = vmatprep.subr.mxu0 0.0
    %152 = vmatpush1.msra.mxu0 %v127
    %153 = vmatprep.subr.mxu0 0.0
    %154 = vmatpush1.msra.mxu0 %v128
    %155 = vmatprep.subr.mxu0 0.0
    %156 = vmatpush1.msra.mxu0 %v129
    %157 = vmatprep.subr.mxu0 0.0
    %158 = vmatpush1.msra.mxu0 %v130
    %159 = vmatprep.subr.mxu0 0.0
    %160 = vmatpush1.msra.mxu0 %v131
    %161 = vmatprep.subr.mxu0 0.0
    %162 = vmatpush1.msra.mxu0 %v132
    %163 = vmatprep.subr.mxu0 0.0
    %164 = vmatpush1.msra.mxu0 %v133
    %165 = vmatprep.subr.mxu0 0.0
    %166 = vmatpush1.msra.mxu0 %v134
    %167 = vmatprep.subr.mxu0 0.0
    %168 = vmatpush1.msra.mxu0 %v135
    %169 = vmatprep.subr.mxu0 0.0
    %170 = vmatpush1.msra.mxu0 %v136
    %171 = vmatprep.subr.mxu0 0.0
    %172 = vmatpush1.msra.mxu0 %v137
    %173 = vmatprep.subr.mxu0 0.0
    %174 = vmatpush1.msra.mxu0 %v138
    %175 = vmatprep.subr.mxu0 0.0
    %176 = vmatpush1.msra.mxu0 %v139
    %177 = vmatprep.subr.mxu0 0.0
    %178 = vmatpush1.msra.mxu0 %v140
    %179 = vmatprep.subr.mxu0 0.0
    %180 = vmatpush1.msra.mxu0 %v141
    %181 = vmatprep.subr.mxu0 0.0
    %182 = vmatpush1.msra.mxu0 0.0
    %183 = vmatprep.subr.mxu0 0.0
    %184 = vmatpush1.msra.mxu0 0.0
    %185 = vmatprep.subr.mxu0 0.0
    %186 = vmatpush1.msra.mxu0 0.0
    %187 = vmatprep.subr.mxu0 0.0
    %188 = vmatpush1.msra.mxu0 0.0
    %189 = vmatprep.subr.mxu0 0.0
    %190 = vmatpush1.msra.mxu0 0.0
    %191 = vmatprep.subr.mxu0 0.0
    %192 = vmatpush1.msra.mxu0 0.0
    %193 = vmatprep.subr.mxu0 0.0
    %194 = vmatpush1.msra.mxu0 0.0
    %195 = vmatprep.subr.mxu0 0.0
    %196 = vmatpush1.msra.mxu0 0.0
    %197 = vmatprep.subr.mxu0 0.0
    %198 = vmatpush1.msra.mxu0 0.0
    %199 = vmatprep.subr.mxu0 0.0
    %200 = vmatpush1.msra.mxu0 0.0
    %201 = vmatprep.subr.mxu0 0.0
    %202 = vmatpush1.msra.mxu0 0.0
    %203 = vmatprep.subr.mxu0 0.0
    %204 = vmatpush1.msra.mxu0 0.0
    %205 = vmatprep.subr.mxu0 0.0
    %206 = vmatpush1.msra.mxu0 0.0
    %207 = vmatprep.subr.mxu0 0.0
    %208 = vmatpush1.msra.mxu0 0.0
    %209 = vmatprep.subr.mxu0 0.0
    %210 = vmatpush1.msra.mxu0 0.0
    %211 = vmatprep.subr.mxu0 0.0
    %212 = vmatpush1.msra.mxu0 0.0
    %213 = vmatprep.mubr.f32.mxu0 0.0
    %214 = vmatmul.mubr.f32.gmra.mrb[0].mxu0 %v118
    %v215 = vpop.f32.mrb[0].mxu0
    %v216 = vadd.f32 %v147, %v215
    %v217 = vpop.f32.mrb[0].mxu0
    %218 = vmatprep.mubr.f32.mxu0 0.0
    %219 = vmatmul.mubr.f32.gmra.mrb[0].mxu0 %v119
    %v220 = vpop.f32.mrb[0].mxu0
    %v221 = vadd.f32 %v147, %v220
    %v222 = vpop.f32.mrb[0].mxu0
    %223 = vmatprep.mubr.f32.mxu0 0.0
    %224 = vmatmul.mubr.f32.gmra.mrb[0].mxu0 %v120
    %v225 = vpop.f32.mrb[0].mxu0
    %v226 = vadd.f32 %v147, %v225
    %v227 = vpop.f32.mrb[0].mxu0
    %228 = vmatprep.mubr.f32.mxu0 0.0
    %229 = vmatmul.mubr.f32.gmra.mrb[0].mxu0 %v121
    %v230 = vpop.f32.mrb[0].mxu0
    %v231 = vadd.f32 %v147, %v230
    %v232 = vpop.f32.mrb[0].mxu0
    %233 = vmatprep.mubr.f32.mxu0 0.0
    %234 = vmatmul.mubr.f32.gmra.mrb[0].mxu0 %v122
    %v235 = vpop.f32.mrb[0].mxu0
    %v236 = vadd.f32 %v147, %v235
    %v237 = vpop.f32.mrb[0].mxu0
    %238 = vmatprep.mubr.f32.mxu0 0.0
    %239 = vmatmul.mubr.f32.gmra.mrb[0].mxu0 %v123
    %v240 = vpop.f32.mrb[0].mxu0
    %v241 = vadd.f32 %v147, %v240
    %v242 = vpop.f32.mrb[0].mxu0
    %243 = vmatprep.mubr.f32.mxu0 0.0
    %244 = vmatmul.mubr.f32.gmra.mrb[0].mxu0 %v124
    %v245 = vpop.f32.mrb[0].mxu0
    %v246 = vadd.f32 %v147, %v245
    %v247 = vpop.f32.mrb[0].mxu0
    %248 = vmatprep.mubr.f32.mxu0 0.0
    %249 = vmatmul.mubr.f32.gmra.mrb[0].mxu0 %v125
    %v250 = vpop.f32.mrb[0].mxu0
    %v251 = vadd.f32 %v147, %v250
    %v252 = vpop.f32.mrb[0].mxu0
    %253 = vdwg.mxu0
    %v254 = vmax.f32 %v216, 0.0
    %v255 = vmax.f32 %v221, 0.0
    %v256 = vmax.f32 %v226, 0.0
    %v257 = vmax.f32 %v231, 0.0
    %v258 = vmax.f32 %v236, 0.0
    %v259 = vmax.f32 %v241, 0.0
    %v260 = vmax.f32 %v246, 0.0
    %v261 = vmax.f32 %v251, 0.0
    %v262 = vld [vmem:[#allocation9] sm:$0xff]
    %v263 = vld [vmem:[#allocation9 + $0x8] sm:$0xff]
    %v264 = vld [vmem:[#allocation9 + $0x10] sm:$0xff]
    %v265 = vld [vmem:[#allocation9 + $0x18] sm:$0xff]
    %v266 = vld [vmem:[#allocation9 + $0x20] sm:$0xff]
    %v267 = vld [vmem:[#allocation9 + $0x28] sm:$0xff]
    %v268 = vld [vmem:[#allocation9 + $0x30] sm:$0xff]
    %v269 = vld [vmem:[#allocation9 + $0x38] sm:$0xff]
    %v270 = vld [vmem:[#allocation9 + $0x40] sm:$0xff]
    %v271 = vld [vmem:[#allocation9 + $0x48] sm:$0xff]
    %v272 = vld [vmem:[#allocation9 + $0x50] sm:$0xff]
    %v273 = vld [vmem:[#allocation9 + $0x58] sm:$0xff]
    %v274 = vld [vmem:[#allocation9 + $0x60] sm:$0xff]
    %v275 = vld [vmem:[#allocation9 + $0x68] sm:$0xff]
    %v276 = vld [vmem:[#allocation9 + $0x70] sm:$0xff]
    %v277 = vld [vmem:[#allocation9 + $0x78] sm:$0xff]
    %278 = vmatprep.subr.mxu0 0.0
    %279 = vmatpush1.msra.mxu0 %v262
    %280 = vmatprep.subr.mxu0 0.0
    %281 = vmatpush1.msra.mxu0 %v263
    %282 = vmatprep.subr.mxu0 0.0
    %283 = vmatpush1.msra.mxu0 %v264
    %284 = vmatprep.subr.mxu0 0.0
    %285 = vmatpush1.msra.mxu0 %v265
    %286 = vmatprep.subr.mxu0 0.0
    %287 = vmatpush1.msra.mxu0 %v266
    %288 = vmatprep.subr.mxu0 0.0
    %289 = vmatpush1.msra.mxu0 %v267
    %290 = vmatprep.subr.mxu0 0.0
    %291 = vmatpush1.msra.mxu0 %v268
    %292 = vmatprep.subr.mxu0 0.0
    %293 = vmatpush1.msra.mxu0 %v269
    %294 = vmatprep.subr.mxu0 0.0
    %295 = vmatpush1.msra.mxu0 %v270
    %296 = vmatprep.subr.mxu0 0.0
    %297 = vmatpush1.msra.mxu0 %v271
    %298 = vmatprep.subr.mxu0 0.0
    %299 = vmatpush1.msra.mxu0 %v272
    %300 = vmatprep.subr.mxu0 0.0
    %301 = vmatpush1.msra.mxu0 %v273
    %302 = vmatprep.subr.mxu0 0.0
    %303 = vmatpush1.msra.mxu0 %v274
    %304 = vmatprep.subr.mxu0 0.0
    %305 = vmatpush1.msra.mxu0 %v275
    %306 = vmatprep.subr.mxu0 0.0
    %307 = vmatpush1.msra.mxu0 %v276
    %308 = vmatprep.subr.mxu0 0.0
    %309 = vmatpush1.msra.mxu0 %v277
    %310 = vmatprep.subr.mxu0 0.0
    %311 = vmatpush1.msra.mxu0 0.0
    %312 = vmatprep.subr.mxu0 0.0
    %313 = vmatpush1.msra.mxu0 0.0
    %314 = vmatprep.subr.mxu0 0.0
    %315 = vmatpush1.msra.mxu0 0.0
    %316 = vmatprep.subr.mxu0 0.0
    %317 = vmatpush1.msra.mxu0 0.0
    %318 = vmatprep.subr.mxu0 0.0
    %319 = vmatpush1.msra.mxu0 0.0
    %320 = vmatprep.subr.mxu0 0.0
    %321 = vmatpush1.msra.mxu0 0.0
    %322 = vmatprep.subr.mxu0 0.0
    %323 = vmatpush1.msra.mxu0 0.0
    %324 = vmatprep.subr.mxu0 0.0
    %325 = vmatpush1.msra.mxu0 0.0
    %326 = vmatprep.subr.mxu0 0.0
    %327 = vmatpush1.msra.mxu0 0.0
    %328 = vmatprep.subr.mxu0 0.0
    %329 = vmatpush1.msra.mxu0 0.0
    %330 = vmatprep.subr.mxu0 0.0
    %331 = vmatpush1.msra.mxu0 0.0
    %332 = vmatprep.subr.mxu0 0.0
    %333 = vmatpush1.msra.mxu0 0.0
    %334 = vmatprep.subr.mxu0 0.0
    %335 = vmatpush1.msra.mxu0 0.0
    %336 = vmatprep.subr.mxu0 0.0
    %337 = vmatpush1.msra.mxu0 0.0
    %338 = vmatprep.subr.mxu0 0.0
    %339 = vmatpush1.msra.mxu0 0.0
    %340 = vmatprep.subr.mxu0 0.0
    %341 = vmatpush1.msra.mxu0 0.0
    %342 = vmatprep.mubr.f32.mxu0 0.0
    %343 = vmatmul.mubr.f32.gmra.mrb[0].mxu0 %v254
    %v344 = vpop.f32.mrb[0].mxu0
    %v345 = vadd.f32 0.0, %v344
    %v346 = vpop.f32.mrb[0].mxu0
    %347 = vmatprep.mubr.f32.mxu0 0.0
    %348 = vmatmul.mubr.f32.gmra.mrb[0].mxu0 %v255
    %v349 = vpop.f32.mrb[0].mxu0
    %v350 = vadd.f32 0.0, %v349
    %v351 = vpop.f32.mrb[0].mxu0
    %352 = vmatprep.mubr.f32.mxu0 0.0
    %353 = vmatmul.mubr.f32.gmra.mrb[0].mxu0 %v256
    %v354 = vpop.f32.mrb[0].mxu0
    %v355 = vadd.f32 0.0, %v354
    %v356 = vpop.f32.mrb[0].mxu0
    %357 = vmatprep.mubr.f32.mxu0 0.0
    %358 = vmatmul.mubr.f32.gmra.mrb[0].mxu0 %v257
    %v359 = vpop.f32.mrb[0].mxu0
    %v360 = vadd.f32 0.0, %v359
    %v361 = vpop.f32.mrb[0].mxu0
    %362 = vmatprep.mubr.f32.mxu0 0.0
    %363 = vmatmul.mubr.f32.gmra.mrb[0].mxu0 %v258
    %v364 = vpop.f32.mrb[0].mxu0
    %v365 = vadd.f32 0.0, %v364
    %v366 = vpop.f32.mrb[0].mxu0
    %367 = vmatprep.mubr.f32.mxu0 0.0
    %368 = vmatmul.mubr.f32.gmra.mrb[0].mxu0 %v259
    %v369 = vpop.f32.mrb[0].mxu0
    %v370 = vadd.f32 0.0, %v369
    %v371 = vpop.f32.mrb[0].mxu0
    %372 = vmatprep.mubr.f32.mxu0 0.0
    %373 = vmatmul.mubr.f32.gmra.mrb[0].mxu0 %v260
    %v374 = vpop.f32.mrb[0].mxu0
    %v375 = vadd.f32 0.0, %v374
    %v376 = vpop.f32.mrb[0].mxu0
    %377 = vmatprep.mubr.f32.mxu0 0.0
    %378 = vmatmul.mubr.f32.gmra.mrb[0].mxu0 %v261
    %v379 = vpop.f32.mrb[0].mxu0
    %v380 = vadd.f32 0.0, %v379
    %v381 = vpop.f32.mrb[0].mxu0
    %382 = vdwg.mxu0
    %383 = vst [vmem:[#allocation2] sm:$0xff] %v345
    %384 = vst [vmem:[#allocation2 + $0x8] sm:$0xff] %v350
    %385 = vst [vmem:[#allocation2 + $0x10] sm:$0xff] %v355
    %386 = vst [vmem:[#allocation2 + $0x18] sm:$0xff] %v360
    %387 = vst [vmem:[#allocation2 + $0x20] sm:$0xff] %v365
    %388 = vst [vmem:[#allocation2 + $0x28] sm:$0xff] %v370
    %389 = vst [vmem:[#allocation2 + $0x30] sm:$0xff] %v375
    %390 = vst [vmem:[#allocation2 + $0x38] sm:$0xff] %v380
    %v391 = vld [vmem:[%s6] sm:$0x1]
    %v392 = vlaneseq
    %v393 = vshrl.u32 %v392, 7
    %v394 = vsub.s32 0, %v393
    %v395 = vrot.slane %v391, %v394
    %v396 = vld [vmem:[%s6 + $0x1] sm:$0x1]
    %v397 = vlaneseq
    %v398 = vshrl.u32 %v397, 7
    %v399 = vsub.s32 0, %v398
    %v400 = vrot.slane %v396, %v399
    %v401 = vld [vmem:[%s8] sm:$0x1]
    %v403 = vlaneseq
    %v404 = vshrl.u32 %v403, 7
    %v405 = vsub.s32 0, %v404
    %v406 = vrot.slane %v401, %v405
    %v408 = vld [vmem:[#allocation6] sm:$0xff]
    %s409 = scalar_lea.vmem [#allocation6], 8
    %v410 = vld [vmem:[%s409] sm:$0xff]
    %v411 = vld [vmem:[#allocation2] sm:$0xff]
    %v412 = vadd.f32 %v411, %v395
    %v413 = vld [vmem:[#allocation11] sm:$0xff]
    %v414 = vld [vmem:[#allocation11 + $0x8] sm:$0xff]
    %v415 = vld [vmem:[#allocation11 + $0x10] sm:$0xff]
    %v416 = vld [vmem:[#allocation11 + $0x18] sm:$0xff]
    %v417 = vld [vmem:[#allocation11 + $0x20] sm:$0xff]
    %v418 = vld [vmem:[#allocation11 + $0x28] sm:$0xff]
    %v419 = vld [vmem:[#allocation11 + $0x30] sm:$0xff]
    %v420 = vld [vmem:[#allocation11 + $0x38] sm:$0xff]
    %v421 = vld [vmem:[#allocation11 + $0x40] sm:$0xff]
    %v422 = vld [vmem:[#allocation11 + $0x48] sm:$0xff]
    %v423 = vld [vmem:[#allocation11 + $0x50] sm:$0xff]
    %v424 = vld [vmem:[#allocation11 + $0x58] sm:$0xff]
    %v425 = vld [vmem:[#allocation11 + $0x60] sm:$0xff]
    %v426 = vld [vmem:[#allocation11 + $0x68] sm:$0xff]
    %v427 = vld [vmem:[#allocation11 + $0x70] sm:$0xff]
    %v428 = vld [vmem:[#allocation11 + $0x78] sm:$0xff]
    %429 = vmatprep.subr.mxu0 0.0
    %430 = vmatpush1.msra.mxu0 %v413
    %431 = vmatprep.subr.mxu0 0.0
    %432 = vmatpush1.msra.mxu0 %v414
    %433 = vmatprep.subr.mxu0 0.0
    %434 = vmatpush1.msra.mxu0 %v415
    %435 = vmatprep.subr.mxu0 0.0
    %436 = vmatpush1.msra.mxu0 %v416
    %437 = vmatprep.subr.mxu0 0.0
    %438 = vmatpush1.msra.mxu0 %v417
    %439 = vmatprep.subr.mxu0 0.0
    %440 = vmatpush1.msra.mxu0 %v418
    %441 = vmatprep.subr.mxu0 0.0
    %442 = vmatpush1.msra.mxu0 %v419
    %443 = vmatprep.subr.mxu0 0.0
    %444 = vmatpush1.msra.mxu0 %v420
    %445 = vmatprep.subr.mxu0 0.0
    %446 = vmatpush1.msra.mxu0 %v421
    %447 = vmatprep.subr.mxu0 0.0
    %448 = vmatpush1.msra.mxu0 %v422
    %449 = vmatprep.subr.mxu0 0.0
    %450 = vmatpush1.msra.mxu0 %v423
    %451 = vmatprep.subr.mxu0 0.0
    %452 = vmatpush1.msra.mxu0 %v424
    %453 = vmatprep.subr.mxu0 0.0
    %454 = vmatpush1.msra.mxu0 %v425
    %455 = vmatprep.subr.mxu0 0.0
    %456 = vmatpush1.msra.mxu0 %v426
    %457 = vmatprep.subr.mxu0 0.0
    %458 = vmatpush1.msra.mxu0 %v427
    %459 = vmatprep.subr.mxu0 0.0
    %460 = vmatpush1.msra.mxu0 %v428
    %461 = vmatprep.subr.mxu0 0.0
    %462 = vmatpush1.msra.mxu0 0.0
    %463 = vmatprep.subr.mxu0 0.0
    %464 = vmatpush1.msra.mxu0 0.0
    %465 = vmatprep.subr.mxu0 0.0
    %466 = vmatpush1.msra.mxu0 0.0
    %467 = vmatprep.subr.mxu0 0.0
    %468 = vmatpush1.msra.mxu0 0.0
    %469 = vmatprep.subr.mxu0 0.0
    %470 = vmatpush1.msra.mxu0 0.0
    %471 = vmatprep.subr.mxu0 0.0
    %472 = vmatpush1.msra.mxu0 0.0
    %473 = vmatprep.subr.mxu0 0.0
    %474 = vmatpush1.msra.mxu0 0.0
    %475 = vmatprep.subr.mxu0 0.0
    %476 = vmatpush1.msra.mxu0 0.0
    %477 = vmatprep.subr.mxu0 0.0
    %478 = vmatpush1.msra.mxu0 0.0
    %479 = vmatprep.subr.mxu0 0.0
    %480 = vmatpush1.msra.mxu0 0.0
    %481 = vmatprep.subr.mxu0 0.0
    %482 = vmatpush1.msra.mxu0 0.0
    %483 = vmatprep.subr.mxu0 0.0
    %484 = vmatpush1.msra.mxu0 0.0
    %485 = vmatprep.subr.mxu0 0.0
    %486 = vmatpush1.msra.mxu0 0.0
    %487 = vmatprep.subr.mxu0 0.0
    %488 = vmatpush1.msra.mxu0 0.0
    %489 = vmatprep.subr.mxu0 0.0
    %490 = vmatpush1.msra.mxu0 0.0
    %491 = vmatprep.subr.mxu0 0.0
    %492 = vmatpush1.msra.mxu0 0.0
    %493 = vmatprep.mubr.f32.mxu0 0.0
    %494 = vmatmul.mubr.f32.gmra.mrb[0].mxu0 %v408
    %v495 = vpop.f32.mrb[0].mxu0
    %v496 = vadd.f32 0.0, %v495
    %v497 = vpop.f32.mrb[0].mxu0
    %498 = vdwg.mxu0
    %v499 = vadd.f32 %v412, %v496
    %v500 = vtanh.pop %v499
    %v501 = vld [vmem:[#allocation2 + $0x8] sm:$0xff]
    %v502 = vadd.f32 %v501, %v395
    %503 = vmatprep.subr.mxu0 0.0
    %504 = vmatpush1.msra.mxu0 %v413
    %505 = vmatprep.subr.mxu0 0.0
    %506 = vmatpush1.msra.mxu0 %v414
    %507 = vmatprep.subr.mxu0 0.0
    %508 = vmatpush1.msra.mxu0 %v415
    %509 = vmatprep.subr.mxu0 0.0
    %510 = vmatpush1.msra.mxu0 %v416
    %511 = vmatprep.subr.mxu0 0.0
    %512 = vmatpush1.msra.mxu0 %v417
    %513 = vmatprep.subr.mxu0 0.0
    %514 = vmatpush1.msra.mxu0 %v418
    %515 = vmatprep.subr.mxu0 0.0
    %516 = vmatpush1.msra.mxu0 %v419
    %517 = vmatprep.subr.mxu0 0.0
    %518 = vmatpush1.msra.mxu0 %v420
    %519 = vmatprep.subr.mxu0 0.0
    %520 = vmatpush1.msra.mxu0 %v421
    %521 = vmatprep.subr.mxu0 0.0
    %522 = vmatpush1.msra.mxu0 %v422
    %523 = vmatprep.subr.mxu0 0.0
    %524 = vmatpush1.msra.mxu0 %v423
    %525 = vmatprep.subr.mxu0 0.0
    %526 = vmatpush1.msra.mxu0 %v424
    %527 = vmatprep.subr.mxu0 0.0
    %528 = vmatpush1.msra.mxu0 %v425
    %529 = vmatprep.subr.mxu0 0.0
    %530 = vmatpush1.msra.mxu0 %v426
    %531 = vmatprep.subr.mxu0 0.0
    %532 = vmatpush1.msra.mxu0 %v427
    %533 = vmatprep.subr.mxu0 0.0
    %534 = vmatpush1.msra.mxu0 %v428
    %535 = vmatprep.subr.mxu0 0.0
    %536 = vmatpush1.msra.mxu0 0.0
    %537 = vmatprep.subr.mxu0 0.0
    %538 = vmatpush1.msra.mxu0 0.0
    %539 = vmatprep.subr.mxu0 0.0
    %540 = vmatpush1.msra.mxu0 0.0
    %541 = vmatprep.subr.mxu0 0.0
    %542 = vmatpush1.msra.mxu0 0.0
    %543 = vmatprep.subr.mxu0 0.0
    %544 = vmatpush1.msra.mxu0 0.0
    %545 = vmatprep.subr.mxu0 0.0
    %546 = vmatpush1.msra.mxu0 0.0
    %547 = vmatprep.subr.mxu0 0.0
    %548 = vmatpush1.msra.mxu0 0.0
    %549 = vmatprep.subr.mxu0 0.0
    %550 = vmatpush1.msra.mxu0 0.0
    %551 = vmatprep.subr.mxu0 0.0
    %552 = vmatpush1.msra.mxu0 0.0
    %553 = vmatprep.subr.mxu0 0.0
    %554 = vmatpush1.msra.mxu0 0.0
    %555 = vmatprep.subr.mxu0 0.0
    %556 = vmatpush1.msra.mxu0 0.0
    %557 = vmatprep.subr.mxu0 0.0
    %558 = vmatpush1.msra.mxu0 0.0
    %559 = vmatprep.subr.mxu0 0.0
    %560 = vmatpush1.msra.mxu0 0.0
    %561 = vmatprep.subr.mxu0 0.0
    %562 = vmatpush1.msra.mxu0 0.0
    %563 = vmatprep.subr.mxu0 0.0
    %564 = vmatpush1.msra.mxu0 0.0
    %565 = vmatprep.subr.mxu0 0.0
    %566 = vmatpush1.msra.mxu0 0.0
    %567 = vmatprep.mubr.f32.mxu0 0.0
    %568 = vmatmul.mubr.f32.gmra.mrb[0].mxu0 %v500
    %v569 = vpop.f32.mrb[0].mxu0
    %v570 = vadd.f32 0.0, %v569
    %v571 = vpop.f32.mrb[0].mxu0
    %572 = vdwg.mxu0
    %v573 = vadd.f32 %v502, %v570
    %v574 = vtanh.pop %v573
    %s575 = scalar_lea.vmem [#allocation9], 128
    %v576 = vld [vmem:[%s575] sm:$0xff]
    %v577 = vld [vmem:[%s575 + $0x8] sm:$0xff]
    %v578 = vld [vmem:[%s575 + $0x10] sm:$0xff]
    %v579 = vld [vmem:[%s575 + $0x18] sm:$0xff]
    %v580 = vld [vmem:[%s575 + $0x20] sm:$0xff]
    %v581 = vld [vmem:[%s575 + $0x28] sm:$0xff]
    %v582 = vld [vmem:[%s575 + $0x30] sm:$0xff]
    %v583 = vld [vmem:[%s575 + $0x38] sm:$0xff]
    %v584 = vld [vmem:[%s575 + $0x40] sm:$0xff]
    %v585 = vld [vmem:[%s575 + $0x48] sm:$0xff]
    %v586 = vld [vmem:[%s575 + $0x50] sm:$0xff]
    %v587 = vld [vmem:[%s575 + $0x58] sm:$0xff]
    %v588 = vld [vmem:[%s575 + $0x60] sm:$0xff]
    %v589 = vld [vmem:[%s575 + $0x68] sm:$0xff]
    %v590 = vld [vmem:[%s575 + $0x70] sm:$0xff]
    %v591 = vld [vmem:[%s575 + $0x78] sm:$0xff]
    %592 = vmatprep.subr.mxu0 0.0
    %593 = vmatpush1.msra.mxu0 %v576
    %594 = vmatprep.subr.mxu0 0.0
    %595 = vmatpush1.msra.mxu0 %v577
    %596 = vmatprep.subr.mxu0 0.0
    %597 = vmatpush1.msra.mxu0 %v578
    %598 = vmatprep.subr.mxu0 0.0
    %599 = vmatpush1.msra.mxu0 %v579
    %600 = vmatprep.subr.mxu0 0.0
    %601 = vmatpush1.msra.mxu0 %v580
    %602 = vmatprep.subr.mxu0 0.0
    %603 = vmatpush1.msra.mxu0 %v581
    %604 = vmatprep.subr.mxu0 0.0
    %605 = vmatpush1.msra.mxu0 %v582
    %606 = vmatprep.subr.mxu0 0.0
    %607 = vmatpush1.msra.mxu0 %v583
    %608 = vmatprep.subr.mxu0 0.0
    %609 = vmatpush1.msra.mxu0 %v584
    %610 = vmatprep.subr.mxu0 0.0
    %611 = vmatpush1.msra.mxu0 %v585
    %612 = vmatprep.subr.mxu0 0.0
    %613 = vmatpush1.msra.mxu0 %v586
    %614 = vmatprep.subr.mxu0 0.0
    %615 = vmatpush1.msra.mxu0 %v587
    %616 = vmatprep.subr.mxu0 0.0
    %617 = vmatpush1.msra.mxu0 %v588
    %618 = vmatprep.subr.mxu0 0.0
    %619 = vmatpush1.msra.mxu0 %v589
    %620 = vmatprep.subr.mxu0 0.0
    %621 = vmatpush1.msra.mxu0 %v590
    %622 = vmatprep.subr.mxu0 0.0
    %623 = vmatpush1.msra.mxu0 %v591
    %624 = vmatprep.subr.mxu0 0.0
    %625 = vmatpush1.msra.mxu0 0.0
    %626 = vmatprep.subr.mxu0 0.0
    %627 = vmatpush1.msra.mxu0 0.0
    %628 = vmatprep.subr.mxu0 0.0
    %629 = vmatpush1.msra.mxu0 0.0
    %630 = vmatprep.subr.mxu0 0.0
    %631 = vmatpush1.msra.mxu0 0.0
    %632 = vmatprep.subr.mxu0 0.0
    %633 = vmatpush1.msra.mxu0 0.0
    %634 = vmatprep.subr.mxu0 0.0
    %635 = vmatpush1.msra.mxu0 0.0
    %636 = vmatprep.subr.mxu0 0.0
    %637 = vmatpush1.msra.mxu0 0.0
    %638 = vmatprep.subr.mxu0 0.0
    %639 = vmatpush1.msra.mxu0 0.0
    %640 = vmatprep.subr.mxu0 0.0
    %641 = vmatpush1.msra.mxu0 0.0
    %642 = vmatprep.subr.mxu0 0.0
    %643 = vmatpush1.msra.mxu0 0.0
    %644 = vmatprep.subr.mxu0 0.0
    %645 = vmatpush1.msra.mxu0 0.0
    %646 = vmatprep.subr.mxu0 0.0
    %647 = vmatpush1.msra.mxu0 0.0
    %648 = vmatprep.subr.mxu0 0.0
    %649 = vmatpush1.msra.mxu0 0.0
    %650 = vmatprep.subr.mxu0 0.0
    %651 = vmatpush1.msra.mxu0 0.0
    %652 = vmatprep.subr.mxu0 0.0
    %653 = vmatpush1.msra.mxu0 0.0
    %654 = vmatprep.subr.mxu0 0.0
    %655 = vmatpush1.msra.mxu0 0.0
    %656 = vmatprep.mubr.f32.mxu0 0.0
    %657 = vmatmul.mubr.f32.gmra.mrb[0].mxu0 %v500
    %v658 = vpop.f32.mrb[0].mxu0
    %v659 = vadd.f32 %v400, %v658
    %v660 = vpop.f32.mrb[0].mxu0
    %661 = vdwg.mxu0
    %s662 = scalar_lea.vmem [#allocation11], 128
    %v663 = vld [vmem:[%s662] sm:$0xff]
    %v664 = vld [vmem:[%s662 + $0x8] sm:$0xff]
    %v665 = vld [vmem:[%s662 + $0x10] sm:$0xff]
    %v666 = vld [vmem:[%s662 + $0x18] sm:$0xff]
    %v667 = vld [vmem:[%s662 + $0x20] sm:$0xff]
    %v668 = vld [vmem:[%s662 + $0x28] sm:$0xff]
    %v669 = vld [vmem:[%s662 + $0x30] sm:$0xff]
    %v670 = vld [vmem:[%s662 + $0x38] sm:$0xff]
    %v671 = vld [vmem:[%s662 + $0x40] sm:$0xff]
    %v672 = vld [vmem:[%s662 + $0x48] sm:$0xff]
    %v673 = vld [vmem:[%s662 + $0x50] sm:$0xff]
    %v674 = vld [vmem:[%s662 + $0x58] sm:$0xff]
    %v675 = vld [vmem:[%s662 + $0x60] sm:$0xff]
    %v676 = vld [vmem:[%s662 + $0x68] sm:$0xff]
    %v677 = vld [vmem:[%s662 + $0x70] sm:$0xff]
    %v678 = vld [vmem:[%s662 + $0x78] sm:$0xff]
    %679 = vmatprep.subr.mxu0 0.0
    %680 = vmatpush1.msra.mxu0 %v663
    %681 = vmatprep.subr.mxu0 0.0
    %682 = vmatpush1.msra.mxu0 %v664
    %683 = vmatprep.subr.mxu0 0.0
    %684 = vmatpush1.msra.mxu0 %v665
    %685 = vmatprep.subr.mxu0 0.0
    %686 = vmatpush1.msra.mxu0 %v666
    %687 = vmatprep.subr.mxu0 0.0
    %688 = vmatpush1.msra.mxu0 %v667
    %689 = vmatprep.subr.mxu0 0.0
    %690 = vmatpush1.msra.mxu0 %v668
    %691 = vmatprep.subr.mxu0 0.0
    %692 = vmatpush1.msra.mxu0 %v669
    %693 = vmatprep.subr.mxu0 0.0
    %694 = vmatpush1.msra.mxu0 %v670
    %695 = vmatprep.subr.mxu0 0.0
    %696 = vmatpush1.msra.mxu0 %v671
    %697 = vmatprep.subr.mxu0 0.0
    %698 = vmatpush1.msra.mxu0 %v672
    %699 = vmatprep.subr.mxu0 0.0
    %700 = vmatpush1.msra.mxu0 %v673
    %701 = vmatprep.subr.mxu0 0.0
    %702 = vmatpush1.msra.mxu0 %v674
    %703 = vmatprep.subr.mxu0 0.0
    %704 = vmatpush1.msra.mxu0 %v675
    %705 = vmatprep.subr.mxu0 0.0
    %706 = vmatpush1.msra.mxu0 %v676
    %707 = vmatprep.subr.mxu0 0.0
    %708 = vmatpush1.msra.mxu0 %v677
    %709 = vmatprep.subr.mxu0 0.0
    %710 = vmatpush1.msra.mxu0 %v678
    %711 = vmatprep.subr.mxu0 0.0
    %712 = vmatpush1.msra.mxu0 0.0
    %713 = vmatprep.subr.mxu0 0.0
    %714 = vmatpush1.msra.mxu0 0.0
    %715 = vmatprep.subr.mxu0 0.0
    %716 = vmatpush1.msra.mxu0 0.0
    %717 = vmatprep.subr.mxu0 0.0
    %718 = vmatpush1.msra.mxu0 0.0
    %719 = vmatprep.subr.mxu0 0.0
    %720 = vmatpush1.msra.mxu0 0.0
    %721 = vmatprep.subr.mxu0 0.0
    %722 = vmatpush1.msra.mxu0 0.0
    %723 = vmatprep.subr.mxu0 0.0
    %724 = vmatpush1.msra.mxu0 0.0
    %725 = vmatprep.subr.mxu0 0.0
    %726 = vmatpush1.msra.mxu0 0.0
    %727 = vmatprep.subr.mxu0 0.0
    %728 = vmatpush1.msra.mxu0 0.0
    %729 = vmatprep.subr.mxu0 0.0
    %730 = vmatpush1.msra.mxu0 0.0
    %731 = vmatprep.subr.mxu0 0.0
    %732 = vmatpush1.msra.mxu0 0.0
    %733 = vmatprep.subr.mxu0 0.0
    %734 = vmatpush1.msra.mxu0 0.0
    %735 = vmatprep.subr.mxu0 0.0
    %736 = vmatpush1.msra.mxu0 0.0
    %737 = vmatprep.subr.mxu0 0.0
    %738 = vmatpush1.msra.mxu0 0.0
    %739 = vmatprep.subr.mxu0 0.0
    %740 = vmatpush1.msra.mxu0 0.0
    %741 = vmatprep.subr.mxu0 0.0
    %742 = vmatpush1.msra.mxu0 0.0
    %743 = vmatprep.mubr.f32.mxu0 0.0
    %744 = vmatmul.mubr.f32.gmra.mrb[0].mxu0 %v410
    %v745 = vpop.f32.mrb[0].mxu0
    %v746 = vadd.f32 0.0, %v745
    %v747 = vpop.f32.mrb[0].mxu0
    %748 = vdwg.mxu0
    %v749 = vadd.f32 %v659, %v746
    %v750 = vtanh.pop %v749
    %v751 = vmax.f32 %v750, 0.0
    %v752 = vld [vmem:[#allocation12] sm:$0xff]
    %v753 = vld [vmem:[#allocation12 + $0x8] sm:$0xff]
    %v754 = vld [vmem:[#allocation12 + $0x10] sm:$0xff]
    %v755 = vld [vmem:[#allocation12 + $0x18] sm:$0xff]
    %v756 = vld [vmem:[#allocation12 + $0x20] sm:$0xff]
    %v757 = vld [vmem:[#allocation12 + $0x28] sm:$0xff]
    %v758 = vld [vmem:[#allocation12 + $0x30] sm:$0xff]
    %v759 = vld [vmem:[#allocation12 + $0x38] sm:$0xff]
    %v760 = vld [vmem:[#allocation12 + $0x40] sm:$0xff]
    %v761 = vld [vmem:[#allocation12 + $0x48] sm:$0xff]
    %v762 = vld [vmem:[#allocation12 + $0x50] sm:$0xff]
    %v763 = vld [vmem:[#allocation12 + $0x58] sm:$0xff]
    %v764 = vld [vmem:[#allocation12 + $0x60] sm:$0xff]
    %v765 = vld [vmem:[#allocation12 + $0x68] sm:$0xff]
    %v766 = vld [vmem:[#allocation12 + $0x70] sm:$0xff]
    %v767 = vld [vmem:[#allocation12 + $0x78] sm:$0xff]
    %768 = vmatprep.subr.mxu0 0.0
    %769 = vmatpush1.msra.mxu0 %v752
    %770 = vmatprep.subr.mxu0 0.0
    %771 = vmatpush1.msra.mxu0 %v753
    %772 = vmatprep.subr.mxu0 0.0
    %773 = vmatpush1.msra.mxu0 %v754
    %774 = vmatprep.subr.mxu0 0.0
    %775 = vmatpush1.msra.mxu0 %v755
    %776 = vmatprep.subr.mxu0 0.0
    %777 = vmatpush1.msra.mxu0 %v756
    %778 = vmatprep.subr.mxu0 0.0
    %779 = vmatpush1.msra.mxu0 %v757
    %780 = vmatprep.subr.mxu0 0.0
    %781 = vmatpush1.msra.mxu0 %v758
    %782 = vmatprep.subr.mxu0 0.0
    %783 = vmatpush1.msra.mxu0 %v759
    %784 = vmatprep.subr.mxu0 0.0
    %785 = vmatpush1.msra.mxu0 %v760
    %786 = vmatprep.subr.mxu0 0.0
    %787 = vmatpush1.msra.mxu0 %v761
    %788 = vmatprep.subr.mxu0 0.0
    %789 = vmatpush1.msra.mxu0 %v762
    %790 = vmatprep.subr.mxu0 0.0
    %791 = vmatpush1.msra.mxu0 %v763
    %792 = vmatprep.subr.mxu0 0.0
    %793 = vmatpush1.msra.mxu0 %v764
    %794 = vmatprep.subr.mxu0 0.0
    %795 = vmatpush1.msra.mxu0 %v765
    %796 = vmatprep.subr.mxu0 0.0
    %797 = vmatpush1.msra.mxu0 %v766
    %798 = vmatprep.subr.mxu0 0.0
    %799 = vmatpush1.msra.mxu0 %v767
    %800 = vmatprep.subr.mxu0 0.0
    %801 = vmatpush1.msra.mxu0 0.0
    %802 = vmatprep.subr.mxu0 0.0
    %803 = vmatpush1.msra.mxu0 0.0
    %804 = vmatprep.subr.mxu0 0.0
    %805 = vmatpush1.msra.mxu0 0.0
    %806 = vmatprep.subr.mxu0 0.0
    %807 = vmatpush1.msra.mxu0 0.0
    %808 = vmatprep.subr.mxu0 0.0
    %809 = vmatpush1.msra.mxu0 0.0
    %810 = vmatprep.subr.mxu0 0.0
    %811 = vmatpush1.msra.mxu0 0.0
    %812 = vmatprep.subr.mxu0 0.0
    %813 = vmatpush1.msra.mxu0 0.0
    %814 = vmatprep.subr.mxu0 0.0
    %815 = vmatpush1.msra.mxu0 0.0
    %816 = vmatprep.subr.mxu0 0.0
    %817 = vmatpush1.msra.mxu0 0.0
    %818 = vmatprep.subr.mxu0 0.0
    %819 = vmatpush1.msra.mxu0 0.0
    %820 = vmatprep.subr.mxu0 0.0
    %821 = vmatpush1.msra.mxu0 0.0
    %822 = vmatprep.subr.mxu0 0.0
    %823 = vmatpush1.msra.mxu0 0.0
    %824 = vmatprep.subr.mxu0 0.0
    %825 = vmatpush1.msra.mxu0 0.0
    %826 = vmatprep.subr.mxu0 0.0
    %827 = vmatpush1.msra.mxu0 0.0
    %828 = vmatprep.subr.mxu0 0.0
    %829 = vmatpush1.msra.mxu0 0.0
    %830 = vmatprep.subr.mxu0 0.0
    %831 = vmatpush1.msra.mxu0 0.0
    %832 = vmatprep.mubr.f32.mxu0 0.0
    %833 = vmatmul.mubr.f32.gmra.mrb[0].mxu0 %v751
    %v834 = vpop.f32.mrb[0].mxu0
    %v835 = vadd.f32 %v406, %v834
    %v836 = vpop.f32.mrb[0].mxu0
    %837 = vdwg.mxu0
    %838 = vst [vmem:[#allocation14] sm:$0xff] %v835
    %v839 = vld [vmem:[#allocation2 + $0x10] sm:$0xff]
    %v840 = vadd.f32 %v839, %v395
    %v841 = vld [vmem:[#allocation11] sm:$0xff]
    %v842 = vld [vmem:[#allocation11 + $0x8] sm:$0xff]
    %v843 = vld [vmem:[#allocation11 + $0x10] sm:$0xff]
    %v844 = vld [vmem:[#allocation11 + $0x18] sm:$0xff]
    %v845 = vld [vmem:[#allocation11 + $0x20] sm:$0xff]
    %v846 = vld [vmem:[#allocation11 + $0x28] sm:$0xff]
    %v847 = vld [vmem:[#allocation11 + $0x30] sm:$0xff]
    %v848 = vld [vmem:[#allocation11 + $0x38] sm:$0xff]
    %v849 = vld [vmem:[#allocation11 + $0x40] sm:$0xff]
    %v850 = vld [vmem:[#allocation11 + $0x48] sm:$0xff]
    %v851 = vld [vmem:[#allocation11 + $0x50] sm:$0xff]
    %v852 = vld [vmem:[#allocation11 + $0x58] sm:$0xff]
    %v853 = vld [vmem:[#allocation11 + $0x60] sm:$0xff]
    %v854 = vld [vmem:[#allocation11 + $0x68] sm:$0xff]
    %v855 = vld [vmem:[#allocation11 + $0x70] sm:$0xff]
    %v856 = vld [vmem:[#allocation11 + $0x78] sm:$0xff]
    %857 = vmatprep.subr.mxu0 0.0
    %858 = vmatpush1.msra.mxu0 %v841
    %859 = vmatprep.subr.mxu0 0.0
    %860 = vmatpush1.msra.mxu0 %v842
    %861 = vmatprep.subr.mxu0 0.0
    %862 = vmatpush1.msra.mxu0 %v843
    %863 = vmatprep.subr.mxu0 0.0
    %864 = vmatpush1.msra.mxu0 %v844
    %865 = vmatprep.subr.mxu0 0.0
    %866 = vmatpush1.msra.mxu0 %v845
    %867 = vmatprep.subr.mxu0 0.0
    %868 = vmatpush1.msra.mxu0 %v846
    %869 = vmatprep.subr.mxu0 0.0
    %870 = vmatpush1.msra.mxu0 %v847
    %871 = vmatprep.subr.mxu0 0.0
    %872 = vmatpush1.msra.mxu0 %v848
    %873 = vmatprep.subr.mxu0 0.0
    %874 = vmatpush1.msra.mxu0 %v849
    %875 = vmatprep.subr.mxu0 0.0
    %876 = vmatpush1.msra.mxu0 %v850
    %877 = vmatprep.subr.mxu0 0.0
    %878 = vmatpush1.msra.mxu0 %v851
    %879 = vmatprep.subr.mxu0 0.0
    %880 = vmatpush1.msra.mxu0 %v852
    %881 = vmatprep.subr.mxu0 0.0
    %882 = vmatpush1.msra.mxu0 %v853
    %883 = vmatprep.subr.mxu0 0.0
    %884 = vmatpush1.msra.mxu0 %v854
    %885 = vmatprep.subr.mxu0 0.0
    %886 = vmatpush1.msra.mxu0 %v855
    %887 = vmatprep.subr.mxu0 0.0
    %888 = vmatpush1.msra.mxu0 %v856
    %889 = vmatprep.subr.mxu0 0.0
    %890 = vmatpush1.msra.mxu0 0.0
    %891 = vmatprep.subr.mxu0 0.0
    %892 = vmatpush1.msra.mxu0 0.0
    %893 = vmatprep.subr.mxu0 0.0
    %894 = vmatpush1.msra.mxu0 0.0
    %895 = vmatprep.subr.mxu0 0.0
    %896 = vmatpush1.msra.mxu0 0.0
    %897 = vmatprep.subr.mxu0 0.0
    %898 = vmatpush1.msra.mxu0 0.0
    %899 = vmatprep.subr.mxu0 0.0
    %900 = vmatpush1.msra.mxu0 0.0
    %901 = vmatprep.subr.mxu0 0.0
    %902 = vmatpush1.msra.mxu0 0.0
    %903 = vmatprep.subr.mxu0 0.0
    %904 = vmatpush1.msra.mxu0 0.0
    %905 = vmatprep.subr.mxu0 0.0
    %906 = vmatpush1.msra.mxu0 0.0
    %907 = vmatprep.subr.mxu0 0.0
    %908 = vmatpush1.msra.mxu0 0.0
    %909 = vmatprep.subr.mxu0 0.0
    %910 = vmatpush1.msra.mxu0 0.0
    %911 = vmatprep.subr.mxu0 0.0
    %912 = vmatpush1.msra.mxu0 0.0
    %913 = vmatprep.subr.mxu0 0.0
    %914 = vmatpush1.msra.mxu0 0.0
    %915 = vmatprep.subr.mxu0 0.0
    %916 = vmatpush1.msra.mxu0 0.0
    %917 = vmatprep.subr.mxu0 0.0
    %918 = vmatpush1.msra.mxu0 0.0
    %919 = vmatprep.subr.mxu0 0.0
    %920 = vmatpush1.msra.mxu0 0.0
    %921 = vmatprep.mubr.f32.mxu0 0.0
    %922 = vmatmul.mubr.f32.gmra.mrb[0].mxu0 %v574
    %v923 = vpop.f32.mrb[0].mxu0
    %v924 = vadd.f32 0.0, %v923
    %v925 = vpop.f32.mrb[0].mxu0
    %926 = vdwg.mxu0
    %v927 = vadd.f32 %v840, %v924
    %v928 = vtanh.pop %v927
    %v929 = vld [vmem:[%s575] sm:$0xff]
    %v930 = vld [vmem:[%s575 + $0x8] sm:$0xff]
    %v931 = vld [vmem:[%s575 + $0x10] sm:$0xff]
    %v932 = vld [vmem:[%s575 + $0x18] sm:$0xff]
    %v933 = vld [vmem:[%s575 + $0x20] sm:$0xff]
    %v934 = vld [vmem:[%s575 + $0x28] sm:$0xff]
    %v935 = vld [vmem:[%s575 + $0x30] sm:$0xff]
    %v936 = vld [vmem:[%s575 + $0x38] sm:$0xff]
    %v937 = vld [vmem:[%s575 + $0x40] sm:$0xff]
    %v938 = vld [vmem:[%s575 + $0x48] sm:$0xff]
    %v939 = vld [vmem:[%s575 + $0x50] sm:$0xff]
    %v940 = vld [vmem:[%s575 + $0x58] sm:$0xff]
    %v941 = vld [vmem:[%s575 + $0x60] sm:$0xff]
    %v942 = vld [vmem:[%s575 + $0x68] sm:$0xff]
    %v943 = vld [vmem:[%s575 + $0x70] sm:$0xff]
    %v944 = vld [vmem:[%s575 + $0x78] sm:$0xff]
    %945 = vmatprep.subr.mxu0 0.0
    %946 = vmatpush1.msra.mxu0 %v929
    %947 = vmatprep.subr.mxu0 0.0
    %948 = vmatpush1.msra.mxu0 %v930
    %949 = vmatprep.subr.mxu0 0.0
    %950 = vmatpush1.msra.mxu0 %v931
    %951 = vmatprep.subr.mxu0 0.0
    %952 = vmatpush1.msra.mxu0 %v932
    %953 = vmatprep.subr.mxu0 0.0
    %954 = vmatpush1.msra.mxu0 %v933
    %955 = vmatprep.subr.mxu0 0.0
    %956 = vmatpush1.msra.mxu0 %v934
    %957 = vmatprep.subr.mxu0 0.0
    %958 = vmatpush1.msra.mxu0 %v935
    %959 = vmatprep.subr.mxu0 0.0
    %960 = vmatpush1.msra.mxu0 %v936
    %961 = vmatprep.subr.mxu0 0.0
    %962 = vmatpush1.msra.mxu0 %v937
    %963 = vmatprep.subr.mxu0 0.0
    %964 = vmatpush1.msra.mxu0 %v938
    %965 = vmatprep.subr.mxu0 0.0
    %966 = vmatpush1.msra.mxu0 %v939
    %967 = vmatprep.subr.mxu0 0.0
    %968 = vmatpush1.msra.mxu0 %v940
    %969 = vmatprep.subr.mxu0 0.0
    %970 = vmatpush1.msra.mxu0 %v941
    %971 = vmatprep.subr.mxu0 0.0
    %972 = vmatpush1.msra.mxu0 %v942
    %973 = vmatprep.subr.mxu0 0.0
    %974 = vmatpush1.msra.mxu0 %v943
    %975 = vmatprep.subr.mxu0 0.0
    %976 = vmatpush1.msra.mxu0 %v944
    %977 = vmatprep.subr.mxu0 0.0
    %978 = vmatpush1.msra.mxu0 0.0
    %979 = vmatprep.subr.mxu0 0.0
    %980 = vmatpush1.msra.mxu0 0.0
    %981 = vmatprep.subr.mxu0 0.0
    %982 = vmatpush1.msra.mxu0 0.0
    %983 = vmatprep.subr.mxu0 0.0
    %984 = vmatpush1.msra.mxu0 0.0
    %985 = vmatprep.subr.mxu0 0.0
    %986 = vmatpush1.msra.mxu0 0.0
    %987 = vmatprep.subr.mxu0 0.0
    %988 = vmatpush1.msra.mxu0 0.0
    %989 = vmatprep.subr.mxu0 0.0
    %990 = vmatpush1.msra.mxu0 0.0
    %991 = vmatprep.subr.mxu0 0.0
    %992 = vmatpush1.msra.mxu0 0.0
    %993 = vmatprep.subr.mxu0 0.0
    %994 = vmatpush1.msra.mxu0 0.0
    %995 = vmatprep.subr.mxu0 0.0
    %996 = vmatpush1.msra.mxu0 0.0
    %997 = vmatprep.subr.mxu0 0.0
    %998 = vmatpush1.msra.mxu0 0.0
    %999 = vmatprep.subr.mxu0 0.0
    %1000 = vmatpush1.msra.mxu0 0.0
    %1001 = vmatprep.subr.mxu0 0.0
    %1002 = vmatpush1.msra.mxu0 0.0
    %1003 = vmatprep.subr.mxu0 0.0
    %1004 = vmatpush1.msra.mxu0 0.0
    %1005 = vmatprep.subr.mxu0 0.0
    %1006 = vmatpush1.msra.mxu0 0.0
    %1007 = vmatprep.subr.mxu0 0.0
    %1008 = vmatpush1.msra.mxu0 0.0
    %1009 = vmatprep.mubr.f32.mxu0 0.0
    %1010 = vmatmul.mubr.f32.gmra.mrb[0].mxu0 %v574
    %v1011 = vpop.f32.mrb[0].mxu0
    %v1012 = vadd.f32 %v400, %v1011
    %v1013 = vpop.f32.mrb[0].mxu0
    %1014 = vdwg.mxu0
    %v1015 = vld [vmem:[%s662] sm:$0xff]
    %v1016 = vld [vmem:[%s662 + $0x8] sm:$0xff]
    %v1017 = vld [vmem:[%s662 + $0x10] sm:$0xff]
    %v1018 = vld [vmem:[%s662 + $0x18] sm:$0xff]
    %v1019 = vld [vmem:[%s662 + $0x20] sm:$0xff]
    %v1020 = vld [vmem:[%s662 + $0x28] sm:$0xff]
    %v1021 = vld [vmem:[%s662 + $0x30] sm:$0xff]
    %v1022 = vld [vmem:[%s662 + $0x38] sm:$0xff]
    %v1023 = vld [vmem:[%s662 + $0x40] sm:$0xff]
    %v1024 = vld [vmem:[%s662 + $0x48] sm:$0xff]
    %v1025 = vld [vmem:[%s662 + $0x50] sm:$0xff]
    %v1026 = vld [vmem:[%s662 + $0x58] sm:$0xff]
    %v1027 = vld [vmem:[%s662 + $0x60] sm:$0xff]
    %v1028 = vld [vmem:[%s662 + $0x68] sm:$0xff]
    %v1029 = vld [vmem:[%s662 + $0x70] sm:$0xff]
    %v1030 = vld [vmem:[%s662 + $0x78] sm:$0xff]
    %1031 = vmatprep.subr.mxu0 0.0
    %1032 = vmatpush1.msra.mxu0 %v1015
    %1033 = vmatprep.subr.mxu0 0.0
    %1034 = vmatpush1.msra.mxu0 %v1016
    %1035 = vmatprep.subr.mxu0 0.0
    %1036 = vmatpush1.msra.mxu0 %v1017
    %1037 = vmatprep.subr.mxu0 0.0
    %1038 = vmatpush1.msra.mxu0 %v1018
    %1039 = vmatprep.subr.mxu0 0.0
    %1040 = vmatpush1.msra.mxu0 %v1019
    %1041 = vmatprep.subr.mxu0 0.0
    %1042 = vmatpush1.msra.mxu0 %v1020
    %1043 = vmatprep.subr.mxu0 0.0
    %1044 = vmatpush1.msra.mxu0 %v1021
    %1045 = vmatprep.subr.mxu0 0.0
    %1046 = vmatpush1.msra.mxu0 %v1022
    %1047 = vmatprep.subr.mxu0 0.0
    %1048 = vmatpush1.msra.mxu0 %v1023
    %1049 = vmatprep.subr.mxu0 0.0
    %1050 = vmatpush1.msra.mxu0 %v1024
    %1051 = vmatprep.subr.mxu0 0.0
    %1052 = vmatpush1.msra.mxu0 %v1025
    %1053 = vmatprep.subr.mxu0 0.0
    %1054 = vmatpush1.msra.mxu0 %v1026
    %1055 = vmatprep.subr.mxu0 0.0
    %1056 = vmatpush1.msra.mxu0 %v1027
    %1057 = vmatprep.subr.mxu0 0.0
    %1058 = vmatpush1.msra.mxu0 %v1028
    %1059 = vmatprep.subr.mxu0 0.0
    %1060 = vmatpush1.msra.mxu0 %v1029
    %1061 = vmatprep.subr.mxu0 0.0
    %1062 = vmatpush1.msra.mxu0 %v1030
    %1063 = vmatprep.subr.mxu0 0.0
    %1064 = vmatpush1.msra.mxu0 0.0
    %1065 = vmatprep.subr.mxu0 0.0
    %1066 = vmatpush1.msra.mxu0 0.0
    %1067 = vmatprep.subr.mxu0 0.0
    %1068 = vmatpush1.msra.mxu0 0.0
    %1069 = vmatprep.subr.mxu0 0.0
    %1070 = vmatpush1.msra.mxu0 0.0
    %1071 = vmatprep.subr.mxu0 0.0
    %1072 = vmatpush1.msra.mxu0 0.0
    %1073 = vmatprep.subr.mxu0 0.0
    %1074 = vmatpush1.msra.mxu0 0.0
    %1075 = vmatprep.subr.mxu0 0.0
    %1076 = vmatpush1.msra.mxu0 0.0
    %1077 = vmatprep.subr.mxu0 0.0
    %1078 = vmatpush1.msra.mxu0 0.0
    %1079 = vmatprep.subr.mxu0 0.0
    %1080 = vmatpush1.msra.mxu0 0.0
    %1081 = vmatprep.subr.mxu0 0.0
    %1082 = vmatpush1.msra.mxu0 0.0
    %1083 = vmatprep.subr.mxu0 0.0
    %1084 = vmatpush1.msra.mxu0 0.0
    %1085 = vmatprep.subr.mxu0 0.0
    %1086 = vmatpush1.msra.mxu0 0.0
    %1087 = vmatprep.subr.mxu0 0.0
    %1088 = vmatpush1.msra.mxu0 0.0
    %1089 = vmatprep.subr.mxu0 0.0
    %1090 = vmatpush1.msra.mxu0 0.0
    %1091 = vmatprep.subr.mxu0 0.0
    %1092 = vmatpush1.msra.mxu0 0.0
    %1093 = vmatprep.subr.mxu0 0.0
    %1094 = vmatpush1.msra.mxu0 0.0
    %1095 = vmatprep.mubr.f32.mxu0 0.0
    %1096 = vmatmul.mubr.f32.gmra.mrb[0].mxu0 %v750
    %v1097 = vpop.f32.mrb[0].mxu0
    %v1098 = vadd.f32 0.0, %v1097
    %v1099 = vpop.f32.mrb[0].mxu0
    %1100 = vdwg.mxu0
    %v1101 = vadd.f32 %v1012, %v1098
    %v1102 = vtanh.pop %v1101
    %v1103 = vmax.f32 %v1102, 0.0
    %v1104 = vld [vmem:[#allocation12] sm:$0xff]
    %v1105 = vld [vmem:[#allocation12 + $0x8] sm:$0xff]
    %v1106 = vld [vmem:[#allocation12 + $0x10] sm:$0xff]
    %v1107 = vld [vmem:[#allocation12 + $0x18] sm:$0xff]
    %v1108 = vld [vmem:[#allocation12 + $0x20] sm:$0xff]
    %v1109 = vld [vmem:[#allocation12 + $0x28] sm:$0xff]
    %v1110 = vld [vmem:[#allocation12 + $0x30] sm:$0xff]
    %v1111 = vld [vmem:[#allocation12 + $0x38] sm:$0xff]
    %v1112 = vld [vmem:[#allocation12 + $0x40] sm:$0xff]
    %v1113 = vld [vmem:[#allocation12 + $0x48] sm:$0xff]
    %v1114 = vld [vmem:[#allocation12 + $0x50] sm:$0xff]
    %v1115 = vld [vmem:[#allocation12 + $0x58] sm:$0xff]
    %v1116 = vld [vmem:[#allocation12 + $0x60] sm:$0xff]
    %v1117 = vld [vmem:[#allocation12 + $0x68] sm:$0xff]
    %v1118 = vld [vmem:[#allocation12 + $0x70] sm:$0xff]
    %v1119 = vld [vmem:[#allocation12 + $0x78] sm:$0xff]
    %1120 = vmatprep.subr.mxu0 0.0
    %1121 = vmatpush1.msra.mxu0 %v1104
    %1122 = vmatprep.subr.mxu0 0.0
    %1123 = vmatpush1.msra.mxu0 %v1105
    %1124 = vmatprep.subr.mxu0 0.0
    %1125 = vmatpush1.msra.mxu0 %v1106
    %1126 = vmatprep.subr.mxu0 0.0
    %1127 = vmatpush1.msra.mxu0 %v1107
    %1128 = vmatprep.subr.mxu0 0.0
    %1129 = vmatpush1.msra.mxu0 %v1108
    %1130 = vmatprep.subr.mxu0 0.0
    %1131 = vmatpush1.msra.mxu0 %v1109
    %1132 = vmatprep.subr.mxu0 0.0
    %1133 = vmatpush1.msra.mxu0 %v1110
    %1134 = vmatprep.subr.mxu0 0.0
    %1135 = vmatpush1.msra.mxu0 %v1111
    %1136 = vmatprep.subr.mxu0 0.0
    %1137 = vmatpush1.msra.mxu0 %v1112
    %1138 = vmatprep.subr.mxu0 0.0
    %1139 = vmatpush1.msra.mxu0 %v1113
    %1140 = vmatprep.subr.mxu0 0.0
    %1141 = vmatpush1.msra.mxu0 %v1114
    %1142 = vmatprep.subr.mxu0 0.0
    %1143 = vmatpush1.msra.mxu0 %v1115
    %1144 = vmatprep.subr.mxu0 0.0
    %1145 = vmatpush1.msra.mxu0 %v1116
    %1146 = vmatprep.subr.mxu0 0.0
    %1147 = vmatpush1.msra.mxu0 %v1117
    %1148 = vmatprep.subr.mxu0 0.0
    %1149 = vmatpush1.msra.mxu0 %v1118
    %1150 = vmatprep.subr.mxu0 0.0
    %1151 = vmatpush1.msra.mxu0 %v1119
    %1152 = vmatprep.subr.mxu0 0.0
    %1153 = vmatpush1.msra.mxu0 0.0
    %1154 = vmatprep.subr.mxu0 0.0
    %1155 = vmatpush1.msra.mxu0 0.0
    %1156 = vmatprep.subr.mxu0 0.0
    %1157 = vmatpush1.msra.mxu0 0.0
    %1158 = vmatprep.subr.mxu0 0.0
    %1159 = vmatpush1.msra.mxu0 0.0
    %1160 = vmatprep.subr.mxu0 0.0
    %1161 = vmatpush1.msra.mxu0 0.0
    %1162 = vmatprep.subr.mxu0 0.0
    %1163 = vmatpush1.msra.mxu0 0.0
    %1164 = vmatprep.subr.mxu0 0.0
    %1165 = vmatpush1.msra.mxu0 0.0
    %1166 = vmatprep.subr.mxu0 0.0
    %1167 = vmatpush1.msra.mxu0 0.0
    %1168 = vmatprep.subr.mxu0 0.0
    %1169 = vmatpush1.msra.mxu0 0.0
    %1170 = vmatprep.subr.mxu0 0.0
    %1171 = vmatpush1.msra.mxu0 0.0
    %1172 = vmatprep.subr.mxu0 0.0
    %1173 = vmatpush1.msra.mxu0 0.0
    %1174 = vmatprep.subr.mxu0 0.0
    %1175 = vmatpush1.msra.mxu0 0.0
    %1176 = vmatprep.subr.mxu0 0.0
    %1177 = vmatpush1.msra.mxu0 0.0
    %1178 = vmatprep.subr.mxu0 0.0
    %1179 = vmatpush1.msra.mxu0 0.0
    %1180 = vmatprep.subr.mxu0 0.0
    %1181 = vmatpush1.msra.mxu0 0.0
    %1182 = vmatprep.subr.mxu0 0.0
    %1183 = vmatpush1.msra.mxu0 0.0
    %1184 = vmatprep.mubr.f32.mxu0 0.0
    %1185 = vmatmul.mubr.f32.gmra.mrb[0].mxu0 %v1103
    %v1186 = vpop.f32.mrb[0].mxu0
    %v1187 = vadd.f32 %v406, %v1186
    %v1188 = vpop.f32.mrb[0].mxu0
    %1189 = vdwg.mxu0
    %1190 = vst [vmem:[#allocation14 + $0x8] sm:$0xff] %v1187
    %v1191 = vld [vmem:[#allocation2 + $0x18] sm:$0xff]
    %v1192 = vadd.f32 %v1191, %v395
    %v1193 = vld [vmem:[#allocation11] sm:$0xff]
    %v1194 = vld [vmem:[#allocation11 + $0x8] sm:$0xff]
    %v1195 = vld [vmem:[#allocation11 + $0x10] sm:$0xff]
    %v1196 = vld [vmem:[#allocation11 + $0x18] sm:$0xff]
    %v1197 = vld [vmem:[#allocation11 + $0x20] sm:$0xff]
    %v1198 = vld [vmem:[#allocation11 + $0x28] sm:$0xff]
    %v1199 = vld [vmem:[#allocation11 + $0x30] sm:$0xff]
    %v1200 = vld [vmem:[#allocation11 + $0x38] sm:$0xff]
    %v1201 = vld [vmem:[#allocation11 + $0x40] sm:$0xff]
    %v1202 = vld [vmem:[#allocation11 + $0x48] sm:$0xff]
    %v1203 = vld [vmem:[#allocation11 + $0x50] sm:$0xff]
    %v1204 = vld [vmem:[#allocation11 + $0x58] sm:$0xff]
    %v1205 = vld [vmem:[#allocation11 + $0x60] sm:$0xff]
    %v1206 = vld [vmem:[#allocation11 + $0x68] sm:$0xff]
    %v1207 = vld [vmem:[#allocation11 + $0x70] sm:$0xff]
    %v1208 = vld [vmem:[#allocation11 + $0x78] sm:$0xff]
    %1209 = vmatprep.subr.mxu0 0.0
    %1210 = vmatpush1.msra.mxu0 %v1193
    %1211 = vmatprep.subr.mxu0 0.0
    %1212 = vmatpush1.msra.mxu0 %v1194
    %1213 = vmatprep.subr.mxu0 0.0
    %1214 = vmatpush1.msra.mxu0 %v1195
    %1215 = vmatprep.subr.mxu0 0.0
    %1216 = vmatpush1.msra.mxu0 %v1196
    %1217 = vmatprep.subr.mxu0 0.0
    %1218 = vmatpush1.msra.mxu0 %v1197
    %1219 = vmatprep.subr.mxu0 0.0
    %1220 = vmatpush1.msra.mxu0 %v1198
    %1221 = vmatprep.subr.mxu0 0.0
    %1222 = vmatpush1.msra.mxu0 %v1199
    %1223 = vmatprep.subr.mxu0 0.0
    %1224 = vmatpush1.msra.mxu0 %v1200
    %1225 = vmatprep.subr.mxu0 0.0
    %1226 = vmatpush1.msra.mxu0 %v1201
    %1227 = vmatprep.subr.mxu0 0.0
    %1228 = vmatpush1.msra.mxu0 %v1202
    %1229 = vmatprep.subr.mxu0 0.0
    %1230 = vmatpush1.msra.mxu0 %v1203
    %1231 = vmatprep.subr.mxu0 0.0
    %1232 = vmatpush1.msra.mxu0 %v1204
    %1233 = vmatprep.subr.mxu0 0.0
    %1234 = vmatpush1.msra.mxu0 %v1205
    %1235 = vmatprep.subr.mxu0 0.0
    %1236 = vmatpush1.msra.mxu0 %v1206
    %1237 = vmatprep.subr.mxu0 0.0
    %1238 = vmatpush1.msra.mxu0 %v1207
    %1239 = vmatprep.subr.mxu0 0.0
    %1240 = vmatpush1.msra.mxu0 %v1208
    %1241 = vmatprep.subr.mxu0 0.0
    %1242 = vmatpush1.msra.mxu0 0.0
    %1243 = vmatprep.subr.mxu0 0.0
    %1244 = vmatpush1.msra.mxu0 0.0
    %1245 = vmatprep.subr.mxu0 0.0
    %1246 = vmatpush1.msra.mxu0 0.0
    %1247 = vmatprep.subr.mxu0 0.0
    %1248 = vmatpush1.msra.mxu0 0.0
    %1249 = vmatprep.subr.mxu0 0.0
    %1250 = vmatpush1.msra.mxu0 0.0
    %1251 = vmatprep.subr.mxu0 0.0
    %1252 = vmatpush1.msra.mxu0 0.0
    %1253 = vmatprep.subr.mxu0 0.0
    %1254 = vmatpush1.msra.mxu0 0.0
    %1255 = vmatprep.subr.mxu0 0.0
    %1256 = vmatpush1.msra.mxu0 0.0
    %1257 = vmatprep.subr.mxu0 0.0
    %1258 = vmatpush1.msra.mxu0 0.0
    %1259 = vmatprep.subr.mxu0 0.0
    %1260 = vmatpush1.msra.mxu0 0.0
    %1261 = vmatprep.subr.mxu0 0.0
    %1262 = vmatpush1.msra.mxu0 0.0
    %1263 = vmatprep.subr.mxu0 0.0
    %1264 = vmatpush1.msra.mxu0 0.0
    %1265 = vmatprep.subr.mxu0 0.0
    %1266 = vmatpush1.msra.mxu0 0.0
    %1267 = vmatprep.subr.mxu0 0.0
    %1268 = vmatpush1.msra.mxu0 0.0
    %1269 = vmatprep.subr.mxu0 0.0
    %1270 = vmatpush1.msra.mxu0 0.0
    %1271 = vmatprep.subr.mxu0 0.0
    %1272 = vmatpush1.msra.mxu0 0.0
    %1273 = vmatprep.mubr.f32.mxu0 0.0
    %1274 = vmatmul.mubr.f32.gmra.mrb[0].mxu0 %v928
    %v1275 = vpop.f32.mrb[0].mxu0
    %v1276 = vadd.f32 0.0, %v1275
    %v1277 = vpop.f32.mrb[0].mxu0
    %1278 = vdwg.mxu0
    %v1279 = vadd.f32 %v1192, %v1276
    %v1280 = vtanh.pop %v1279
    %v1281 = vld [vmem:[%s575] sm:$0xff]
    %v1282 = vld [vmem:[%s575 + $0x8] sm:$0xff]
    %v1283 = vld [vmem:[%s575 + $0x10] sm:$0xff]
    %v1284 = vld [vmem:[%s575 + $0x18] sm:$0xff]
    %v1285 = vld [vmem:[%s575 + $0x20] sm:$0xff]
    %v1286 = vld [vmem:[%s575 + $0x28] sm:$0xff]
    %v1287 = vld [vmem:[%s575 + $0x30] sm:$0xff]
    %v1288 = vld [vmem:[%s575 + $0x38] sm:$0xff]
    %v1289 = vld [vmem:[%s575 + $0x40] sm:$0xff]
    %v1290 = vld [vmem:[%s575 + $0x48] sm:$0xff]
    %v1291 = vld [vmem:[%s575 + $0x50] sm:$0xff]
    %v1292 = vld [vmem:[%s575 + $0x58] sm:$0xff]
    %v1293 = vld [vmem:[%s575 + $0x60] sm:$0xff]
    %v1294 = vld [vmem:[%s575 + $0x68] sm:$0xff]
    %v1295 = vld [vmem:[%s575 + $0x70] sm:$0xff]
    %v1296 = vld [vmem:[%s575 + $0x78] sm:$0xff]
    %1297 = vmatprep.subr.mxu0 0.0
    %1298 = vmatpush1.msra.mxu0 %v1281
    %1299 = vmatprep.subr.mxu0 0.0
    %1300 = vmatpush1.msra.mxu0 %v1282
    %1301 = vmatprep.subr.mxu0 0.0
    %1302 = vmatpush1.msra.mxu0 %v1283
    %1303 = vmatprep.subr.mxu0 0.0
    %1304 = vmatpush1.msra.mxu0 %v1284
    %1305 = vmatprep.subr.mxu0 0.0
    %1306 = vmatpush1.msra.mxu0 %v1285
    %1307 = vmatprep.subr.mxu0 0.0
    %1308 = vmatpush1.msra.mxu0 %v1286
    %1309 = vmatprep.subr.mxu0 0.0
    %1310 = vmatpush1.msra.mxu0 %v1287
    %1311 = vmatprep.subr.mxu0 0.0
    %1312 = vmatpush1.msra.mxu0 %v1288
    %1313 = vmatprep.subr.mxu0 0.0
    %1314 = vmatpush1.msra.mxu0 %v1289
    %1315 = vmatprep.subr.mxu0 0.0
    %1316 = vmatpush1.msra.mxu0 %v1290
    %1317 = vmatprep.subr.mxu0 0.0
    %1318 = vmatpush1.msra.mxu0 %v1291
    %1319 = vmatprep.subr.mxu0 0.0
    %1320 = vmatpush1.msra.mxu0 %v1292
    %1321 = vmatprep.subr.mxu0 0.0
    %1322 = vmatpush1.msra.mxu0 %v1293
    %1323 = vmatprep.subr.mxu0 0.0
    %1324 = vmatpush1.msra.mxu0 %v1294
    %1325 = vmatprep.subr.mxu0 0.0
    %1326 = vmatpush1.msra.mxu0 %v1295
    %1327 = vmatprep.subr.mxu0 0.0
    %1328 = vmatpush1.msra.mxu0 %v1296
    %1329 = vmatprep.subr.mxu0 0.0
    %1330 = vmatpush1.msra.mxu0 0.0
    %1331 = vmatprep.subr.mxu0 0.0
    %1332 = vmatpush1.msra.mxu0 0.0
    %1333 = vmatprep.subr.mxu0 0.0
    %1334 = vmatpush1.msra.mxu0 0.0
    %1335 = vmatprep.subr.mxu0 0.0
    %1336 = vmatpush1.msra.mxu0 0.0
    %1337 = vmatprep.subr.mxu0 0.0
    %1338 = vmatpush1.msra.mxu0 0.0
    %1339 = vmatprep.subr.mxu0 0.0
    %1340 = vmatpush1.msra.mxu0 0.0
    %1341 = vmatprep.subr.mxu0 0.0
    %1342 = vmatpush1.msra.mxu0 0.0
    %1343 = vmatprep.subr.mxu0 0.0
    %1344 = vmatpush1.msra.mxu0 0.0
    %1345 = vmatprep.subr.mxu0 0.0
    %1346 = vmatpush1.msra.mxu0 0.0
    %1347 = vmatprep.subr.mxu0 0.0
    %1348 = vmatpush1.msra.mxu0 0.0
    %1349 = vmatprep.subr.mxu0 0.0
    %1350 = vmatpush1.msra.mxu0 0.0
    %1351 = vmatprep.subr.mxu0 0.0
    %1352 = vmatpush1.msra.mxu0 0.0
    %1353 = vmatprep.subr.mxu0 0.0
    %1354 = vmatpush1.msra.mxu0 0.0
    %1355 = vmatprep.subr.mxu0 0.0
    %1356 = vmatpush1.msra.mxu0 0.0
    %1357 = vmatprep.subr.mxu0 0.0
    %1358 = vmatpush1.msra.mxu0 0.0
    %1359 = vmatprep.subr.mxu0 0.0
    %1360 = vmatpush1.msra.mxu0 0.0
    %1361 = vmatprep.mubr.f32.mxu0 0.0
    %1362 = vmatmul.mubr.f32.gmra.mrb[0].mxu0 %v928
    %v1363 = vpop.f32.mrb[0].mxu0
    %v1364 = vadd.f32 %v400, %v1363
    %v1365 = vpop.f32.mrb[0].mxu0
    %1366 = vdwg.mxu0
    %v1367 = vld [vmem:[%s662] sm:$0xff]
    %v1368 = vld [vmem:[%s662 + $0x8] sm:$0xff]
    %v1369 = vld [vmem:[%s662 + $0x10] sm:$0xff]
    %v1370 = vld [vmem:[%s662 + $0x18] sm:$0xff]
    %v1371 = vld [vmem:[%s662 + $0x20] sm:$0xff]
    %v1372 = vld [vmem:[%s662 + $0x28] sm:$0xff]
    %v1373 = vld [vmem:[%s662 + $0x30] sm:$0xff]
    %v1374 = vld [vmem:[%s662 + $0x38] sm:$0xff]
    %v1375 = vld [vmem:[%s662 + $0x40] sm:$0xff]
    %v1376 = vld [vmem:[%s662 + $0x48] sm:$0xff]
    %v1377 = vld [vmem:[%s662 + $0x50] sm:$0xff]
    %v1378 = vld [vmem:[%s662 + $0x58] sm:$0xff]
    %v1379 = vld [vmem:[%s662 + $0x60] sm:$0xff]
    %v1380 = vld [vmem:[%s662 + $0x68] sm:$0xff]
    %v1381 = vld [vmem:[%s662 + $0x70] sm:$0xff]
    %v1382 = vld [vmem:[%s662 + $0x78] sm:$0xff]
    %1383 = vmatprep.subr.mxu0 0.0
    %1384 = vmatpush1.msra.mxu0 %v1367
    %1385 = vmatprep.subr.mxu0 0.0
    %1386 = vmatpush1.msra.mxu0 %v1368
    %1387 = vmatprep.subr.mxu0 0.0
    %1388 = vmatpush1.msra.mxu0 %v1369
    %1389 = vmatprep.subr.mxu0 0.0
    %1390 = vmatpush1.msra.mxu0 %v1370
    %1391 = vmatprep.subr.mxu0 0.0
    %1392 = vmatpush1.msra.mxu0 %v1371
    %1393 = vmatprep.subr.mxu0 0.0
    %1394 = vmatpush1.msra.mxu0 %v1372
    %1395 = vmatprep.subr.mxu0 0.0
    %1396 = vmatpush1.msra.mxu0 %v1373
    %1397 = vmatprep.subr.mxu0 0.0
    %1398 = vmatpush1.msra.mxu0 %v1374
    %1399 = vmatprep.subr.mxu0 0.0
    %1400 = vmatpush1.msra.mxu0 %v1375
    %1401 = vmatprep.subr.mxu0 0.0
    %1402 = vmatpush1.msra.mxu0 %v1376
    %1403 = vmatprep.subr.mxu0 0.0
    %1404 = vmatpush1.msra.mxu0 %v1377
    %1405 = vmatprep.subr.mxu0 0.0
    %1406 = vmatpush1.msra.mxu0 %v1378
    %1407 = vmatprep.subr.mxu0 0.0
    %1408 = vmatpush1.msra.mxu0 %v1379
    %1409 = vmatprep.subr.mxu0 0.0
    %1410 = vmatpush1.msra.mxu0 %v1380
    %1411 = vmatprep.subr.mxu0 0.0
    %1412 = vmatpush1.msra.mxu0 %v1381
    %1413 = vmatprep.subr.mxu0 0.0
    %1414 = vmatpush1.msra.mxu0 %v1382
    %1415 = vmatprep.subr.mxu0 0.0
    %1416 = vmatpush1.msra.mxu0 0.0
    %1417 = vmatprep.subr.mxu0 0.0
    %1418 = vmatpush1.msra.mxu0 0.0
    %1419 = vmatprep.subr.mxu0 0.0
    %1420 = vmatpush1.msra.mxu0 0.0
    %1421 = vmatprep.subr.mxu0 0.0
    %1422 = vmatpush1.msra.mxu0 0.0
    %1423 = vmatprep.subr.mxu0 0.0
    %1424 = vmatpush1.msra.mxu0 0.0
    %1425 = vmatprep.subr.mxu0 0.0
    %1426 = vmatpush1.msra.mxu0 0.0
    %1427 = vmatprep.subr.mxu0 0.0
    %1428 = vmatpush1.msra.mxu0 0.0
    %1429 = vmatprep.subr.mxu0 0.0
    %1430 = vmatpush1.msra.mxu0 0.0
    %1431 = vmatprep.subr.mxu0 0.0
    %1432 = vmatpush1.msra.mxu0 0.0
    %1433 = vmatprep.subr.mxu0 0.0
    %1434 = vmatpush1.msra.mxu0 0.0
    %1435 = vmatprep.subr.mxu0 0.0
    %1436 = vmatpush1.msra.mxu0 0.0
    %1437 = vmatprep.subr.mxu0 0.0
    %1438 = vmatpush1.msra.mxu0 0.0
    %1439 = vmatprep.subr.mxu0 0.0
    %1440 = vmatpush1.msra.mxu0 0.0
    %1441 = vmatprep.subr.mxu0 0.0
    %1442 = vmatpush1.msra.mxu0 0.0
    %1443 = vmatprep.subr.mxu0 0.0
    %1444 = vmatpush1.msra.mxu0 0.0
    %1445 = vmatprep.subr.mxu0 0.0
    %1446 = vmatpush1.msra.mxu0 0.0
    %1447 = vmatprep.mubr.f32.mxu0 0.0
    %1448 = vmatmul.mubr.f32.gmra.mrb[0].mxu0 %v1102
    %v1449 = vpop.f32.mrb[0].mxu0
    %v1450 = vadd.f32 0.0, %v1449
    %v1451 = vpop.f32.mrb[0].mxu0
    %1452 = vdwg.mxu0
    %v1453 = vadd.f32 %v1364, %v1450
    %v1454 = vtanh.pop %v1453
    %v1455 = vmax.f32 %v1454, 0.0
    %v1456 = vld [vmem:[#allocation12] sm:$0xff]
    %v1457 = vld [vmem:[#allocation12 + $0x8] sm:$0xff]
    %v1458 = vld [vmem:[#allocation12 + $0x10] sm:$0xff]
    %v1459 = vld [vmem:[#allocation12 + $0x18] sm:$0xff]
    %v1460 = vld [vmem:[#allocation12 + $0x20] sm:$0xff]
    %v1461 = vld [vmem:[#allocation12 + $0x28] sm:$0xff]
    %v1462 = vld [vmem:[#allocation12 + $0x30] sm:$0xff]
    %v1463 = vld [vmem:[#allocation12 + $0x38] sm:$0xff]
    %v1464 = vld [vmem:[#allocation12 + $0x40] sm:$0xff]
    %v1465 = vld [vmem:[#allocation12 + $0x48] sm:$0xff]
    %v1466 = vld [vmem:[#allocation12 + $0x50] sm:$0xff]
    %v1467 = vld [vmem:[#allocation12 + $0x58] sm:$0xff]
    %v1468 = vld [vmem:[#allocation12 + $0x60] sm:$0xff]
    %v1469 = vld [vmem:[#allocation12 + $0x68] sm:$0xff]
    %v1470 = vld [vmem:[#allocation12 + $0x70] sm:$0xff]
    %v1471 = vld [vmem:[#allocation12 + $0x78] sm:$0xff]
    %1472 = vmatprep.subr.mxu0 0.0
    %1473 = vmatpush1.msra.mxu0 %v1456
    %1474 = vmatprep.subr.mxu0 0.0
    %1475 = vmatpush1.msra.mxu0 %v1457
    %1476 = vmatprep.subr.mxu0 0.0
    %1477 = vmatpush1.msra.mxu0 %v1458
    %1478 = vmatprep.subr.mxu0 0.0
    %1479 = vmatpush1.msra.mxu0 %v1459
    %1480 = vmatprep.subr.mxu0 0.0
    %1481 = vmatpush1.msra.mxu0 %v1460
    %1482 = vmatprep.subr.mxu0 0.0
    %1483 = vmatpush1.msra.mxu0 %v1461
    %1484 = vmatprep.subr.mxu0 0.0
    %1485 = vmatpush1.msra.mxu0 %v1462
    %1486 = vmatprep.subr.mxu0 0.0
    %1487 = vmatpush1.msra.mxu0 %v1463
    %1488 = vmatprep.subr.mxu0 0.0
    %1489 = vmatpush1.msra.mxu0 %v1464
    %1490 = vmatprep.subr.mxu0 0.0
    %1491 = vmatpush1.msra.mxu0 %v1465
    %1492 = vmatprep.subr.mxu0 0.0
    %1493 = vmatpush1.msra.mxu0 %v1466
    %1494 = vmatprep.subr.mxu0 0.0
    %1495 = vmatpush1.msra.mxu0 %v1467
    %1496 = vmatprep.subr.mxu0 0.0
    %1497 = vmatpush1.msra.mxu0 %v1468
    %1498 = vmatprep.subr.mxu0 0.0
    %1499 = vmatpush1.msra.mxu0 %v1469
    %1500 = vmatprep.subr.mxu0 0.0
    %1501 = vmatpush1.msra.mxu0 %v1470
    %1502 = vmatprep.subr.mxu0 0.0
    %1503 = vmatpush1.msra.mxu0 %v1471
    %1504 = vmatprep.subr.mxu0 0.0
    %1505 = vmatpush1.msra.mxu0 0.0
    %1506 = vmatprep.subr.mxu0 0.0
    %1507 = vmatpush1.msra.mxu0 0.0
    %1508 = vmatprep.subr.mxu0 0.0
    %1509 = vmatpush1.msra.mxu0 0.0
    %1510 = vmatprep.subr.mxu0 0.0
    %1511 = vmatpush1.msra.mxu0 0.0
    %1512 = vmatprep.subr.mxu0 0.0
    %1513 = vmatpush1.msra.mxu0 0.0
    %1514 = vmatprep.subr.mxu0 0.0
    %1515 = vmatpush1.msra.mxu0 0.0
    %1516 = vmatprep.subr.mxu0 0.0
    %1517 = vmatpush1.msra.mxu0 0.0
    %1518 = vmatprep.subr.mxu0 0.0
    %1519 = vmatpush1.msra.mxu0 0.0
    %1520 = vmatprep.subr.mxu0 0.0
    %1521 = vmatpush1.msra.mxu0 0.0
    %1522 = vmatprep.subr.mxu0 0.0
    %1523 = vmatpush1.msra.mxu0 0.0
    %1524 = vmatprep.subr.mxu0 0.0
    %1525 = vmatpush1.msra.mxu0 0.0
    %1526 = vmatprep.subr.mxu0 0.0
    %1527 = vmatpush1.msra.mxu0 0.0
    %1528 = vmatprep.subr.mxu0 0.0
    %1529 = vmatpush1.msra.mxu0 0.0
    %1530 = vmatprep.subr.mxu0 0.0
    %1531 = vmatpush1.msra.mxu0 0.0
    %1532 = vmatprep.subr.mxu0 0.0
    %1533 = vmatpush1.msra.mxu0 0.0
    %1534 = vmatprep.subr.mxu0 0.0
    %1535 = vmatpush1.msra.mxu0 0.0
    %1536 = vmatprep.mubr.f32.mxu0 0.0
    %1537 = vmatmul.mubr.f32.gmra.mrb[0].mxu0 %v1455
    %v1538 = vpop.f32.mrb[0].mxu0
    %v1539 = vadd.f32 %v406, %v1538
    %v1540 = vpop.f32.mrb[0].mxu0
    %1541 = vdwg.mxu0
    %1542 = vst [vmem:[#allocation14 + $0x10] sm:$0xff] %v1539
    %v1543 = vld [vmem:[#allocation2 + $0x20] sm:$0xff]
    %v1544 = vadd.f32 %v1543, %v395
    %v1545 = vld [vmem:[#allocation11] sm:$0xff]
    %v1546 = vld [vmem:[#allocation11 + $0x8] sm:$0xff]
    %v1547 = vld [vmem:[#allocation11 + $0x10] sm:$0xff]
    %v1548 = vld [vmem:[#allocation11 + $0x18] sm:$0xff]
    %v1549 = vld [vmem:[#allocation11 + $0x20] sm:$0xff]
    %v1550 = vld [vmem:[#allocation11 + $0x28] sm:$0xff]
    %v1551 = vld [vmem:[#allocation11 + $0x30] sm:$0xff]
    %v1552 = vld [vmem:[#allocation11 + $0x38] sm:$0xff]
    %v1553 = vld [vmem:[#allocation11 + $0x40] sm:$0xff]
    %v1554 = vld [vmem:[#allocation11 + $0x48] sm:$0xff]
    %v1555 = vld [vmem:[#allocation11 + $0x50] sm:$0xff]
    %v1556 = vld [vmem:[#allocation11 + $0x58] sm:$0xff]
    %v1557 = vld [vmem:[#allocation11 + $0x60] sm:$0xff]
    %v1558 = vld [vmem:[#allocation11 + $0x68] sm:$0xff]
    %v1559 = vld [vmem:[#allocation11 + $0x70] sm:$0xff]
    %v1560 = vld [vmem:[#allocation11 + $0x78] sm:$0xff]
    %1561 = vmatprep.subr.mxu0 0.0
    %1562 = vmatpush1.msra.mxu0 %v1545
    %1563 = vmatprep.subr.mxu0 0.0
    %1564 = vmatpush1.msra.mxu0 %v1546
    %1565 = vmatprep.subr.mxu0 0.0
    %1566 = vmatpush1.msra.mxu0 %v1547
    %1567 = vmatprep.subr.mxu0 0.0
    %1568 = vmatpush1.msra.mxu0 %v1548
    %1569 = vmatprep.subr.mxu0 0.0
    %1570 = vmatpush1.msra.mxu0 %v1549
    %1571 = vmatprep.subr.mxu0 0.0
    %1572 = vmatpush1.msra.mxu0 %v1550
    %1573 = vmatprep.subr.mxu0 0.0
    %1574 = vmatpush1.msra.mxu0 %v1551
    %1575 = vmatprep.subr.mxu0 0.0
    %1576 = vmatpush1.msra.mxu0 %v1552
    %1577 = vmatprep.subr.mxu0 0.0
    %1578 = vmatpush1.msra.mxu0 %v1553
    %1579 = vmatprep.subr.mxu0 0.0
    %1580 = vmatpush1.msra.mxu0 %v1554
    %1581 = vmatprep.subr.mxu0 0.0
    %1582 = vmatpush1.msra.mxu0 %v1555
    %1583 = vmatprep.subr.mxu0 0.0
    %1584 = vmatpush1.msra.mxu0 %v1556
    %1585 = vmatprep.subr.mxu0 0.0
    %1586 = vmatpush1.msra.mxu0 %v1557
    %1587 = vmatprep.subr.mxu0 0.0
    %1588 = vmatpush1.msra.mxu0 %v1558
    %1589 = vmatprep.subr.mxu0 0.0
    %1590 = vmatpush1.msra.mxu0 %v1559
    %1591 = vmatprep.subr.mxu0 0.0
    %1592 = vmatpush1.msra.mxu0 %v1560
    %1593 = vmatprep.subr.mxu0 0.0
    %1594 = vmatpush1.msra.mxu0 0.0
    %1595 = vmatprep.subr.mxu0 0.0
    %1596 = vmatpush1.msra.mxu0 0.0
    %1597 = vmatprep.subr.mxu0 0.0
    %1598 = vmatpush1.msra.mxu0 0.0
    %1599 = vmatprep.subr.mxu0 0.0
    %1600 = vmatpush1.msra.mxu0 0.0
    %1601 = vmatprep.subr.mxu0 0.0
    %1602 = vmatpush1.msra.mxu0 0.0
    %1603 = vmatprep.subr.mxu0 0.0
    %1604 = vmatpush1.msra.mxu0 0.0
    %1605 = vmatprep.subr.mxu0 0.0
    %1606 = vmatpush1.msra.mxu0 0.0
    %1607 = vmatprep.subr.mxu0 0.0
    %1608 = vmatpush1.msra.mxu0 0.0
    %1609 = vmatprep.subr.mxu0 0.0
    %1610 = vmatpush1.msra.mxu0 0.0
    %1611 = vmatprep.subr.mxu0 0.0
    %1612 = vmatpush1.msra.mxu0 0.0
    %1613 = vmatprep.subr.mxu0 0.0
    %1614 = vmatpush1.msra.mxu0 0.0
    %1615 = vmatprep.subr.mxu0 0.0
    %1616 = vmatpush1.msra.mxu0 0.0
    %1617 = vmatprep.subr.mxu0 0.0
    %1618 = vmatpush1.msra.mxu0 0.0
    %1619 = vmatprep.subr.mxu0 0.0
    %1620 = vmatpush1.msra.mxu0 0.0
    %1621 = vmatprep.subr.mxu0 0.0
    %1622 = vmatpush1.msra.mxu0 0.0
    %1623 = vmatprep.subr.mxu0 0.0
    %1624 = vmatpush1.msra.mxu0 0.0
    %1625 = vmatprep.mubr.f32.mxu0 0.0
    %1626 = vmatmul.mubr.f32.gmra.mrb[0].mxu0 %v1280
    %v1627 = vpop.f32.mrb[0].mxu0
    %v1628 = vadd.f32 0.0, %v1627
    %v1629 = vpop.f32.mrb[0].mxu0
    %1630 = vdwg.mxu0
    %v1631 = vadd.f32 %v1544, %v1628
    %v1632 = vtanh.pop %v1631
    %v1633 = vld [vmem:[%s575] sm:$0xff]
    %v1634 = vld [vmem:[%s575 + $0x8] sm:$0xff]
    %v1635 = vld [vmem:[%s575 + $0x10] sm:$0xff]
    %v1636 = vld [vmem:[%s575 + $0x18] sm:$0xff]
    %v1637 = vld [vmem:[%s575 + $0x20] sm:$0xff]
    %v1638 = vld [vmem:[%s575 + $0x28] sm:$0xff]
    %v1639 = vld [vmem:[%s575 + $0x30] sm:$0xff]
    %v1640 = vld [vmem:[%s575 + $0x38] sm:$0xff]
    %v1641 = vld [vmem:[%s575 + $0x40] sm:$0xff]
    %v1642 = vld [vmem:[%s575 + $0x48] sm:$0xff]
    %v1643 = vld [vmem:[%s575 + $0x50] sm:$0xff]
    %v1644 = vld [vmem:[%s575 + $0x58] sm:$0xff]
    %v1645 = vld [vmem:[%s575 + $0x60] sm:$0xff]
    %v1646 = vld [vmem:[%s575 + $0x68] sm:$0xff]
    %v1647 = vld [vmem:[%s575 + $0x70] sm:$0xff]
    %v1648 = vld [vmem:[%s575 + $0x78] sm:$0xff]
    %1649 = vmatprep.subr.mxu0 0.0
    %1650 = vmatpush1.msra.mxu0 %v1633
    %1651 = vmatprep.subr.mxu0 0.0
    %1652 = vmatpush1.msra.mxu0 %v1634
    %1653 = vmatprep.subr.mxu0 0.0
    %1654 = vmatpush1.msra.mxu0 %v1635
    %1655 = vmatprep.subr.mxu0 0.0
    %1656 = vmatpush1.msra.mxu0 %v1636
    %1657 = vmatprep.subr.mxu0 0.0
    %1658 = vmatpush1.msra.mxu0 %v1637
    %1659 = vmatprep.subr.mxu0 0.0
    %1660 = vmatpush1.msra.mxu0 %v1638
    %1661 = vmatprep.subr.mxu0 0.0
    %1662 = vmatpush1.msra.mxu0 %v1639
    %1663 = vmatprep.subr.mxu0 0.0
    %1664 = vmatpush1.msra.mxu0 %v1640
    %1665 = vmatprep.subr.mxu0 0.0
    %1666 = vmatpush1.msra.mxu0 %v1641
    %1667 = vmatprep.subr.mxu0 0.0
    %1668 = vmatpush1.msra.mxu0 %v1642
    %1669 = vmatprep.subr.mxu0 0.0
    %1670 = vmatpush1.msra.mxu0 %v1643
    %1671 = vmatprep.subr.mxu0 0.0
    %1672 = vmatpush1.msra.mxu0 %v1644
    %1673 = vmatprep.subr.mxu0 0.0
    %1674 = vmatpush1.msra.mxu0 %v1645
    %1675 = vmatprep.subr.mxu0 0.0
    %1676 = vmatpush1.msra.mxu0 %v1646
    %1677 = vmatprep.subr.mxu0 0.0
    %1678 = vmatpush1.msra.mxu0 %v1647
    %1679 = vmatprep.subr.mxu0 0.0
    %1680 = vmatpush1.msra.mxu0 %v1648
    %1681 = vmatprep.subr.mxu0 0.0
    %1682 = vmatpush1.msra.mxu0 0.0
    %1683 = vmatprep.subr.mxu0 0.0
    %1684 = vmatpush1.msra.mxu0 0.0
    %1685 = vmatprep.subr.mxu0 0.0
    %1686 = vmatpush1.msra.mxu0 0.0
    %1687 = vmatprep.subr.mxu0 0.0
    %1688 = vmatpush1.msra.mxu0 0.0
    %1689 = vmatprep.subr.mxu0 0.0
    %1690 = vmatpush1.msra.mxu0 0.0
    %1691 = vmatprep.subr.mxu0 0.0
    %1692 = vmatpush1.msra.mxu0 0.0
    %1693 = vmatprep.subr.mxu0 0.0
    %1694 = vmatpush1.msra.mxu0 0.0
    %1695 = vmatprep.subr.mxu0 0.0
    %1696 = vmatpush1.msra.mxu0 0.0
    %1697 = vmatprep.subr.mxu0 0.0
    %1698 = vmatpush1.msra.mxu0 0.0
    %1699 = vmatprep.subr.mxu0 0.0
    %1700 = vmatpush1.msra.mxu0 0.0
    %1701 = vmatprep.subr.mxu0 0.0
    %1702 = vmatpush1.msra.mxu0 0.0
    %1703 = vmatprep.subr.mxu0 0.0
    %1704 = vmatpush1.msra.mxu0 0.0
    %1705 = vmatprep.subr.mxu0 0.0
    %1706 = vmatpush1.msra.mxu0 0.0
    %1707 = vmatprep.subr.mxu0 0.0
    %1708 = vmatpush1.msra.mxu0 0.0
    %1709 = vmatprep.subr.mxu0 0.0
    %1710 = vmatpush1.msra.mxu0 0.0
    %1711 = vmatprep.subr.mxu0 0.0
    %1712 = vmatpush1.msra.mxu0 0.0
    %1713 = vmatprep.mubr.f32.mxu0 0.0
    %1714 = vmatmul.mubr.f32.gmra.mrb[0].mxu0 %v1280
    %v1715 = vpop.f32.mrb[0].mxu0
    %v1716 = vadd.f32 %v400, %v1715
    %v1717 = vpop.f32.mrb[0].mxu0
    %1718 = vdwg.mxu0
    %v1719 = vld [vmem:[%s662] sm:$0xff]
    %v1720 = vld [vmem:[%s662 + $0x8] sm:$0xff]
    %v1721 = vld [vmem:[%s662 + $0x10] sm:$0xff]
    %v1722 = vld [vmem:[%s662 + $0x18] sm:$0xff]
    %v1723 = vld [vmem:[%s662 + $0x20] sm:$0xff]
    %v1724 = vld [vmem:[%s662 + $0x28] sm:$0xff]
    %v1725 = vld [vmem:[%s662 + $0x30] sm:$0xff]
    %v1726 = vld [vmem:[%s662 + $0x38] sm:$0xff]
    %v1727 = vld [vmem:[%s662 + $0x40] sm:$0xff]
    %v1728 = vld [vmem:[%s662 + $0x48] sm:$0xff]
    %v1729 = vld [vmem:[%s662 + $0x50] sm:$0xff]
    %v1730 = vld [vmem:[%s662 + $0x58] sm:$0xff]
    %v1731 = vld [vmem:[%s662 + $0x60] sm:$0xff]
    %v1732 = vld [vmem:[%s662 + $0x68] sm:$0xff]
    %v1733 = vld [vmem:[%s662 + $0x70] sm:$0xff]
    %v1734 = vld [vmem:[%s662 + $0x78] sm:$0xff]
    %1735 = vmatprep.subr.mxu0 0.0
    %1736 = vmatpush1.msra.mxu0 %v1719
    %1737 = vmatprep.subr.mxu0 0.0
    %1738 = vmatpush1.msra.mxu0 %v1720
    %1739 = vmatprep.subr.mxu0 0.0
    %1740 = vmatpush1.msra.mxu0 %v1721
    %1741 = vmatprep.subr.mxu0 0.0
    %1742 = vmatpush1.msra.mxu0 %v1722
    %1743 = vmatprep.subr.mxu0 0.0
    %1744 = vmatpush1.msra.mxu0 %v1723
    %1745 = vmatprep.subr.mxu0 0.0
    %1746 = vmatpush1.msra.mxu0 %v1724
    %1747 = vmatprep.subr.mxu0 0.0
    %1748 = vmatpush1.msra.mxu0 %v1725
    %1749 = vmatprep.subr.mxu0 0.0
    %1750 = vmatpush1.msra.mxu0 %v1726
    %1751 = vmatprep.subr.mxu0 0.0
    %1752 = vmatpush1.msra.mxu0 %v1727
    %1753 = vmatprep.subr.mxu0 0.0
    %1754 = vmatpush1.msra.mxu0 %v1728
    %1755 = vmatprep.subr.mxu0 0.0
    %1756 = vmatpush1.msra.mxu0 %v1729
    %1757 = vmatprep.subr.mxu0 0.0
    %1758 = vmatpush1.msra.mxu0 %v1730
    %1759 = vmatprep.subr.mxu0 0.0
    %1760 = vmatpush1.msra.mxu0 %v1731
    %1761 = vmatprep.subr.mxu0 0.0
    %1762 = vmatpush1.msra.mxu0 %v1732
    %1763 = vmatprep.subr.mxu0 0.0
    %1764 = vmatpush1.msra.mxu0 %v1733
    %1765 = vmatprep.subr.mxu0 0.0
    %1766 = vmatpush1.msra.mxu0 %v1734
    %1767 = vmatprep.subr.mxu0 0.0
    %1768 = vmatpush1.msra.mxu0 0.0
    %1769 = vmatprep.subr.mxu0 0.0
    %1770 = vmatpush1.msra.mxu0 0.0
    %1771 = vmatprep.subr.mxu0 0.0
    %1772 = vmatpush1.msra.mxu0 0.0
    %1773 = vmatprep.subr.mxu0 0.0
    %1774 = vmatpush1.msra.mxu0 0.0
    %1775 = vmatprep.subr.mxu0 0.0
    %1776 = vmatpush1.msra.mxu0 0.0
    %1777 = vmatprep.subr.mxu0 0.0
    %1778 = vmatpush1.msra.mxu0 0.0
    %1779 = vmatprep.subr.mxu0 0.0
    %1780 = vmatpush1.msra.mxu0 0.0
    %1781 = vmatprep.subr.mxu0 0.0
    %1782 = vmatpush1.msra.mxu0 0.0
    %1783 = vmatprep.subr.mxu0 0.0
    %1784 = vmatpush1.msra.mxu0 0.0
    %1785 = vmatprep.subr.mxu0 0.0
    %1786 = vmatpush1.msra.mxu0 0.0
    %1787 = vmatprep.subr.mxu0 0.0
    %1788 = vmatpush1.msra.mxu0 0.0
    %1789 = vmatprep.subr.mxu0 0.0
    %1790 = vmatpush1.msra.mxu0 0.0
    %1791 = vmatprep.subr.mxu0 0.0
    %1792 = vmatpush1.msra.mxu0 0.0
    %1793 = vmatprep.subr.mxu0 0.0
    %1794 = vmatpush1.msra.mxu0 0.0
    %1795 = vmatprep.subr.mxu0 0.0
    %1796 = vmatpush1.msra.mxu0 0.0
    %1797 = vmatprep.subr.mxu0 0.0
    %1798 = vmatpush1.msra.mxu0 0.0
    %1799 = vmatprep.mubr.f32.mxu0 0.0
    %1800 = vmatmul.mubr.f32.gmra.mrb[0].mxu0 %v1454
    %v1801 = vpop.f32.mrb[0].mxu0
    %v1802 = vadd.f32 0.0, %v1801
    %v1803 = vpop.f32.mrb[0].mxu0
    %1804 = vdwg.mxu0
    %v1805 = vadd.f32 %v1716, %v1802
    %v1806 = vtanh.pop %v1805
    %v1807 = vmax.f32 %v1806, 0.0
    %v1808 = vld [vmem:[#allocation12] sm:$0xff]
    %v1809 = vld [vmem:[#allocation12 + $0x8] sm:$0xff]
    %v1810 = vld [vmem:[#allocation12 + $0x10] sm:$0xff]
    %v1811 = vld [vmem:[#allocation12 + $0x18] sm:$0xff]
    %v1812 = vld [vmem:[#allocation12 + $0x20] sm:$0xff]
    %v1813 = vld [vmem:[#allocation12 + $0x28] sm:$0xff]
    %v1814 = vld [vmem:[#allocation12 + $0x30] sm:$0xff]
    %v1815 = vld [vmem:[#allocation12 + $0x38] sm:$0xff]
    %v1816 = vld [vmem:[#allocation12 + $0x40] sm:$0xff]
    %v1817 = vld [vmem:[#allocation12 + $0x48] sm:$0xff]
    %v1818 = vld [vmem:[#allocation12 + $0x50] sm:$0xff]
    %v1819 = vld [vmem:[#allocation12 + $0x58] sm:$0xff]
    %v1820 = vld [vmem:[#allocation12 + $0x60] sm:$0xff]
    %v1821 = vld [vmem:[#allocation12 + $0x68] sm:$0xff]
    %v1822 = vld [vmem:[#allocation12 + $0x70] sm:$0xff]
    %v1823 = vld [vmem:[#allocation12 + $0x78] sm:$0xff]
    %1824 = vmatprep.subr.mxu0 0.0
    %1825 = vmatpush1.msra.mxu0 %v1808
    %1826 = vmatprep.subr.mxu0 0.0
    %1827 = vmatpush1.msra.mxu0 %v1809
    %1828 = vmatprep.subr.mxu0 0.0
    %1829 = vmatpush1.msra.mxu0 %v1810
    %1830 = vmatprep.subr.mxu0 0.0
    %1831 = vmatpush1.msra.mxu0 %v1811
    %1832 = vmatprep.subr.mxu0 0.0
    %1833 = vmatpush1.msra.mxu0 %v1812
    %1834 = vmatprep.subr.mxu0 0.0
    %1835 = vmatpush1.msra.mxu0 %v1813
    %1836 = vmatprep.subr.mxu0 0.0
    %1837 = vmatpush1.msra.mxu0 %v1814
    %1838 = vmatprep.subr.mxu0 0.0
    %1839 = vmatpush1.msra.mxu0 %v1815
    %1840 = vmatprep.subr.mxu0 0.0
    %1841 = vmatpush1.msra.mxu0 %v1816
    %1842 = vmatprep.subr.mxu0 0.0
    %1843 = vmatpush1.msra.mxu0 %v1817
    %1844 = vmatprep.subr.mxu0 0.0
    %1845 = vmatpush1.msra.mxu0 %v1818
    %1846 = vmatprep.subr.mxu0 0.0
    %1847 = vmatpush1.msra.mxu0 %v1819
    %1848 = vmatprep.subr.mxu0 0.0
    %1849 = vmatpush1.msra.mxu0 %v1820
    %1850 = vmatprep.subr.mxu0 0.0
    %1851 = vmatpush1.msra.mxu0 %v1821
    %1852 = vmatprep.subr.mxu0 0.0
    %1853 = vmatpush1.msra.mxu0 %v1822
    %1854 = vmatprep.subr.mxu0 0.0
    %1855 = vmatpush1.msra.mxu0 %v1823
    %1856 = vmatprep.subr.mxu0 0.0
    %1857 = vmatpush1.msra.mxu0 0.0
    %1858 = vmatprep.subr.mxu0 0.0
    %1859 = vmatpush1.msra.mxu0 0.0
    %1860 = vmatprep.subr.mxu0 0.0
    %1861 = vmatpush1.msra.mxu0 0.0
    %1862 = vmatprep.subr.mxu0 0.0
    %1863 = vmatpush1.msra.mxu0 0.0
    %1864 = vmatprep.subr.mxu0 0.0
    %1865 = vmatpush1.msra.mxu0 0.0
    %1866 = vmatprep.subr.mxu0 0.0
    %1867 = vmatpush1.msra.mxu0 0.0
    %1868 = vmatprep.subr.mxu0 0.0
    %1869 = vmatpush1.msra.mxu0 0.0
    %1870 = vmatprep.subr.mxu0 0.0
    %1871 = vmatpush1.msra.mxu0 0.0
    %1872 = vmatprep.subr.mxu0 0.0
    %1873 = vmatpush1.msra.mxu0 0.0
    %1874 = vmatprep.subr.mxu0 0.0
    %1875 = vmatpush1.msra.mxu0 0.0
    %1876 = vmatprep.subr.mxu0 0.0
    %1877 = vmatpush1.msra.mxu0 0.0
    %1878 = vmatprep.subr.mxu0 0.0
    %1879 = vmatpush1.msra.mxu0 0.0
    %1880 = vmatprep.subr.mxu0 0.0
    %1881 = vmatpush1.msra.mxu0 0.0
    %1882 = vmatprep.subr.mxu0 0.0
    %1883 = vmatpush1.msra.mxu0 0.0
    %1884 = vmatprep.subr.mxu0 0.0
    %1885 = vmatpush1.msra.mxu0 0.0
    %1886 = vmatprep.subr.mxu0 0.0
    %1887 = vmatpush1.msra.mxu0 0.0
    %1888 = vmatprep.mubr.f32.mxu0 0.0
    %1889 = vmatmul.mubr.f32.gmra.mrb[0].mxu0 %v1807
    %v1890 = vpop.f32.mrb[0].mxu0
    %v1891 = vadd.f32 %v406, %v1890
    %v1892 = vpop.f32.mrb[0].mxu0
    %1893 = vdwg.mxu0
    %1894 = vst [vmem:[#allocation14 + $0x18] sm:$0xff] %v1891
    %v1895 = vld [vmem:[#allocation2 + $0x28] sm:$0xff]
    %v1896 = vadd.f32 %v1895, %v395
    %v1897 = vld [vmem:[#allocation11] sm:$0xff]
    %v1898 = vld [vmem:[#allocation11 + $0x8] sm:$0xff]
    %v1899 = vld [vmem:[#allocation11 + $0x10] sm:$0xff]
    %v1900 = vld [vmem:[#allocation11 + $0x18] sm:$0xff]
    %v1901 = vld [vmem:[#allocation11 + $0x20] sm:$0xff]
    %v1902 = vld [vmem:[#allocation11 + $0x28] sm:$0xff]
    %v1903 = vld [vmem:[#allocation11 + $0x30] sm:$0xff]
    %v1904 = vld [vmem:[#allocation11 + $0x38] sm:$0xff]
    %v1905 = vld [vmem:[#allocation11 + $0x40] sm:$0xff]
    %v1906 = vld [vmem:[#allocation11 + $0x48] sm:$0xff]
    %v1907 = vld [vmem:[#allocation11 + $0x50] sm:$0xff]
    %v1908 = vld [vmem:[#allocation11 + $0x58] sm:$0xff]
    %v1909 = vld [vmem:[#allocation11 + $0x60] sm:$0xff]
    %v1910 = vld [vmem:[#allocation11 + $0x68] sm:$0xff]
    %v1911 = vld [vmem:[#allocation11 + $0x70] sm:$0xff]
    %v1912 = vld [vmem:[#allocation11 + $0x78] sm:$0xff]
    %1913 = vmatprep.subr.mxu0 0.0
    %1914 = vmatpush1.msra.mxu0 %v1897
    %1915 = vmatprep.subr.mxu0 0.0
    %1916 = vmatpush1.msra.mxu0 %v1898
    %1917 = vmatprep.subr.mxu0 0.0
    %1918 = vmatpush1.msra.mxu0 %v1899
    %1919 = vmatprep.subr.mxu0 0.0
    %1920 = vmatpush1.msra.mxu0 %v1900
    %1921 = vmatprep.subr.mxu0 0.0
    %1922 = vmatpush1.msra.mxu0 %v1901
    %1923 = vmatprep.subr.mxu0 0.0
    %1924 = vmatpush1.msra.mxu0 %v1902
    %1925 = vmatprep.subr.mxu0 0.0
    %1926 = vmatpush1.msra.mxu0 %v1903
    %1927 = vmatprep.subr.mxu0 0.0
    %1928 = vmatpush1.msra.mxu0 %v1904
    %1929 = vmatprep.subr.mxu0 0.0
    %1930 = vmatpush1.msra.mxu0 %v1905
    %1931 = vmatprep.subr.mxu0 0.0
    %1932 = vmatpush1.msra.mxu0 %v1906
    %1933 = vmatprep.subr.mxu0 0.0
    %1934 = vmatpush1.msra.mxu0 %v1907
    %1935 = vmatprep.subr.mxu0 0.0
    %1936 = vmatpush1.msra.mxu0 %v1908
    %1937 = vmatprep.subr.mxu0 0.0
    %1938 = vmatpush1.msra.mxu0 %v1909
    %1939 = vmatprep.subr.mxu0 0.0
    %1940 = vmatpush1.msra.mxu0 %v1910
    %1941 = vmatprep.subr.mxu0 0.0
    %1942 = vmatpush1.msra.mxu0 %v1911
    %1943 = vmatprep.subr.mxu0 0.0
    %1944 = vmatpush1.msra.mxu0 %v1912
    %1945 = vmatprep.subr.mxu0 0.0
    %1946 = vmatpush1.msra.mxu0 0.0
    %1947 = vmatprep.subr.mxu0 0.0
    %1948 = vmatpush1.msra.mxu0 0.0
    %1949 = vmatprep.subr.mxu0 0.0
    %1950 = vmatpush1.msra.mxu0 0.0
    %1951 = vmatprep.subr.mxu0 0.0
    %1952 = vmatpush1.msra.mxu0 0.0
    %1953 = vmatprep.subr.mxu0 0.0
    %1954 = vmatpush1.msra.mxu0 0.0
    %1955 = vmatprep.subr.mxu0 0.0
    %1956 = vmatpush1.msra.mxu0 0.0
    %1957 = vmatprep.subr.mxu0 0.0
    %1958 = vmatpush1.msra.mxu0 0.0
    %1959 = vmatprep.subr.mxu0 0.0
    %1960 = vmatpush1.msra.mxu0 0.0
    %1961 = vmatprep.subr.mxu0 0.0
    %1962 = vmatpush1.msra.mxu0 0.0
    %1963 = vmatprep.subr.mxu0 0.0
    %1964 = vmatpush1.msra.mxu0 0.0
    %1965 = vmatprep.subr.mxu0 0.0
    %1966 = vmatpush1.msra.mxu0 0.0
    %1967 = vmatprep.subr.mxu0 0.0
    %1968 = vmatpush1.msra.mxu0 0.0
    %1969 = vmatprep.subr.mxu0 0.0
    %1970 = vmatpush1.msra.mxu0 0.0
    %1971 = vmatprep.subr.mxu0 0.0
    %1972 = vmatpush1.msra.mxu0 0.0
    %1973 = vmatprep.subr.mxu0 0.0
    %1974 = vmatpush1.msra.mxu0 0.0
    %1975 = vmatprep.subr.mxu0 0.0
    %1976 = vmatpush1.msra.mxu0 0.0
    %1977 = vmatprep.mubr.f32.mxu0 0.0
    %1978 = vmatmul.mubr.f32.gmra.mrb[0].mxu0 %v1632
    %v1979 = vpop.f32.mrb[0].mxu0
    %v1980 = vadd.f32 0.0, %v1979
    %v1981 = vpop.f32.mrb[0].mxu0
    %1982 = vdwg.mxu0
    %v1983 = vadd.f32 %v1896, %v1980
    %v1984 = vtanh.pop %v1983
    %v1985 = vld [vmem:[%s575] sm:$0xff]
    %v1986 = vld [vmem:[%s575 + $0x8] sm:$0xff]
    %v1987 = vld [vmem:[%s575 + $0x10] sm:$0xff]
    %v1988 = vld [vmem:[%s575 + $0x18] sm:$0xff]
    %v1989 = vld [vmem:[%s575 + $0x20] sm:$0xff]
    %v1990 = vld [vmem:[%s575 + $0x28] sm:$0xff]
    %v1991 = vld [vmem:[%s575 + $0x30] sm:$0xff]
    %v1992 = vld [vmem:[%s575 + $0x38] sm:$0xff]
    %v1993 = vld [vmem:[%s575 + $0x40] sm:$0xff]
    %v1994 = vld [vmem:[%s575 + $0x48] sm:$0xff]
    %v1995 = vld [vmem:[%s575 + $0x50] sm:$0xff]
    %v1996 = vld [vmem:[%s575 + $0x58] sm:$0xff]
    %v1997 = vld [vmem:[%s575 + $0x60] sm:$0xff]
    %v1998 = vld [vmem:[%s575 + $0x68] sm:$0xff]
    %v1999 = vld [vmem:[%s575 + $0x70] sm:$0xff]
    %v2000 = vld [vmem:[%s575 + $0x78] sm:$0xff]
    %2001 = vmatprep.subr.mxu0 0.0
    %2002 = vmatpush1.msra.mxu0 %v1985
    %2003 = vmatprep.subr.mxu0 0.0
    %2004 = vmatpush1.msra.mxu0 %v1986
    %2005 = vmatprep.subr.mxu0 0.0
    %2006 = vmatpush1.msra.mxu0 %v1987
    %2007 = vmatprep.subr.mxu0 0.0
    %2008 = vmatpush1.msra.mxu0 %v1988
    %2009 = vmatprep.subr.mxu0 0.0
    %2010 = vmatpush1.msra.mxu0 %v1989
    %2011 = vmatprep.subr.mxu0 0.0
    %2012 = vmatpush1.msra.mxu0 %v1990
    %2013 = vmatprep.subr.mxu0 0.0
    %2014 = vmatpush1.msra.mxu0 %v1991
    %2015 = vmatprep.subr.mxu0 0.0
    %2016 = vmatpush1.msra.mxu0 %v1992
    %2017 = vmatprep.subr.mxu0 0.0
    %2018 = vmatpush1.msra.mxu0 %v1993
    %2019 = vmatprep.subr.mxu0 0.0
    %2020 = vmatpush1.msra.mxu0 %v1994
    %2021 = vmatprep.subr.mxu0 0.0
    %2022 = vmatpush1.msra.mxu0 %v1995
    %2023 = vmatprep.subr.mxu0 0.0
    %2024 = vmatpush1.msra.mxu0 %v1996
    %2025 = vmatprep.subr.mxu0 0.0
    %2026 = vmatpush1.msra.mxu0 %v1997
    %2027 = vmatprep.subr.mxu0 0.0
    %2028 = vmatpush1.msra.mxu0 %v1998
    %2029 = vmatprep.subr.mxu0 0.0
    %2030 = vmatpush1.msra.mxu0 %v1999
    %2031 = vmatprep.subr.mxu0 0.0
    %2032 = vmatpush1.msra.mxu0 %v2000
    %2033 = vmatprep.subr.mxu0 0.0
    %2034 = vmatpush1.msra.mxu0 0.0
    %2035 = vmatprep.subr.mxu0 0.0
    %2036 = vmatpush1.msra.mxu0 0.0
    %2037 = vmatprep.subr.mxu0 0.0
    %2038 = vmatpush1.msra.mxu0 0.0
    %2039 = vmatprep.subr.mxu0 0.0
    %2040 = vmatpush1.msra.mxu0 0.0
    %2041 = vmatprep.subr.mxu0 0.0
    %2042 = vmatpush1.msra.mxu0 0.0
    %2043 = vmatprep.subr.mxu0 0.0
    %2044 = vmatpush1.msra.mxu0 0.0
    %2045 = vmatprep.subr.mxu0 0.0
    %2046 = vmatpush1.msra.mxu0 0.0
    %2047 = vmatprep.subr.mxu0 0.0
    %2048 = vmatpush1.msra.mxu0 0.0
    %2049 = vmatprep.subr.mxu0 0.0
    %2050 = vmatpush1.msra.mxu0 0.0
    %2051 = vmatprep.subr.mxu0 0.0
    %2052 = vmatpush1.msra.mxu0 0.0
    %2053 = vmatprep.subr.mxu0 0.0
    %2054 = vmatpush1.msra.mxu0 0.0
    %2055 = vmatprep.subr.mxu0 0.0
    %2056 = vmatpush1.msra.mxu0 0.0
    %2057 = vmatprep.subr.mxu0 0.0
    %2058 = vmatpush1.msra.mxu0 0.0
    %2059 = vmatprep.subr.mxu0 0.0
    %2060 = vmatpush1.msra.mxu0 0.0
    %2061 = vmatprep.subr.mxu0 0.0
    %2062 = vmatpush1.msra.mxu0 0.0
    %2063 = vmatprep.subr.mxu0 0.0
    %2064 = vmatpush1.msra.mxu0 0.0
    %2065 = vmatprep.mubr.f32.mxu0 0.0
    %2066 = vmatmul.mubr.f32.gmra.mrb[0].mxu0 %v1632
    %v2067 = vpop.f32.mrb[0].mxu0
    %v2068 = vadd.f32 %v400, %v2067
    %v2069 = vpop.f32.mrb[0].mxu0
    %2070 = vdwg.mxu0
    %v2071 = vld [vmem:[%s662] sm:$0xff]
    %v2072 = vld [vmem:[%s662 + $0x8] sm:$0xff]
    %v2073 = vld [vmem:[%s662 + $0x10] sm:$0xff]
    %v2074 = vld [vmem:[%s662 + $0x18] sm:$0xff]
    %v2075 = vld [vmem:[%s662 + $0x20] sm:$0xff]
    %v2076 = vld [vmem:[%s662 + $0x28] sm:$0xff]
    %v2077 = vld [vmem:[%s662 + $0x30] sm:$0xff]
    %v2078 = vld [vmem:[%s662 + $0x38] sm:$0xff]
    %v2079 = vld [vmem:[%s662 + $0x40] sm:$0xff]
    %v2080 = vld [vmem:[%s662 + $0x48] sm:$0xff]
    %v2081 = vld [vmem:[%s662 + $0x50] sm:$0xff]
    %v2082 = vld [vmem:[%s662 + $0x58] sm:$0xff]
    %v2083 = vld [vmem:[%s662 + $0x60] sm:$0xff]
    %v2084 = vld [vmem:[%s662 + $0x68] sm:$0xff]
    %v2085 = vld [vmem:[%s662 + $0x70] sm:$0xff]
    %v2086 = vld [vmem:[%s662 + $0x78] sm:$0xff]
    %2087 = vmatprep.subr.mxu0 0.0
    %2088 = vmatpush1.msra.mxu0 %v2071
    %2089 = vmatprep.subr.mxu0 0.0
    %2090 = vmatpush1.msra.mxu0 %v2072
    %2091 = vmatprep.subr.mxu0 0.0
    %2092 = vmatpush1.msra.mxu0 %v2073
    %2093 = vmatprep.subr.mxu0 0.0
    %2094 = vmatpush1.msra.mxu0 %v2074
    %2095 = vmatprep.subr.mxu0 0.0
    %2096 = vmatpush1.msra.mxu0 %v2075
    %2097 = vmatprep.subr.mxu0 0.0
    %2098 = vmatpush1.msra.mxu0 %v2076
    %2099 = vmatprep.subr.mxu0 0.0
    %2100 = vmatpush1.msra.mxu0 %v2077
    %2101 = vmatprep.subr.mxu0 0.0
    %2102 = vmatpush1.msra.mxu0 %v2078
    %2103 = vmatprep.subr.mxu0 0.0
    %2104 = vmatpush1.msra.mxu0 %v2079
    %2105 = vmatprep.subr.mxu0 0.0
    %2106 = vmatpush1.msra.mxu0 %v2080
    %2107 = vmatprep.subr.mxu0 0.0
    %2108 = vmatpush1.msra.mxu0 %v2081
    %2109 = vmatprep.subr.mxu0 0.0
    %2110 = vmatpush1.msra.mxu0 %v2082
    %2111 = vmatprep.subr.mxu0 0.0
    %2112 = vmatpush1.msra.mxu0 %v2083
    %2113 = vmatprep.subr.mxu0 0.0
    %2114 = vmatpush1.msra.mxu0 %v2084
    %2115 = vmatprep.subr.mxu0 0.0
    %2116 = vmatpush1.msra.mxu0 %v2085
    %2117 = vmatprep.subr.mxu0 0.0
    %2118 = vmatpush1.msra.mxu0 %v2086
    %2119 = vmatprep.subr.mxu0 0.0
    %2120 = vmatpush1.msra.mxu0 0.0
    %2121 = vmatprep.subr.mxu0 0.0
    %2122 = vmatpush1.msra.mxu0 0.0
    %2123 = vmatprep.subr.mxu0 0.0
    %2124 = vmatpush1.msra.mxu0 0.0
    %2125 = vmatprep.subr.mxu0 0.0
    %2126 = vmatpush1.msra.mxu0 0.0
    %2127 = vmatprep.subr.mxu0 0.0
    %2128 = vmatpush1.msra.mxu0 0.0
    %2129 = vmatprep.subr.mxu0 0.0
    %2130 = vmatpush1.msra.mxu0 0.0
    %2131 = vmatprep.subr.mxu0 0.0
    %2132 = vmatpush1.msra.mxu0 0.0
    %2133 = vmatprep.subr.mxu0 0.0
    %2134 = vmatpush1.msra.mxu0 0.0
    %2135 = vmatprep.subr.mxu0 0.0
    %2136 = vmatpush1.msra.mxu0 0.0
    %2137 = vmatprep.subr.mxu0 0.0
    %2138 = vmatpush1.msra.mxu0 0.0
    %2139 = vmatprep.subr.mxu0 0.0
    %2140 = vmatpush1.msra.mxu0 0.0
    %2141 = vmatprep.subr.mxu0 0.0
    %2142 = vmatpush1.msra.mxu0 0.0
    %2143 = vmatprep.subr.mxu0 0.0
    %2144 = vmatpush1.msra.mxu0 0.0
    %2145 = vmatprep.subr.mxu0 0.0
    %2146 = vmatpush1.msra.mxu0 0.0
    %2147 = vmatprep.subr.mxu0 0.0
    %2148 = vmatpush1.msra.mxu0 0.0
    %2149 = vmatprep.subr.mxu0 0.0
    %2150 = vmatpush1.msra.mxu0 0.0
    %2151 = vmatprep.mubr.f32.mxu0 0.0
    %2152 = vmatmul.mubr.f32.gmra.mrb[0].mxu0 %v1806
    %v2153 = vpop.f32.mrb[0].mxu0
    %v2154 = vadd.f32 0.0, %v2153
    %v2155 = vpop.f32.mrb[0].mxu0
    %2156 = vdwg.mxu0
    %v2157 = vadd.f32 %v2068, %v2154
    %v2158 = vtanh.pop %v2157
    %v2159 = vmax.f32 %v2158, 0.0
    %v2160 = vld [vmem:[#allocation12] sm:$0xff]
    %v2161 = vld [vmem:[#allocation12 + $0x8] sm:$0xff]
    %v2162 = vld [vmem:[#allocation12 + $0x10] sm:$0xff]
    %v2163 = vld [vmem:[#allocation12 + $0x18] sm:$0xff]
    %v2164 = vld [vmem:[#allocation12 + $0x20] sm:$0xff]
    %v2165 = vld [vmem:[#allocation12 + $0x28] sm:$0xff]
    %v2166 = vld [vmem:[#allocation12 + $0x30] sm:$0xff]
    %v2167 = vld [vmem:[#allocation12 + $0x38] sm:$0xff]
    %v2168 = vld [vmem:[#allocation12 + $0x40] sm:$0xff]
    %v2169 = vld [vmem:[#allocation12 + $0x48] sm:$0xff]
    %v2170 = vld [vmem:[#allocation12 + $0x50] sm:$0xff]
    %v2171 = vld [vmem:[#allocation12 + $0x58] sm:$0xff]
    %v2172 = vld [vmem:[#allocation12 + $0x60] sm:$0xff]
    %v2173 = vld [vmem:[#allocation12 + $0x68] sm:$0xff]
    %v2174 = vld [vmem:[#allocation12 + $0x70] sm:$0xff]
    %v2175 = vld [vmem:[#allocation12 + $0x78] sm:$0xff]
    %2176 = vmatprep.subr.mxu0 0.0
    %2177 = vmatpush1.msra.mxu0 %v2160
    %2178 = vmatprep.subr.mxu0 0.0
    %2179 = vmatpush1.msra.mxu0 %v2161
    %2180 = vmatprep.subr.mxu0 0.0
    %2181 = vmatpush1.msra.mxu0 %v2162
    %2182 = vmatprep.subr.mxu0 0.0
    %2183 = vmatpush1.msra.mxu0 %v2163
    %2184 = vmatprep.subr.mxu0 0.0
    %2185 = vmatpush1.msra.mxu0 %v2164
    %2186 = vmatprep.subr.mxu0 0.0
    %2187 = vmatpush1.msra.mxu0 %v2165
    %2188 = vmatprep.subr.mxu0 0.0
    %2189 = vmatpush1.msra.mxu0 %v2166
    %2190 = vmatprep.subr.mxu0 0.0
    %2191 = vmatpush1.msra.mxu0 %v2167
    %2192 = vmatprep.subr.mxu0 0.0
    %2193 = vmatpush1.msra.mxu0 %v2168
    %2194 = vmatprep.subr.mxu0 0.0
    %2195 = vmatpush1.msra.mxu0 %v2169
    %2196 = vmatprep.subr.mxu0 0.0
    %2197 = vmatpush1.msra.mxu0 %v2170
    %2198 = vmatprep.subr.mxu0 0.0
    %2199 = vmatpush1.msra.mxu0 %v2171
    %2200 = vmatprep.subr.mxu0 0.0
    %2201 = vmatpush1.msra.mxu0 %v2172
    %2202 = vmatprep.subr.mxu0 0.0
    %2203 = vmatpush1.msra.mxu0 %v2173
    %2204 = vmatprep.subr.mxu0 0.0
    %2205 = vmatpush1.msra.mxu0 %v2174
    %2206 = vmatprep.subr.mxu0 0.0
    %2207 = vmatpush1.msra.mxu0 %v2175
    %2208 = vmatprep.subr.mxu0 0.0
    %2209 = vmatpush1.msra.mxu0 0.0
    %2210 = vmatprep.subr.mxu0 0.0
    %2211 = vmatpush1.msra.mxu0 0.0
    %2212 = vmatprep.subr.mxu0 0.0
    %2213 = vmatpush1.msra.mxu0 0.0
    %2214 = vmatprep.subr.mxu0 0.0
    %2215 = vmatpush1.msra.mxu0 0.0
    %2216 = vmatprep.subr.mxu0 0.0
    %2217 = vmatpush1.msra.mxu0 0.0
    %2218 = vmatprep.subr.mxu0 0.0
    %2219 = vmatpush1.msra.mxu0 0.0
    %2220 = vmatprep.subr.mxu0 0.0
    %2221 = vmatpush1.msra.mxu0 0.0
    %2222 = vmatprep.subr.mxu0 0.0
    %2223 = vmatpush1.msra.mxu0 0.0
    %2224 = vmatprep.subr.mxu0 0.0
    %2225 = vmatpush1.msra.mxu0 0.0
    %2226 = vmatprep.subr.mxu0 0.0
    %2227 = vmatpush1.msra.mxu0 0.0
    %2228 = vmatprep.subr.mxu0 0.0
    %2229 = vmatpush1.msra.mxu0 0.0
    %2230 = vmatprep.subr.mxu0 0.0
    %2231 = vmatpush1.msra.mxu0 0.0
    %2232 = vmatprep.subr.mxu0 0.0
    %2233 = vmatpush1.msra.mxu0 0.0
    %2234 = vmatprep.subr.mxu0 0.0
    %2235 = vmatpush1.msra.mxu0 0.0
    %2236 = vmatprep.subr.mxu0 0.0
    %2237 = vmatpush1.msra.mxu0 0.0
    %2238 = vmatprep.subr.mxu0 0.0
    %2239 = vmatpush1.msra.mxu0 0.0
    %2240 = vmatprep.mubr.f32.mxu0 0.0
    %2241 = vmatmul.mubr.f32.gmra.mrb[0].mxu0 %v2159
    %v2242 = vpop.f32.mrb[0].mxu0
    %v2243 = vadd.f32 %v406, %v2242
    %v2244 = vpop.f32.mrb[0].mxu0
    %2245 = vdwg.mxu0
    %2246 = vst [vmem:[#allocation14 + $0x20] sm:$0xff] %v2243
    %v2247 = vld [vmem:[#allocation2 + $0x30] sm:$0xff]
    %v2248 = vadd.f32 %v2247, %v395
    %v2249 = vld [vmem:[#allocation11] sm:$0xff]
    %v2250 = vld [vmem:[#allocation11 + $0x8] sm:$0xff]
    %v2251 = vld [vmem:[#allocation11 + $0x10] sm:$0xff]
    %v2252 = vld [vmem:[#allocation11 + $0x18] sm:$0xff]
    %v2253 = vld [vmem:[#allocation11 + $0x20] sm:$0xff]
    %v2254 = vld [vmem:[#allocation11 + $0x28] sm:$0xff]
    %v2255 = vld [vmem:[#allocation11 + $0x30] sm:$0xff]
    %v2256 = vld [vmem:[#allocation11 + $0x38] sm:$0xff]
    %v2257 = vld [vmem:[#allocation11 + $0x40] sm:$0xff]
    %v2258 = vld [vmem:[#allocation11 + $0x48] sm:$0xff]
    %v2259 = vld [vmem:[#allocation11 + $0x50] sm:$0xff]
    %v2260 = vld [vmem:[#allocation11 + $0x58] sm:$0xff]
    %v2261 = vld [vmem:[#allocation11 + $0x60] sm:$0xff]
    %v2262 = vld [vmem:[#allocation11 + $0x68] sm:$0xff]
    %v2263 = vld [vmem:[#allocation11 + $0x70] sm:$0xff]
    %v2264 = vld [vmem:[#allocation11 + $0x78] sm:$0xff]
    %2265 = vmatprep.subr.mxu0 0.0
    %2266 = vmatpush1.msra.mxu0 %v2249
    %2267 = vmatprep.subr.mxu0 0.0
    %2268 = vmatpush1.msra.mxu0 %v2250
    %2269 = vmatprep.subr.mxu0 0.0
    %2270 = vmatpush1.msra.mxu0 %v2251
    %2271 = vmatprep.subr.mxu0 0.0
    %2272 = vmatpush1.msra.mxu0 %v2252
    %2273 = vmatprep.subr.mxu0 0.0
    %2274 = vmatpush1.msra.mxu0 %v2253
    %2275 = vmatprep.subr.mxu0 0.0
    %2276 = vmatpush1.msra.mxu0 %v2254
    %2277 = vmatprep.subr.mxu0 0.0
    %2278 = vmatpush1.msra.mxu0 %v2255
    %2279 = vmatprep.subr.mxu0 0.0
    %2280 = vmatpush1.msra.mxu0 %v2256
    %2281 = vmatprep.subr.mxu0 0.0
    %2282 = vmatpush1.msra.mxu0 %v2257
    %2283 = vmatprep.subr.mxu0 0.0
    %2284 = vmatpush1.msra.mxu0 %v2258
    %2285 = vmatprep.subr.mxu0 0.0
    %2286 = vmatpush1.msra.mxu0 %v2259
    %2287 = vmatprep.subr.mxu0 0.0
    %2288 = vmatpush1.msra.mxu0 %v2260
    %2289 = vmatprep.subr.mxu0 0.0
    %2290 = vmatpush1.msra.mxu0 %v2261
    %2291 = vmatprep.subr.mxu0 0.0
    %2292 = vmatpush1.msra.mxu0 %v2262
    %2293 = vmatprep.subr.mxu0 0.0
    %2294 = vmatpush1.msra.mxu0 %v2263
    %2295 = vmatprep.subr.mxu0 0.0
    %2296 = vmatpush1.msra.mxu0 %v2264
    %2297 = vmatprep.subr.mxu0 0.0
    %2298 = vmatpush1.msra.mxu0 0.0
    %2299 = vmatprep.subr.mxu0 0.0
    %2300 = vmatpush1.msra.mxu0 0.0
    %2301 = vmatprep.subr.mxu0 0.0
    %2302 = vmatpush1.msra.mxu0 0.0
    %2303 = vmatprep.subr.mxu0 0.0
    %2304 = vmatpush1.msra.mxu0 0.0
    %2305 = vmatprep.subr.mxu0 0.0
    %2306 = vmatpush1.msra.mxu0 0.0
    %2307 = vmatprep.subr.mxu0 0.0
    %2308 = vmatpush1.msra.mxu0 0.0
    %2309 = vmatprep.subr.mxu0 0.0
    %2310 = vmatpush1.msra.mxu0 0.0
    %2311 = vmatprep.subr.mxu0 0.0
    %2312 = vmatpush1.msra.mxu0 0.0
    %2313 = vmatprep.subr.mxu0 0.0
    %2314 = vmatpush1.msra.mxu0 0.0
    %2315 = vmatprep.subr.mxu0 0.0
    %2316 = vmatpush1.msra.mxu0 0.0
    %2317 = vmatprep.subr.mxu0 0.0
    %2318 = vmatpush1.msra.mxu0 0.0
    %2319 = vmatprep.subr.mxu0 0.0
    %2320 = vmatpush1.msra.mxu0 0.0
    %2321 = vmatprep.subr.mxu0 0.0
    %2322 = vmatpush1.msra.mxu0 0.0
    %2323 = vmatprep.subr.mxu0 0.0
    %2324 = vmatpush1.msra.mxu0 0.0
    %2325 = vmatprep.subr.mxu0 0.0
    %2326 = vmatpush1.msra.mxu0 0.0
    %2327 = vmatprep.subr.mxu0 0.0
    %2328 = vmatpush1.msra.mxu0 0.0
    %2329 = vmatprep.mubr.f32.mxu0 0.0
    %2330 = vmatmul.mubr.f32.gmra.mrb[0].mxu0 %v1984
    %v2331 = vpop.f32.mrb[0].mxu0
    %v2332 = vadd.f32 0.0, %v2331
    %v2333 = vpop.f32.mrb[0].mxu0
    %2334 = vdwg.mxu0
    %v2335 = vadd.f32 %v2248, %v2332
    %v2336 = vtanh.pop %v2335
    %v2337 = vld [vmem:[%s575] sm:$0xff]
    %v2338 = vld [vmem:[%s575 + $0x8] sm:$0xff]
    %v2339 = vld [vmem:[%s575 + $0x10] sm:$0xff]
    %v2340 = vld [vmem:[%s575 + $0x18] sm:$0xff]
    %v2341 = vld [vmem:[%s575 + $0x20] sm:$0xff]
    %v2342 = vld [vmem:[%s575 + $0x28] sm:$0xff]
    %v2343 = vld [vmem:[%s575 + $0x30] sm:$0xff]
    %v2344 = vld [vmem:[%s575 + $0x38] sm:$0xff]
    %v2345 = vld [vmem:[%s575 + $0x40] sm:$0xff]
    %v2346 = vld [vmem:[%s575 + $0x48] sm:$0xff]
    %v2347 = vld [vmem:[%s575 + $0x50] sm:$0xff]
    %v2348 = vld [vmem:[%s575 + $0x58] sm:$0xff]
    %v2349 = vld [vmem:[%s575 + $0x60] sm:$0xff]
    %v2350 = vld [vmem:[%s575 + $0x68] sm:$0xff]
    %v2351 = vld [vmem:[%s575 + $0x70] sm:$0xff]
    %v2352 = vld [vmem:[%s575 + $0x78] sm:$0xff]
    %2353 = vmatprep.subr.mxu0 0.0
    %2354 = vmatpush1.msra.mxu0 %v2337
    %2355 = vmatprep.subr.mxu0 0.0
    %2356 = vmatpush1.msra.mxu0 %v2338
    %2357 = vmatprep.subr.mxu0 0.0
    %2358 = vmatpush1.msra.mxu0 %v2339
    %2359 = vmatprep.subr.mxu0 0.0
    %2360 = vmatpush1.msra.mxu0 %v2340
    %2361 = vmatprep.subr.mxu0 0.0
    %2362 = vmatpush1.msra.mxu0 %v2341
    %2363 = vmatprep.subr.mxu0 0.0
    %2364 = vmatpush1.msra.mxu0 %v2342
    %2365 = vmatprep.subr.mxu0 0.0
    %2366 = vmatpush1.msra.mxu0 %v2343
    %2367 = vmatprep.subr.mxu0 0.0
    %2368 = vmatpush1.msra.mxu0 %v2344
    %2369 = vmatprep.subr.mxu0 0.0
    %2370 = vmatpush1.msra.mxu0 %v2345
    %2371 = vmatprep.subr.mxu0 0.0
    %2372 = vmatpush1.msra.mxu0 %v2346
    %2373 = vmatprep.subr.mxu0 0.0
    %2374 = vmatpush1.msra.mxu0 %v2347
    %2375 = vmatprep.subr.mxu0 0.0
    %2376 = vmatpush1.msra.mxu0 %v2348
    %2377 = vmatprep.subr.mxu0 0.0
    %2378 = vmatpush1.msra.mxu0 %v2349
    %2379 = vmatprep.subr.mxu0 0.0
    %2380 = vmatpush1.msra.mxu0 %v2350
    %2381 = vmatprep.subr.mxu0 0.0
    %2382 = vmatpush1.msra.mxu0 %v2351
    %2383 = vmatprep.subr.mxu0 0.0
    %2384 = vmatpush1.msra.mxu0 %v2352
    %2385 = vmatprep.subr.mxu0 0.0
    %2386 = vmatpush1.msra.mxu0 0.0
    %2387 = vmatprep.subr.mxu0 0.0
    %2388 = vmatpush1.msra.mxu0 0.0
    %2389 = vmatprep.subr.mxu0 0.0
    %2390 = vmatpush1.msra.mxu0 0.0
    %2391 = vmatprep.subr.mxu0 0.0
    %2392 = vmatpush1.msra.mxu0 0.0
    %2393 = vmatprep.subr.mxu0 0.0
    %2394 = vmatpush1.msra.mxu0 0.0
    %2395 = vmatprep.subr.mxu0 0.0
    %2396 = vmatpush1.msra.mxu0 0.0
    %2397 = vmatprep.subr.mxu0 0.0
    %2398 = vmatpush1.msra.mxu0 0.0
    %2399 = vmatprep.subr.mxu0 0.0
    %2400 = vmatpush1.msra.mxu0 0.0
    %2401 = vmatprep.subr.mxu0 0.0
    %2402 = vmatpush1.msra.mxu0 0.0
    %2403 = vmatprep.subr.mxu0 0.0
    %2404 = vmatpush1.msra.mxu0 0.0
    %2405 = vmatprep.subr.mxu0 0.0
    %2406 = vmatpush1.msra.mxu0 0.0
    %2407 = vmatprep.subr.mxu0 0.0
    %2408 = vmatpush1.msra.mxu0 0.0
    %2409 = vmatprep.subr.mxu0 0.0
    %2410 = vmatpush1.msra.mxu0 0.0
    %2411 = vmatprep.subr.mxu0 0.0
    %2412 = vmatpush1.msra.mxu0 0.0
    %2413 = vmatprep.subr.mxu0 0.0
    %2414 = vmatpush1.msra.mxu0 0.0
    %2415 = vmatprep.subr.mxu0 0.0
    %2416 = vmatpush1.msra.mxu0 0.0
    %2417 = vmatprep.mubr.f32.mxu0 0.0
    %2418 = vmatmul.mubr.f32.gmra.mrb[0].mxu0 %v1984
    %v2419 = vpop.f32.mrb[0].mxu0
    %v2420 = vadd.f32 %v400, %v2419
    %v2421 = vpop.f32.mrb[0].mxu0
    %2422 = vdwg.mxu0
    %v2423 = vld [vmem:[%s662] sm:$0xff]
    %v2424 = vld [vmem:[%s662 + $0x8] sm:$0xff]
    %v2425 = vld [vmem:[%s662 + $0x10] sm:$0xff]
    %v2426 = vld [vmem:[%s662 + $0x18] sm:$0xff]
    %v2427 = vld [vmem:[%s662 + $0x20] sm:$0xff]
    %v2428 = vld [vmem:[%s662 + $0x28] sm:$0xff]
    %v2429 = vld [vmem:[%s662 + $0x30] sm:$0xff]
    %v2430 = vld [vmem:[%s662 + $0x38] sm:$0xff]
    %v2431 = vld [vmem:[%s662 + $0x40] sm:$0xff]
    %v2432 = vld [vmem:[%s662 + $0x48] sm:$0xff]
    %v2433 = vld [vmem:[%s662 + $0x50] sm:$0xff]
    %v2434 = vld [vmem:[%s662 + $0x58] sm:$0xff]
    %v2435 = vld [vmem:[%s662 + $0x60] sm:$0xff]
    %v2436 = vld [vmem:[%s662 + $0x68] sm:$0xff]
    %v2437 = vld [vmem:[%s662 + $0x70] sm:$0xff]
    %v2438 = vld [vmem:[%s662 + $0x78] sm:$0xff]
    %2439 = vmatprep.subr.mxu0 0.0
    %2440 = vmatpush1.msra.mxu0 %v2423
    %2441 = vmatprep.subr.mxu0 0.0
    %2442 = vmatpush1.msra.mxu0 %v2424
    %2443 = vmatprep.subr.mxu0 0.0
    %2444 = vmatpush1.msra.mxu0 %v2425
    %2445 = vmatprep.subr.mxu0 0.0
    %2446 = vmatpush1.msra.mxu0 %v2426
    %2447 = vmatprep.subr.mxu0 0.0
    %2448 = vmatpush1.msra.mxu0 %v2427
    %2449 = vmatprep.subr.mxu0 0.0
    %2450 = vmatpush1.msra.mxu0 %v2428
    %2451 = vmatprep.subr.mxu0 0.0
    %2452 = vmatpush1.msra.mxu0 %v2429
    %2453 = vmatprep.subr.mxu0 0.0
    %2454 = vmatpush1.msra.mxu0 %v2430
    %2455 = vmatprep.subr.mxu0 0.0
    %2456 = vmatpush1.msra.mxu0 %v2431
    %2457 = vmatprep.subr.mxu0 0.0
    %2458 = vmatpush1.msra.mxu0 %v2432
    %2459 = vmatprep.subr.mxu0 0.0
    %2460 = vmatpush1.msra.mxu0 %v2433
    %2461 = vmatprep.subr.mxu0 0.0
    %2462 = vmatpush1.msra.mxu0 %v2434
    %2463 = vmatprep.subr.mxu0 0.0
    %2464 = vmatpush1.msra.mxu0 %v2435
    %2465 = vmatprep.subr.mxu0 0.0
    %2466 = vmatpush1.msra.mxu0 %v2436
    %2467 = vmatprep.subr.mxu0 0.0
    %2468 = vmatpush1.msra.mxu0 %v2437
    %2469 = vmatprep.subr.mxu0 0.0
    %2470 = vmatpush1.msra.mxu0 %v2438
    %2471 = vmatprep.subr.mxu0 0.0
    %2472 = vmatpush1.msra.mxu0 0.0
    %2473 = vmatprep.subr.mxu0 0.0
    %2474 = vmatpush1.msra.mxu0 0.0
    %2475 = vmatprep.subr.mxu0 0.0
    %2476 = vmatpush1.msra.mxu0 0.0
    %2477 = vmatprep.subr.mxu0 0.0
    %2478 = vmatpush1.msra.mxu0 0.0
    %2479 = vmatprep.subr.mxu0 0.0
    %2480 = vmatpush1.msra.mxu0 0.0
    %2481 = vmatprep.subr.mxu0 0.0
    %2482 = vmatpush1.msra.mxu0 0.0
    %2483 = vmatprep.subr.mxu0 0.0
    %2484 = vmatpush1.msra.mxu0 0.0
    %2485 = vmatprep.subr.mxu0 0.0
    %2486 = vmatpush1.msra.mxu0 0.0
    %2487 = vmatprep.subr.mxu0 0.0
    %2488 = vmatpush1.msra.mxu0 0.0
    %2489 = vmatprep.subr.mxu0 0.0
    %2490 = vmatpush1.msra.mxu0 0.0
    %2491 = vmatprep.subr.mxu0 0.0
    %2492 = vmatpush1.msra.mxu0 0.0
    %2493 = vmatprep.subr.mxu0 0.0
    %2494 = vmatpush1.msra.mxu0 0.0
    %2495 = vmatprep.subr.mxu0 0.0
    %2496 = vmatpush1.msra.mxu0 0.0
    %2497 = vmatprep.subr.mxu0 0.0
    %2498 = vmatpush1.msra.mxu0 0.0
    %2499 = vmatprep.subr.mxu0 0.0
    %2500 = vmatpush1.msra.mxu0 0.0
    %2501 = vmatprep.subr.mxu0 0.0
    %2502 = vmatpush1.msra.mxu0 0.0
    %2503 = vmatprep.mubr.f32.mxu0 0.0
    %2504 = vmatmul.mubr.f32.gmra.mrb[0].mxu0 %v2158
    %v2505 = vpop.f32.mrb[0].mxu0
    %v2506 = vadd.f32 0.0, %v2505
    %v2507 = vpop.f32.mrb[0].mxu0
    %2508 = vdwg.mxu0
    %v2509 = vadd.f32 %v2420, %v2506
    %v2510 = vtanh.pop %v2509
    %v2511 = vmax.f32 %v2510, 0.0
    %v2512 = vld [vmem:[#allocation12] sm:$0xff]
    %v2513 = vld [vmem:[#allocation12 + $0x8] sm:$0xff]
    %v2514 = vld [vmem:[#allocation12 + $0x10] sm:$0xff]
    %v2515 = vld [vmem:[#allocation12 + $0x18] sm:$0xff]
    %v2516 = vld [vmem:[#allocation12 + $0x20] sm:$0xff]
    %v2517 = vld [vmem:[#allocation12 + $0x28] sm:$0xff]
    %v2518 = vld [vmem:[#allocation12 + $0x30] sm:$0xff]
    %v2519 = vld [vmem:[#allocation12 + $0x38] sm:$0xff]
    %v2520 = vld [vmem:[#allocation12 + $0x40] sm:$0xff]
    %v2521 = vld [vmem:[#allocation12 + $0x48] sm:$0xff]
    %v2522 = vld [vmem:[#allocation12 + $0x50] sm:$0xff]
    %v2523 = vld [vmem:[#allocation12 + $0x58] sm:$0xff]
    %v2524 = vld [vmem:[#allocation12 + $0x60] sm:$0xff]
    %v2525 = vld [vmem:[#allocation12 + $0x68] sm:$0xff]
    %v2526 = vld [vmem:[#allocation12 + $0x70] sm:$0xff]
    %v2527 = vld [vmem:[#allocation12 + $0x78] sm:$0xff]
    %2528 = vmatprep.subr.mxu0 0.0
    %2529 = vmatpush1.msra.mxu0 %v2512
    %2530 = vmatprep.subr.mxu0 0.0
    %2531 = vmatpush1.msra.mxu0 %v2513
    %2532 = vmatprep.subr.mxu0 0.0
    %2533 = vmatpush1.msra.mxu0 %v2514
    %2534 = vmatprep.subr.mxu0 0.0
    %2535 = vmatpush1.msra.mxu0 %v2515
    %2536 = vmatprep.subr.mxu0 0.0
    %2537 = vmatpush1.msra.mxu0 %v2516
    %2538 = vmatprep.subr.mxu0 0.0
    %2539 = vmatpush1.msra.mxu0 %v2517
    %2540 = vmatprep.subr.mxu0 0.0
    %2541 = vmatpush1.msra.mxu0 %v2518
    %2542 = vmatprep.subr.mxu0 0.0
    %2543 = vmatpush1.msra.mxu0 %v2519
    %2544 = vmatprep.subr.mxu0 0.0
    %2545 = vmatpush1.msra.mxu0 %v2520
    %2546 = vmatprep.subr.mxu0 0.0
    %2547 = vmatpush1.msra.mxu0 %v2521
    %2548 = vmatprep.subr.mxu0 0.0
    %2549 = vmatpush1.msra.mxu0 %v2522
    %2550 = vmatprep.subr.mxu0 0.0
    %2551 = vmatpush1.msra.mxu0 %v2523
    %2552 = vmatprep.subr.mxu0 0.0
    %2553 = vmatpush1.msra.mxu0 %v2524
    %2554 = vmatprep.subr.mxu0 0.0
    %2555 = vmatpush1.msra.mxu0 %v2525
    %2556 = vmatprep.subr.mxu0 0.0
    %2557 = vmatpush1.msra.mxu0 %v2526
    %2558 = vmatprep.subr.mxu0 0.0
    %2559 = vmatpush1.msra.mxu0 %v2527
    %2560 = vmatprep.subr.mxu0 0.0
    %2561 = vmatpush1.msra.mxu0 0.0
    %2562 = vmatprep.subr.mxu0 0.0
    %2563 = vmatpush1.msra.mxu0 0.0
    %2564 = vmatprep.subr.mxu0 0.0
    %2565 = vmatpush1.msra.mxu0 0.0
    %2566 = vmatprep.subr.mxu0 0.0
    %2567 = vmatpush1.msra.mxu0 0.0
    %2568 = vmatprep.subr.mxu0 0.0
    %2569 = vmatpush1.msra.mxu0 0.0
    %2570 = vmatprep.subr.mxu0 0.0
    %2571 = vmatpush1.msra.mxu0 0.0
    %2572 = vmatprep.subr.mxu0 0.0
    %2573 = vmatpush1.msra.mxu0 0.0
    %2574 = vmatprep.subr.mxu0 0.0
    %2575 = vmatpush1.msra.mxu0 0.0
    %2576 = vmatprep.subr.mxu0 0.0
    %2577 = vmatpush1.msra.mxu0 0.0
    %2578 = vmatprep.subr.mxu0 0.0
    %2579 = vmatpush1.msra.mxu0 0.0
    %2580 = vmatprep.subr.mxu0 0.0
    %2581 = vmatpush1.msra.mxu0 0.0
    %2582 = vmatprep.subr.mxu0 0.0
    %2583 = vmatpush1.msra.mxu0 0.0
    %2584 = vmatprep.subr.mxu0 0.0
    %2585 = vmatpush1.msra.mxu0 0.0
    %2586 = vmatprep.subr.mxu0 0.0
    %2587 = vmatpush1.msra.mxu0 0.0
    %2588 = vmatprep.subr.mxu0 0.0
    %2589 = vmatpush1.msra.mxu0 0.0
    %2590 = vmatprep.subr.mxu0 0.0
    %2591 = vmatpush1.msra.mxu0 0.0
    %2592 = vmatprep.mubr.f32.mxu0 0.0
    %2593 = vmatmul.mubr.f32.gmra.mrb[0].mxu0 %v2511
    %v2594 = vpop.f32.mrb[0].mxu0
    %v2595 = vadd.f32 %v406, %v2594
    %v2596 = vpop.f32.mrb[0].mxu0
    %2597 = vdwg.mxu0
    %2598 = vst [vmem:[#allocation14 + $0x28] sm:$0xff] %v2595
    %v2599 = vld [vmem:[#allocation2 + $0x38] sm:$0xff]
    %v2600 = vadd.f32 %v2599, %v395
    %v2601 = vld [vmem:[#allocation11] sm:$0xff]
    %v2602 = vld [vmem:[#allocation11 + $0x8] sm:$0xff]
    %v2603 = vld [vmem:[#allocation11 + $0x10] sm:$0xff]
    %v2604 = vld [vmem:[#allocation11 + $0x18] sm:$0xff]
    %v2605 = vld [vmem:[#allocation11 + $0x20] sm:$0xff]
    %v2606 = vld [vmem:[#allocation11 + $0x28] sm:$0xff]
    %v2607 = vld [vmem:[#allocation11 + $0x30] sm:$0xff]
    %v2608 = vld [vmem:[#allocation11 + $0x38] sm:$0xff]
    %v2609 = vld [vmem:[#allocation11 + $0x40] sm:$0xff]
    %v2610 = vld [vmem:[#allocation11 + $0x48] sm:$0xff]
    %v2611 = vld [vmem:[#allocation11 + $0x50] sm:$0xff]
    %v2612 = vld [vmem:[#allocation11 + $0x58] sm:$0xff]
    %v2613 = vld [vmem:[#allocation11 + $0x60] sm:$0xff]
    %v2614 = vld [vmem:[#allocation11 + $0x68] sm:$0xff]
    %v2615 = vld [vmem:[#allocation11 + $0x70] sm:$0xff]
    %v2616 = vld [vmem:[#allocation11 + $0x78] sm:$0xff]
    %2617 = vmatprep.subr.mxu0 0.0
    %2618 = vmatpush1.msra.mxu0 %v2601
    %2619 = vmatprep.subr.mxu0 0.0
    %2620 = vmatpush1.msra.mxu0 %v2602
    %2621 = vmatprep.subr.mxu0 0.0
    %2622 = vmatpush1.msra.mxu0 %v2603
    %2623 = vmatprep.subr.mxu0 0.0
    %2624 = vmatpush1.msra.mxu0 %v2604
    %2625 = vmatprep.subr.mxu0 0.0
    %2626 = vmatpush1.msra.mxu0 %v2605
    %2627 = vmatprep.subr.mxu0 0.0
    %2628 = vmatpush1.msra.mxu0 %v2606
    %2629 = vmatprep.subr.mxu0 0.0
    %2630 = vmatpush1.msra.mxu0 %v2607
    %2631 = vmatprep.subr.mxu0 0.0
    %2632 = vmatpush1.msra.mxu0 %v2608
    %2633 = vmatprep.subr.mxu0 0.0
    %2634 = vmatpush1.msra.mxu0 %v2609
    %2635 = vmatprep.subr.mxu0 0.0
    %2636 = vmatpush1.msra.mxu0 %v2610
    %2637 = vmatprep.subr.mxu0 0.0
    %2638 = vmatpush1.msra.mxu0 %v2611
    %2639 = vmatprep.subr.mxu0 0.0
    %2640 = vmatpush1.msra.mxu0 %v2612
    %2641 = vmatprep.subr.mxu0 0.0
    %2642 = vmatpush1.msra.mxu0 %v2613
    %2643 = vmatprep.subr.mxu0 0.0
    %2644 = vmatpush1.msra.mxu0 %v2614
    %2645 = vmatprep.subr.mxu0 0.0
    %2646 = vmatpush1.msra.mxu0 %v2615
    %2647 = vmatprep.subr.mxu0 0.0
    %2648 = vmatpush1.msra.mxu0 %v2616
    %2649 = vmatprep.subr.mxu0 0.0
    %2650 = vmatpush1.msra.mxu0 0.0
    %2651 = vmatprep.subr.mxu0 0.0
    %2652 = vmatpush1.msra.mxu0 0.0
    %2653 = vmatprep.subr.mxu0 0.0
    %2654 = vmatpush1.msra.mxu0 0.0
    %2655 = vmatprep.subr.mxu0 0.0
    %2656 = vmatpush1.msra.mxu0 0.0
    %2657 = vmatprep.subr.mxu0 0.0
    %2658 = vmatpush1.msra.mxu0 0.0
    %2659 = vmatprep.subr.mxu0 0.0
    %2660 = vmatpush1.msra.mxu0 0.0
    %2661 = vmatprep.subr.mxu0 0.0
    %2662 = vmatpush1.msra.mxu0 0.0
    %2663 = vmatprep.subr.mxu0 0.0
    %2664 = vmatpush1.msra.mxu0 0.0
    %2665 = vmatprep.subr.mxu0 0.0
    %2666 = vmatpush1.msra.mxu0 0.0
    %2667 = vmatprep.subr.mxu0 0.0
    %2668 = vmatpush1.msra.mxu0 0.0
    %2669 = vmatprep.subr.mxu0 0.0
    %2670 = vmatpush1.msra.mxu0 0.0
    %2671 = vmatprep.subr.mxu0 0.0
    %2672 = vmatpush1.msra.mxu0 0.0
    %2673 = vmatprep.subr.mxu0 0.0
    %2674 = vmatpush1.msra.mxu0 0.0
    %2675 = vmatprep.subr.mxu0 0.0
    %2676 = vmatpush1.msra.mxu0 0.0
    %2677 = vmatprep.subr.mxu0 0.0
    %2678 = vmatpush1.msra.mxu0 0.0
    %2679 = vmatprep.subr.mxu0 0.0
    %2680 = vmatpush1.msra.mxu0 0.0
    %2681 = vmatprep.mubr.f32.mxu0 0.0
    %2682 = vmatmul.mubr.f32.gmra.mrb[0].mxu0 %v2336
    %v2683 = vpop.f32.mrb[0].mxu0
    %v2684 = vadd.f32 0.0, %v2683
    %v2685 = vpop.f32.mrb[0].mxu0
    %2686 = vdwg.mxu0
    %v2687 = vadd.f32 %v2600, %v2684
    %v2688 = vtanh.pop %v2687
    %v2689 = vld [vmem:[%s575] sm:$0xff]
    %v2690 = vld [vmem:[%s575 + $0x8] sm:$0xff]
    %v2691 = vld [vmem:[%s575 + $0x10] sm:$0xff]
    %v2692 = vld [vmem:[%s575 + $0x18] sm:$0xff]
    %v2693 = vld [vmem:[%s575 + $0x20] sm:$0xff]
    %v2694 = vld [vmem:[%s575 + $0x28] sm:$0xff]
    %v2695 = vld [vmem:[%s575 + $0x30] sm:$0xff]
    %v2696 = vld [vmem:[%s575 + $0x38] sm:$0xff]
    %v2697 = vld [vmem:[%s575 + $0x40] sm:$0xff]
    %v2698 = vld [vmem:[%s575 + $0x48] sm:$0xff]
    %v2699 = vld [vmem:[%s575 + $0x50] sm:$0xff]
    %v2700 = vld [vmem:[%s575 + $0x58] sm:$0xff]
    %v2701 = vld [vmem:[%s575 + $0x60] sm:$0xff]
    %v2702 = vld [vmem:[%s575 + $0x68] sm:$0xff]
    %v2703 = vld [vmem:[%s575 + $0x70] sm:$0xff]
    %v2704 = vld [vmem:[%s575 + $0x78] sm:$0xff]
    %2705 = vmatprep.subr.mxu0 0.0
    %2706 = vmatpush1.msra.mxu0 %v2689
    %2707 = vmatprep.subr.mxu0 0.0
    %2708 = vmatpush1.msra.mxu0 %v2690
    %2709 = vmatprep.subr.mxu0 0.0
    %2710 = vmatpush1.msra.mxu0 %v2691
    %2711 = vmatprep.subr.mxu0 0.0
    %2712 = vmatpush1.msra.mxu0 %v2692
    %2713 = vmatprep.subr.mxu0 0.0
    %2714 = vmatpush1.msra.mxu0 %v2693
    %2715 = vmatprep.subr.mxu0 0.0
    %2716 = vmatpush1.msra.mxu0 %v2694
    %2717 = vmatprep.subr.mxu0 0.0
    %2718 = vmatpush1.msra.mxu0 %v2695
    %2719 = vmatprep.subr.mxu0 0.0
    %2720 = vmatpush1.msra.mxu0 %v2696
    %2721 = vmatprep.subr.mxu0 0.0
    %2722 = vmatpush1.msra.mxu0 %v2697
    %2723 = vmatprep.subr.mxu0 0.0
    %2724 = vmatpush1.msra.mxu0 %v2698
    %2725 = vmatprep.subr.mxu0 0.0
    %2726 = vmatpush1.msra.mxu0 %v2699
    %2727 = vmatprep.subr.mxu0 0.0
    %2728 = vmatpush1.msra.mxu0 %v2700
    %2729 = vmatprep.subr.mxu0 0.0
    %2730 = vmatpush1.msra.mxu0 %v2701
    %2731 = vmatprep.subr.mxu0 0.0
    %2732 = vmatpush1.msra.mxu0 %v2702
    %2733 = vmatprep.subr.mxu0 0.0
    %2734 = vmatpush1.msra.mxu0 %v2703
    %2735 = vmatprep.subr.mxu0 0.0
    %2736 = vmatpush1.msra.mxu0 %v2704
    %2737 = vmatprep.subr.mxu0 0.0
    %2738 = vmatpush1.msra.mxu0 0.0
    %2739 = vmatprep.subr.mxu0 0.0
    %2740 = vmatpush1.msra.mxu0 0.0
    %2741 = vmatprep.subr.mxu0 0.0
    %2742 = vmatpush1.msra.mxu0 0.0
    %2743 = vmatprep.subr.mxu0 0.0
    %2744 = vmatpush1.msra.mxu0 0.0
    %2745 = vmatprep.subr.mxu0 0.0
    %2746 = vmatpush1.msra.mxu0 0.0
    %2747 = vmatprep.subr.mxu0 0.0
    %2748 = vmatpush1.msra.mxu0 0.0
    %2749 = vmatprep.subr.mxu0 0.0
    %2750 = vmatpush1.msra.mxu0 0.0
    %2751 = vmatprep.subr.mxu0 0.0
    %2752 = vmatpush1.msra.mxu0 0.0
    %2753 = vmatprep.subr.mxu0 0.0
    %2754 = vmatpush1.msra.mxu0 0.0
    %2755 = vmatprep.subr.mxu0 0.0
    %2756 = vmatpush1.msra.mxu0 0.0
    %2757 = vmatprep.subr.mxu0 0.0
    %2758 = vmatpush1.msra.mxu0 0.0
    %2759 = vmatprep.subr.mxu0 0.0
    %2760 = vmatpush1.msra.mxu0 0.0
    %2761 = vmatprep.subr.mxu0 0.0
    %2762 = vmatpush1.msra.mxu0 0.0
    %2763 = vmatprep.subr.mxu0 0.0
    %2764 = vmatpush1.msra.mxu0 0.0
    %2765 = vmatprep.subr.mxu0 0.0
    %2766 = vmatpush1.msra.mxu0 0.0
    %2767 = vmatprep.subr.mxu0 0.0
    %2768 = vmatpush1.msra.mxu0 0.0
    %2769 = vmatprep.mubr.f32.mxu0 0.0
    %2770 = vmatmul.mubr.f32.gmra.mrb[0].mxu0 %v2336
    %v2771 = vpop.f32.mrb[0].mxu0
    %v2772 = vadd.f32 %v400, %v2771
    %v2773 = vpop.f32.mrb[0].mxu0
    %2774 = vdwg.mxu0
    %v2775 = vld [vmem:[%s662] sm:$0xff]
    %v2776 = vld [vmem:[%s662 + $0x8] sm:$0xff]
    %v2777 = vld [vmem:[%s662 + $0x10] sm:$0xff]
    %v2778 = vld [vmem:[%s662 + $0x18] sm:$0xff]
    %v2779 = vld [vmem:[%s662 + $0x20] sm:$0xff]
    %v2780 = vld [vmem:[%s662 + $0x28] sm:$0xff]
    %v2781 = vld [vmem:[%s662 + $0x30] sm:$0xff]
    %v2782 = vld [vmem:[%s662 + $0x38] sm:$0xff]
    %v2783 = vld [vmem:[%s662 + $0x40] sm:$0xff]
    %v2784 = vld [vmem:[%s662 + $0x48] sm:$0xff]
    %v2785 = vld [vmem:[%s662 + $0x50] sm:$0xff]
    %v2786 = vld [vmem:[%s662 + $0x58] sm:$0xff]
    %v2787 = vld [vmem:[%s662 + $0x60] sm:$0xff]
    %v2788 = vld [vmem:[%s662 + $0x68] sm:$0xff]
    %v2789 = vld [vmem:[%s662 + $0x70] sm:$0xff]
    %v2790 = vld [vmem:[%s662 + $0x78] sm:$0xff]
    %2791 = vmatprep.subr.mxu0 0.0
    %2792 = vmatpush1.msra.mxu0 %v2775
    %2793 = vmatprep.subr.mxu0 0.0
    %2794 = vmatpush1.msra.mxu0 %v2776
    %2795 = vmatprep.subr.mxu0 0.0
    %2796 = vmatpush1.msra.mxu0 %v2777
    %2797 = vmatprep.subr.mxu0 0.0
    %2798 = vmatpush1.msra.mxu0 %v2778
    %2799 = vmatprep.subr.mxu0 0.0
    %2800 = vmatpush1.msra.mxu0 %v2779
    %2801 = vmatprep.subr.mxu0 0.0
    %2802 = vmatpush1.msra.mxu0 %v2780
    %2803 = vmatprep.subr.mxu0 0.0
    %2804 = vmatpush1.msra.mxu0 %v2781
    %2805 = vmatprep.subr.mxu0 0.0
    %2806 = vmatpush1.msra.mxu0 %v2782
    %2807 = vmatprep.subr.mxu0 0.0
    %2808 = vmatpush1.msra.mxu0 %v2783
    %2809 = vmatprep.subr.mxu0 0.0
    %2810 = vmatpush1.msra.mxu0 %v2784
    %2811 = vmatprep.subr.mxu0 0.0
    %2812 = vmatpush1.msra.mxu0 %v2785
    %2813 = vmatprep.subr.mxu0 0.0
    %2814 = vmatpush1.msra.mxu0 %v2786
    %2815 = vmatprep.subr.mxu0 0.0
    %2816 = vmatpush1.msra.mxu0 %v2787
    %2817 = vmatprep.subr.mxu0 0.0
    %2818 = vmatpush1.msra.mxu0 %v2788
    %2819 = vmatprep.subr.mxu0 0.0
    %2820 = vmatpush1.msra.mxu0 %v2789
    %2821 = vmatprep.subr.mxu0 0.0
    %2822 = vmatpush1.msra.mxu0 %v2790
    %2823 = vmatprep.subr.mxu0 0.0
    %2824 = vmatpush1.msra.mxu0 0.0
    %2825 = vmatprep.subr.mxu0 0.0
    %2826 = vmatpush1.msra.mxu0 0.0
    %2827 = vmatprep.subr.mxu0 0.0
    %2828 = vmatpush1.msra.mxu0 0.0
    %2829 = vmatprep.subr.mxu0 0.0
    %2830 = vmatpush1.msra.mxu0 0.0
    %2831 = vmatprep.subr.mxu0 0.0
    %2832 = vmatpush1.msra.mxu0 0.0
    %2833 = vmatprep.subr.mxu0 0.0
    %2834 = vmatpush1.msra.mxu0 0.0
    %2835 = vmatprep.subr.mxu0 0.0
    %2836 = vmatpush1.msra.mxu0 0.0
    %2837 = vmatprep.subr.mxu0 0.0
    %2838 = vmatpush1.msra.mxu0 0.0
    %2839 = vmatprep.subr.mxu0 0.0
    %2840 = vmatpush1.msra.mxu0 0.0
    %2841 = vmatprep.subr.mxu0 0.0
    %2842 = vmatpush1.msra.mxu0 0.0
    %2843 = vmatprep.subr.mxu0 0.0
    %2844 = vmatpush1.msra.mxu0 0.0
    %2845 = vmatprep.subr.mxu0 0.0
    %2846 = vmatpush1.msra.mxu0 0.0
    %2847 = vmatprep.subr.mxu0 0.0
    %2848 = vmatpush1.msra.mxu0 0.0
    %2849 = vmatprep.subr.mxu0 0.0
    %2850 = vmatpush1.msra.mxu0 0.0
    %2851 = vmatprep.subr.mxu0 0.0
    %2852 = vmatpush1.msra.mxu0 0.0
    %2853 = vmatprep.subr.mxu0 0.0
    %2854 = vmatpush1.msra.mxu0 0.0
    %2855 = vmatprep.mubr.f32.mxu0 0.0
    %2856 = vmatmul.mubr.f32.gmra.mrb[0].mxu0 %v2510
    %v2857 = vpop.f32.mrb[0].mxu0
    %v2858 = vadd.f32 0.0, %v2857
    %v2859 = vpop.f32.mrb[0].mxu0
    %2860 = vdwg.mxu0
    %v2861 = vadd.f32 %v2772, %v2858
    %v2862 = vtanh.pop %v2861
    %v2863 = vmax.f32 %v2862, 0.0
    %v2864 = vld [vmem:[#allocation12] sm:$0xff]
    %v2865 = vld [vmem:[#allocation12 + $0x8] sm:$0xff]
    %v2866 = vld [vmem:[#allocation12 + $0x10] sm:$0xff]
    %v2867 = vld [vmem:[#allocation12 + $0x18] sm:$0xff]
    %v2868 = vld [vmem:[#allocation12 + $0x20] sm:$0xff]
    %v2869 = vld [vmem:[#allocation12 + $0x28] sm:$0xff]
    %v2870 = vld [vmem:[#allocation12 + $0x30] sm:$0xff]
    %v2871 = vld [vmem:[#allocation12 + $0x38] sm:$0xff]
    %v2872 = vld [vmem:[#allocation12 + $0x40] sm:$0xff]
    %v2873 = vld [vmem:[#allocation12 + $0x48] sm:$0xff]
    %v2874 = vld [vmem:[#allocation12 + $0x50] sm:$0xff]
    %v2875 = vld [vmem:[#allocation12 + $0x58] sm:$0xff]
    %v2876 = vld [vmem:[#allocation12 + $0x60] sm:$0xff]
    %v2877 = vld [vmem:[#allocation12 + $0x68] sm:$0xff]
    %v2878 = vld [vmem:[#allocation12 + $0x70] sm:$0xff]
    %v2879 = vld [vmem:[#allocation12 + $0x78] sm:$0xff]
    %2880 = vmatprep.subr.mxu0 0.0
    %2881 = vmatpush1.msra.mxu0 %v2864
    %2882 = vmatprep.subr.mxu0 0.0
    %2883 = vmatpush1.msra.mxu0 %v2865
    %2884 = vmatprep.subr.mxu0 0.0
    %2885 = vmatpush1.msra.mxu0 %v2866
    %2886 = vmatprep.subr.mxu0 0.0
    %2887 = vmatpush1.msra.mxu0 %v2867
    %2888 = vmatprep.subr.mxu0 0.0
    %2889 = vmatpush1.msra.mxu0 %v2868
    %2890 = vmatprep.subr.mxu0 0.0
    %2891 = vmatpush1.msra.mxu0 %v2869
    %2892 = vmatprep.subr.mxu0 0.0
    %2893 = vmatpush1.msra.mxu0 %v2870
    %2894 = vmatprep.subr.mxu0 0.0
    %2895 = vmatpush1.msra.mxu0 %v2871
    %2896 = vmatprep.subr.mxu0 0.0
    %2897 = vmatpush1.msra.mxu0 %v2872
    %2898 = vmatprep.subr.mxu0 0.0
    %2899 = vmatpush1.msra.mxu0 %v2873
    %2900 = vmatprep.subr.mxu0 0.0
    %2901 = vmatpush1.msra.mxu0 %v2874
    %2902 = vmatprep.subr.mxu0 0.0
    %2903 = vmatpush1.msra.mxu0 %v2875
    %2904 = vmatprep.subr.mxu0 0.0
    %2905 = vmatpush1.msra.mxu0 %v2876
    %2906 = vmatprep.subr.mxu0 0.0
    %2907 = vmatpush1.msra.mxu0 %v2877
    %2908 = vmatprep.subr.mxu0 0.0
    %2909 = vmatpush1.msra.mxu0 %v2878
    %2910 = vmatprep.subr.mxu0 0.0
    %2911 = vmatpush1.msra.mxu0 %v2879
    %2912 = vmatprep.subr.mxu0 0.0
    %2913 = vmatpush1.msra.mxu0 0.0
    %2914 = vmatprep.subr.mxu0 0.0
    %2915 = vmatpush1.msra.mxu0 0.0
    %2916 = vmatprep.subr.mxu0 0.0
    %2917 = vmatpush1.msra.mxu0 0.0
    %2918 = vmatprep.subr.mxu0 0.0
    %2919 = vmatpush1.msra.mxu0 0.0
    %2920 = vmatprep.subr.mxu0 0.0
    %2921 = vmatpush1.msra.mxu0 0.0
    %2922 = vmatprep.subr.mxu0 0.0
    %2923 = vmatpush1.msra.mxu0 0.0
    %2924 = vmatprep.subr.mxu0 0.0
    %2925 = vmatpush1.msra.mxu0 0.0
    %2926 = vmatprep.subr.mxu0 0.0
    %2927 = vmatpush1.msra.mxu0 0.0
    %2928 = vmatprep.subr.mxu0 0.0
    %2929 = vmatpush1.msra.mxu0 0.0
    %2930 = vmatprep.subr.mxu0 0.0
    %2931 = vmatpush1.msra.mxu0 0.0
    %2932 = vmatprep.subr.mxu0 0.0
    %2933 = vmatpush1.msra.mxu0 0.0
    %2934 = vmatprep.subr.mxu0 0.0
    %2935 = vmatpush1.msra.mxu0 0.0
    %2936 = vmatprep.subr.mxu0 0.0
    %2937 = vmatpush1.msra.mxu0 0.0
    %2938 = vmatprep.subr.mxu0 0.0
    %2939 = vmatpush1.msra.mxu0 0.0
    %2940 = vmatprep.subr.mxu0 0.0
    %2941 = vmatpush1.msra.mxu0 0.0
    %2942 = vmatprep.subr.mxu0 0.0
    %2943 = vmatpush1.msra.mxu0 0.0
    %2944 = vmatprep.mubr.f32.mxu0 0.0
    %2945 = vmatmul.mubr.f32.gmra.mrb[0].mxu0 %v2863
    %v2946 = vpop.f32.mrb[0].mxu0
    %v2947 = vadd.f32 %v406, %v2946
    %v2948 = vpop.f32.mrb[0].mxu0
    %2949 = vdwg.mxu0
    %2950 = vst [vmem:[#allocation14 + $0x30] sm:$0xff] %v2947
    %v2951 = vld [vmem:[%s575] sm:$0xff]
    %v2952 = vld [vmem:[%s575 + $0x8] sm:$0xff]
    %v2953 = vld [vmem:[%s575 + $0x10] sm:$0xff]
    %v2954 = vld [vmem:[%s575 + $0x18] sm:$0xff]
    %v2955 = vld [vmem:[%s575 + $0x20] sm:$0xff]
    %v2956 = vld [vmem:[%s575 + $0x28] sm:$0xff]
    %v2957 = vld [vmem:[%s575 + $0x30] sm:$0xff]
    %v2958 = vld [vmem:[%s575 + $0x38] sm:$0xff]
    %v2959 = vld [vmem:[%s575 + $0x40] sm:$0xff]
    %v2960 = vld [vmem:[%s575 + $0x48] sm:$0xff]
    %v2961 = vld [vmem:[%s575 + $0x50] sm:$0xff]
    %v2962 = vld [vmem:[%s575 + $0x58] sm:$0xff]
    %v2963 = vld [vmem:[%s575 + $0x60] sm:$0xff]
    %v2964 = vld [vmem:[%s575 + $0x68] sm:$0xff]
    %v2965 = vld [vmem:[%s575 + $0x70] sm:$0xff]
    %v2966 = vld [vmem:[%s575 + $0x78] sm:$0xff]
    %2967 = vmatprep.subr.mxu0 0.0
    %2968 = vmatpush1.msra.mxu0 %v2951
    %2969 = vmatprep.subr.mxu0 0.0
    %2970 = vmatpush1.msra.mxu0 %v2952
    %2971 = vmatprep.subr.mxu0 0.0
    %2972 = vmatpush1.msra.mxu0 %v2953
    %2973 = vmatprep.subr.mxu0 0.0
    %2974 = vmatpush1.msra.mxu0 %v2954
    %2975 = vmatprep.subr.mxu0 0.0
    %2976 = vmatpush1.msra.mxu0 %v2955
    %2977 = vmatprep.subr.mxu0 0.0
    %2978 = vmatpush1.msra.mxu0 %v2956
    %2979 = vmatprep.subr.mxu0 0.0
    %2980 = vmatpush1.msra.mxu0 %v2957
    %2981 = vmatprep.subr.mxu0 0.0
    %2982 = vmatpush1.msra.mxu0 %v2958
    %2983 = vmatprep.subr.mxu0 0.0
    %2984 = vmatpush1.msra.mxu0 %v2959
    %2985 = vmatprep.subr.mxu0 0.0
    %2986 = vmatpush1.msra.mxu0 %v2960
    %2987 = vmatprep.subr.mxu0 0.0
    %2988 = vmatpush1.msra.mxu0 %v2961
    %2989 = vmatprep.subr.mxu0 0.0
    %2990 = vmatpush1.msra.mxu0 %v2962
    %2991 = vmatprep.subr.mxu0 0.0
    %2992 = vmatpush1.msra.mxu0 %v2963
    %2993 = vmatprep.subr.mxu0 0.0
    %2994 = vmatpush1.msra.mxu0 %v2964
    %2995 = vmatprep.subr.mxu0 0.0
    %2996 = vmatpush1.msra.mxu0 %v2965
    %2997 = vmatprep.subr.mxu0 0.0
    %2998 = vmatpush1.msra.mxu0 %v2966
    %2999 = vmatprep.subr.mxu0 0.0
    %3000 = vmatpush1.msra.mxu0 0.0
    %3001 = vmatprep.subr.mxu0 0.0
    %3002 = vmatpush1.msra.mxu0 0.0
    %3003 = vmatprep.subr.mxu0 0.0
    %3004 = vmatpush1.msra.mxu0 0.0
    %3005 = vmatprep.subr.mxu0 0.0
    %3006 = vmatpush1.msra.mxu0 0.0
    %3007 = vmatprep.subr.mxu0 0.0
    %3008 = vmatpush1.msra.mxu0 0.0
    %3009 = vmatprep.subr.mxu0 0.0
    %3010 = vmatpush1.msra.mxu0 0.0
    %3011 = vmatprep.subr.mxu0 0.0
    %3012 = vmatpush1.msra.mxu0 0.0
    %3013 = vmatprep.subr.mxu0 0.0
    %3014 = vmatpush1.msra.mxu0 0.0
    %3015 = vmatprep.subr.mxu0 0.0
    %3016 = vmatpush1.msra.mxu0 0.0
    %3017 = vmatprep.subr.mxu0 0.0
    %3018 = vmatpush1.msra.mxu0 0.0
    %3019 = vmatprep.subr.mxu0 0.0
    %3020 = vmatpush1.msra.mxu0 0.0
    %3021 = vmatprep.subr.mxu0 0.0
    %3022 = vmatpush1.msra.mxu0 0.0
    %3023 = vmatprep.subr.mxu0 0.0
    %3024 = vmatpush1.msra.mxu0 0.0
    %3025 = vmatprep.subr.mxu0 0.0
    %3026 = vmatpush1.msra.mxu0 0.0
    %3027 = vmatprep.subr.mxu0 0.0
    %3028 = vmatpush1.msra.mxu0 0.0
    %3029 = vmatprep.subr.mxu0 0.0
    %3030 = vmatpush1.msra.mxu0 0.0
    %3031 = vmatprep.mubr.f32.mxu0 0.0
    %3032 = vmatmul.mubr.f32.gmra.mrb[0].mxu0 %v2688
    %v3033 = vpop.f32.mrb[0].mxu0
    %v3034 = vadd.f32 %v400, %v3033
    %v3035 = vpop.f32.mrb[0].mxu0
    %3036 = vdwg.mxu0
    %v3037 = vld [vmem:[%s662] sm:$0xff]
    %v3038 = vld [vmem:[%s662 + $0x8] sm:$0xff]
    %v3039 = vld [vmem:[%s662 + $0x10] sm:$0xff]
    %v3040 = vld [vmem:[%s662 + $0x18] sm:$0xff]
    %v3041 = vld [vmem:[%s662 + $0x20] sm:$0xff]
    %v3042 = vld [vmem:[%s662 + $0x28] sm:$0xff]
    %v3043 = vld [vmem:[%s662 + $0x30] sm:$0xff]
    %v3044 = vld [vmem:[%s662 + $0x38] sm:$0xff]
    %v3045 = vld [vmem:[%s662 + $0x40] sm:$0xff]
    %v3046 = vld [vmem:[%s662 + $0x48] sm:$0xff]
    %v3047 = vld [vmem:[%s662 + $0x50] sm:$0xff]
    %v3048 = vld [vmem:[%s662 + $0x58] sm:$0xff]
    %v3049 = vld [vmem:[%s662 + $0x60] sm:$0xff]
    %v3050 = vld [vmem:[%s662 + $0x68] sm:$0xff]
    %v3051 = vld [vmem:[%s662 + $0x70] sm:$0xff]
    %v3052 = vld [vmem:[%s662 + $0x78] sm:$0xff]
    %3053 = vmatprep.subr.mxu0 0.0
    %3054 = vmatpush1.msra.mxu0 %v3037
    %3055 = vmatprep.subr.mxu0 0.0
    %3056 = vmatpush1.msra.mxu0 %v3038
    %3057 = vmatprep.subr.mxu0 0.0
    %3058 = vmatpush1.msra.mxu0 %v3039
    %3059 = vmatprep.subr.mxu0 0.0
    %3060 = vmatpush1.msra.mxu0 %v3040
    %3061 = vmatprep.subr.mxu0 0.0
    %3062 = vmatpush1.msra.mxu0 %v3041
    %3063 = vmatprep.subr.mxu0 0.0
    %3064 = vmatpush1.msra.mxu0 %v3042
    %3065 = vmatprep.subr.mxu0 0.0
    %3066 = vmatpush1.msra.mxu0 %v3043
    %3067 = vmatprep.subr.mxu0 0.0
    %3068 = vmatpush1.msra.mxu0 %v3044
    %3069 = vmatprep.subr.mxu0 0.0
    %3070 = vmatpush1.msra.mxu0 %v3045
    %3071 = vmatprep.subr.mxu0 0.0
    %3072 = vmatpush1.msra.mxu0 %v3046
    %3073 = vmatprep.subr.mxu0 0.0
    %3074 = vmatpush1.msra.mxu0 %v3047
    %3075 = vmatprep.subr.mxu0 0.0
    %3076 = vmatpush1.msra.mxu0 %v3048
    %3077 = vmatprep.subr.mxu0 0.0
    %3078 = vmatpush1.msra.mxu0 %v3049
    %3079 = vmatprep.subr.mxu0 0.0
    %3080 = vmatpush1.msra.mxu0 %v3050
    %3081 = vmatprep.subr.mxu0 0.0
    %3082 = vmatpush1.msra.mxu0 %v3051
    %3083 = vmatprep.subr.mxu0 0.0
    %3084 = vmatpush1.msra.mxu0 %v3052
    %3085 = vmatprep.subr.mxu0 0.0
    %3086 = vmatpush1.msra.mxu0 0.0
    %3087 = vmatprep.subr.mxu0 0.0
    %3088 = vmatpush1.msra.mxu0 0.0
    %3089 = vmatprep.subr.mxu0 0.0
    %3090 = vmatpush1.msra.mxu0 0.0
    %3091 = vmatprep.subr.mxu0 0.0
    %3092 = vmatpush1.msra.mxu0 0.0
    %3093 = vmatprep.subr.mxu0 0.0
    %3094 = vmatpush1.msra.mxu0 0.0
    %3095 = vmatprep.subr.mxu0 0.0
    %3096 = vmatpush1.msra.mxu0 0.0
    %3097 = vmatprep.subr.mxu0 0.0
    %3098 = vmatpush1.msra.mxu0 0.0
    %3099 = vmatprep.subr.mxu0 0.0
    %3100 = vmatpush1.msra.mxu0 0.0
    %3101 = vmatprep.subr.mxu0 0.0
    %3102 = vmatpush1.msra.mxu0 0.0
    %3103 = vmatprep.subr.mxu0 0.0
    %3104 = vmatpush1.msra.mxu0 0.0
    %3105 = vmatprep.subr.mxu0 0.0
    %3106 = vmatpush1.msra.mxu0 0.0
    %3107 = vmatprep.subr.mxu0 0.0
    %3108 = vmatpush1.msra.mxu0 0.0
    %3109 = vmatprep.subr.mxu0 0.0
    %3110 = vmatpush1.msra.mxu0 0.0
    %3111 = vmatprep.subr.mxu0 0.0
    %3112 = vmatpush1.msra.mxu0 0.0
    %3113 = vmatprep.subr.mxu0 0.0
    %3114 = vmatpush1.msra.mxu0 0.0
    %3115 = vmatprep.subr.mxu0 0.0
    %3116 = vmatpush1.msra.mxu0 0.0
    %3117 = vmatprep.mubr.f32.mxu0 0.0
    %3118 = vmatmul.mubr.f32.gmra.mrb[0].mxu0 %v2862
    %v3119 = vpop.f32.mrb[0].mxu0
    %v3120 = vadd.f32 0.0, %v3119
    %v3121 = vpop.f32.mrb[0].mxu0
    %3122 = vdwg.mxu0
    %v3123 = vadd.f32 %v3034, %v3120
    %v3124 = vtanh.pop %v3123
    %v3125 = vmax.f32 %v3124, 0.0
    %v3126 = vld [vmem:[#allocation12] sm:$0xff]
    %v3127 = vld [vmem:[#allocation12 + $0x8] sm:$0xff]
    %v3128 = vld [vmem:[#allocation12 + $0x10] sm:$0xff]
    %v3129 = vld [vmem:[#allocation12 + $0x18] sm:$0xff]
    %v3130 = vld [vmem:[#allocation12 + $0x20] sm:$0xff]
    %v3131 = vld [vmem:[#allocation12 + $0x28] sm:$0xff]
    %v3132 = vld [vmem:[#allocation12 + $0x30] sm:$0xff]
    %v3133 = vld [vmem:[#allocation12 + $0x38] sm:$0xff]
    %v3134 = vld [vmem:[#allocation12 + $0x40] sm:$0xff]
    %v3135 = vld [vmem:[#allocation12 + $0x48] sm:$0xff]
    %v3136 = vld [vmem:[#allocation12 + $0x50] sm:$0xff]
    %v3137 = vld [vmem:[#allocation12 + $0x58] sm:$0xff]
    %v3138 = vld [vmem:[#allocation12 + $0x60] sm:$0xff]
    %v3139 = vld [vmem:[#allocation12 + $0x68] sm:$0xff]
    %v3140 = vld [vmem:[#allocation12 + $0x70] sm:$0xff]
    %v3141 = vld [vmem:[#allocation12 + $0x78] sm:$0xff]
    %3142 = vmatprep.subr.mxu0 0.0
    %3143 = vmatpush1.msra.mxu0 %v3126
    %3144 = vmatprep.subr.mxu0 0.0
    %3145 = vmatpush1.msra.mxu0 %v3127
    %3146 = vmatprep.subr.mxu0 0.0
    %3147 = vmatpush1.msra.mxu0 %v3128
    %3148 = vmatprep.subr.mxu0 0.0
    %3149 = vmatpush1.msra.mxu0 %v3129
    %3150 = vmatprep.subr.mxu0 0.0
    %3151 = vmatpush1.msra.mxu0 %v3130
    %3152 = vmatprep.subr.mxu0 0.0
    %3153 = vmatpush1.msra.mxu0 %v3131
    %3154 = vmatprep.subr.mxu0 0.0
    %3155 = vmatpush1.msra.mxu0 %v3132
    %3156 = vmatprep.subr.mxu0 0.0
    %3157 = vmatpush1.msra.mxu0 %v3133
    %3158 = vmatprep.subr.mxu0 0.0
    %3159 = vmatpush1.msra.mxu0 %v3134
    %3160 = vmatprep.subr.mxu0 0.0
    %3161 = vmatpush1.msra.mxu0 %v3135
    %3162 = vmatprep.subr.mxu0 0.0
    %3163 = vmatpush1.msra.mxu0 %v3136
    %3164 = vmatprep.subr.mxu0 0.0
    %3165 = vmatpush1.msra.mxu0 %v3137
    %3166 = vmatprep.subr.mxu0 0.0
    %3167 = vmatpush1.msra.mxu0 %v3138
    %3168 = vmatprep.subr.mxu0 0.0
    %3169 = vmatpush1.msra.mxu0 %v3139
    %3170 = vmatprep.subr.mxu0 0.0
    %3171 = vmatpush1.msra.mxu0 %v3140
    %3172 = vmatprep.subr.mxu0 0.0
    %3173 = vmatpush1.msra.mxu0 %v3141
    %3174 = vmatprep.subr.mxu0 0.0
    %3175 = vmatpush1.msra.mxu0 0.0
    %3176 = vmatprep.subr.mxu0 0.0
    %3177 = vmatpush1.msra.mxu0 0.0
    %3178 = vmatprep.subr.mxu0 0.0
    %3179 = vmatpush1.msra.mxu0 0.0
    %3180 = vmatprep.subr.mxu0 0.0
    %3181 = vmatpush1.msra.mxu0 0.0
    %3182 = vmatprep.subr.mxu0 0.0
    %3183 = vmatpush1.msra.mxu0 0.0
    %3184 = vmatprep.subr.mxu0 0.0
    %3185 = vmatpush1.msra.mxu0 0.0
    %3186 = vmatprep.subr.mxu0 0.0
    %3187 = vmatpush1.msra.mxu0 0.0
    %3188 = vmatprep.subr.mxu0 0.0
    %3189 = vmatpush1.msra.mxu0 0.0
    %3190 = vmatprep.subr.mxu0 0.0
    %3191 = vmatpush1.msra.mxu0 0.0
    %3192 = vmatprep.subr.mxu0 0.0
    %3193 = vmatpush1.msra.mxu0 0.0
    %3194 = vmatprep.subr.mxu0 0.0
    %3195 = vmatpush1.msra.mxu0 0.0
    %3196 = vmatprep.subr.mxu0 0.0
    %3197 = vmatpush1.msra.mxu0 0.0
    %3198 = vmatprep.subr.mxu0 0.0
    %3199 = vmatpush1.msra.mxu0 0.0
    %3200 = vmatprep.subr.mxu0 0.0
    %3201 = vmatpush1.msra.mxu0 0.0
    %3202 = vmatprep.subr.mxu0 0.0
    %3203 = vmatpush1.msra.mxu0 0.0
    %3204 = vmatprep.subr.mxu0 0.0
    %3205 = vmatpush1.msra.mxu0 0.0
    %3206 = vmatprep.mubr.f32.mxu0 0.0
    %3207 = vmatmul.mubr.f32.gmra.mrb[0].mxu0 %v3125
    %v3208 = vpop.f32.mrb[0].mxu0
    %v3209 = vadd.f32 %v406, %v3208
    %v3210 = vpop.f32.mrb[0].mxu0
    %3211 = vdwg.mxu0
    %3212 = vst [vmem:[#allocation14 + $0x38] sm:$0xff] %v3209
    %3213 = vst [vmem:[#allocation15] sm:$0xff] %v2688
    %s3214 = scalar_lea.vmem [#allocation15], 8
    %3215 = vst [vmem:[%s3214] sm:$0xff] %v3124
    // Predicated region
    $region62: #{tpu_custom_call.1} parent=1 // pred_check
      _
    $region63: #{tpu_custom_call.1} parent=1 // pred_check_branch
      %3217 = sbr.rel (0) target = $region65
    $region64: #{tpu_custom_call.1} parent=1 // pred_region
      %s3219 = ssub.s32 1024, 1024
      %3220 = vsyncadd [#allocation5], %s3219
      %s3221 = sshll.u32 [#allocation14], 4
      %s3222 = int_to_ptr.vmem [resolvable:$true] %s3221
      %3227 = dma.vmem_to_hbm [thread:$0]  %s3222, 1024, %s9, [#allocation5], 128, 128, 8
    $region65: #{tpu_custom_call.1} parent=1 // pred_fallthru
      _
    // Predicated region
    $region66: #{tpu_custom_call.1} parent=1 // pred_check
      _
    $region67: #{tpu_custom_call.1} parent=1 // pred_check_branch
      %3229 = sbr.rel (0) target = $region69
    $region68: #{tpu_custom_call.1} parent=1 // pred_region
      %s3231 = ssub.s32 256, 256
      %3232 = vsyncadd [#allocation16], %s3231
      %s3233 = sshll.u32 [#allocation15], 4
      %s3234 = int_to_ptr.vmem [resolvable:$true] %s3233
      %3239 = dma.vmem_to_hbm [thread:$0]  %s3234, 256, %s10, [#allocation16], 128, 128, 8
    $region69: #{tpu_custom_call.1} parent=1 // pred_fallthru
      _
    // Predicated region
    $region70: #{tpu_custom_call.1} parent=1 // pred_check
      _
    $region71: #{tpu_custom_call.1} parent=1 // pred_check_branch
      %3241 = sbr.rel (0) target = $region73
    $region72: #{tpu_custom_call.1} parent=1 // pred_region
      %3242 = dma.done [#allocation5], 1024
    $region73: #{tpu_custom_call.1} parent=1 // pred_fallthru
      _
    // Predicated region
    $region74: #{tpu_custom_call.1} parent=1 // pred_check
      _
    $region75: #{tpu_custom_call.1} parent=1 // pred_check_branch
      %3244 = sbr.rel (0) target = $region77
    $region76: #{tpu_custom_call.1} parent=1 // pred_region
      %3245 = dma.done [#allocation16], 256
    $region77: #{tpu_custom_call.1} parent=1 // pred_fallthru
      _
    %3246 = vsyncpa [#allocation4], 1
    %3247 = vsyncpa [#allocation7], 1
    %3248 = vsyncpa [#allocation10], 1
    %3249 = vsyncpa [#allocation13], 1
    %3250 = vsyncpa [#allocation5], 1
    %3251 = vsyncpa [#allocation16], 1

</llo_original>
